<compile_context>
chip_gen: v5e
topology: v5e:2x2
jax: 0.10.0
libtpu: 0.0.40
codegen_flags: <defaults>
</compile_context>

<pallas_src>
import math
import jax
import jax.numpy as jnp
from jax.experimental import pallas as pl
from jax.experimental.pallas import tpu as pltpu

# ---------------- config (small, consistent with the module's forward) ----------------
B = 2            # batch
S = 8            # sequence length (block_size)
H = 32           # hidden size
NH = 2           # attention heads
DH = H // NH     # head dim
I = 64           # FFN intermediate
V = 128          # vocab size (== one lane tile)
LANES = 128      # lane-dense output width
CLS_ID, SEP_ID, MASK_ID = 101, 102, 103
MASK_PROB = 0.15
GEN_W, DISC_W = 1.0, 50.0
# max_predictions_per_sequence = (p + 0.005) * block_size  (torch long truncation)
MAX_PRED = int((MASK_PROB + 0.005) * S)
N_MASK = max(1, min(MAX_PRED, int(S * MASK_PROB)))   # number_of_tokens_to_be_masked


# ---------------- in-kernel helpers (pure jnp, lower inside Mosaic) ----------------
def _gelu(x):
    # TODO(synk): tanh-approx gelu; HF ELECTRA default is exact erf gelu (tiny numerical drift).
    c = math.sqrt(2.0 / math.pi)
    return 0.5 * x * (1.0 + jnp.tanh(c * (x + 0.044715 * x * x * x)))


def _layernorm(x, g, b, eps=1e-12):
    mu = jnp.mean(x, axis=-1, keepdims=True)
    var = jnp.mean((x - mu) ** 2, axis=-1, keepdims=True)
    return (x - mu) * jax.lax.rsqrt(var + eps) * g + b


def _softmax_rows(s):
    s = s - jnp.max(s, axis=-1, keepdims=True)
    p = jnp.exp(s)
    return p * pl.reciprocal(jnp.sum(p, axis=-1, keepdims=True), approx=True)


def _embed_tokens(ids_col, wemb, pos, g, b):
    # one-hot (S,V) @ (V,H) on the MXU == word_emb[ids]; V=128 is exactly one lane tile
    iota_v = jax.lax.broadcasted_iota(jnp.int32, (S, V), 1)
    onehot = (iota_v == ids_col).astype(jnp.float32)
    x = jnp.dot(onehot, wemb, preferred_element_type=jnp.float32) + pos
    return _layernorm(x, g, b)


def _encoder_layer(x, amask, enc_refs):
    (wq, wk, wv, wo, bq, bk, bv, bo,
     ln1g, ln1b, w1, b1, w2, b2, ln2g, ln2b) = enc_refs
    inv = 1.0 / math.sqrt(DH)
    attn = bo[...]                                        # (1,H), broadcasts
    for h in range(NH):                                   # static unroll; no lane slicing/concat
        qh = jnp.dot(x, wq[h], preferred_element_type=jnp.float32) + bq[h]   # (S,DH)
        kh = jnp.dot(x, wk[h], preferred_element_type=jnp.float32) + bk[h]
        vh = jnp.dot(x, wv[h], preferred_element_type=jnp.float32) + bv[h]
        s = jax.lax.dot_general(qh, kh, (((1,), (1,)), ((), ())),
                                preferred_element_type=jnp.float32) * inv    # (S,S)
        p = _softmax_rows(s + amask)
        ctx = jnp.dot(p, vh, preferred_element_type=jnp.float32)             # (S,DH)
        attn = attn + jnp.dot(ctx, wo[h], preferred_element_type=jnp.float32)  # (S,H)
    h1 = _layernorm(x + attn, ln1g[...], ln1b[...])
    ffn = _gelu(jnp.dot(h1, w1[...], preferred_element_type=jnp.float32) + b1[...])
    ffn = jnp.dot(ffn, w2[...], preferred_element_type=jnp.float32) + b2[...]
    return _layernorm(h1 + ffn, ln2g[...], ln2b[...])


def _stats_row(a, b):
    # pack two (1,1) partial sums into a lane-dense (1,LANES) row: lane0=a, lane1=b
    lane = jax.lax.broadcasted_iota(jnp.int32, (1, LANES), 1)
    return jnp.where(lane == 0, a, jnp.where(lane == 1, b, jnp.zeros_like(a)))


# ---------------- fused Pallas kernels (one per model) ----------------
def generator_kernel(ids_ref, labels_ref, amask_ref,
                     wemb_ref, pos_ref, elng_ref, elnb_ref,
                     wq_ref, wk_ref, wv_ref, wo_ref,
                     bq_ref, bk_ref, bv_ref, bo_ref,
                     ln1g_ref, ln1b_ref, w1_ref, b1_ref, w2_ref, b2_ref,
                     ln2g_ref, ln2b_ref,
                     wd_ref, bd_ref, hlng_ref, hlnb_ref, wembT_ref, bout_ref,
                     logits_ref, stats_ref):
    ids = ids_ref[0]                                                     # (S,1) int32
    x = _embed_tokens(ids, wemb_ref[...], pos_ref[...], elng_ref[...], elnb_ref[...])
    enc_refs = (wq_ref, wk_ref, wv_ref, wo_ref, bq_ref, bk_ref, bv_ref, bo_ref,
                ln1g_ref, ln1b_ref, w1_ref, b1_ref, w2_ref, b2_ref, ln2g_ref, ln2b_ref)
    x = _encoder_layer(x, amask_ref[0], enc_refs)

    # MLM head; tied decoder uses pre-transposed (H,V) embedding -> lane-dense MXU matmul
    h = _gelu(jnp.dot(x, wd_ref[...], preferred_element_type=jnp.float32) + bd_ref[...])
    h = _layernorm(h, hlng_ref[...], hlnb_ref[...])
    logits = jnp.dot(h, wembT_ref[...], preferred_element_type=jnp.float32) + bout_ref[...]
    logits_ref[0] = logits                                               # (S,V), full-tile store

    # masked-LM cross entropy, reduced in-kernel
    labels = labels_ref[0]                                               # (S,1) int32
    m = jnp.max(logits, axis=-1, keepdims=True)
    lse = jnp.log(jnp.sum(jnp.exp(logits - m), axis=-1, keepdims=True)) + m
    iota_v = jax.lax.broadcasted_iota(jnp.int32, (S, V), 1)
    onehot = (iota_v == labels).astype(jnp.float32)
    picked = jnp.sum(logits * onehot, axis=-1, keepdims=True)
    valid = (labels != -100).astype(jnp.float32)                         # (S,1)
    loss_sum = jnp.sum((lse - picked) * valid, axis=0, keepdims=True)    # (1,1)
    valid_sum = jnp.sum(valid, axis=0, keepdims=True)                    # (1,1)
    stats_ref[0] = _stats_row(loss_sum, valid_sum)


def discriminator_kernel(ids_ref, dlab_ref, lmask_ref, amask_ref,
                         wemb_ref, pos_ref, elng_ref, elnb_ref,
                         wq_ref, wk_ref, wv_ref, wo_ref,
                         bq_ref, bk_ref, bv_ref, bo_ref,
                         ln1g_ref, ln1b_ref, w1_ref, b1_ref, w2_ref, b2_ref,
                         ln2g_ref, ln2b_ref,
                         dw1_ref, db1_ref, dw2_ref, db2_ref,
                         logits_ref, stats_ref):
    ids = ids_ref[0]                                                     # (S,1) int32
    x = _embed_tokens(ids, wemb_ref[...], pos_ref[...], elng_ref[...], elnb_ref[...])
    enc_refs = (wq_ref, wk_ref, wv_ref, wo_ref, bq_ref, bk_ref, bv_ref, bo_ref,
                ln1g_ref, ln1b_ref, w1_ref, b1_ref, w2_ref, b2_ref, ln2g_ref, ln2b_ref)
    x = _encoder_layer(x, amask_ref[0], enc_refs)

    # binary token-classification head
    h = _gelu(jnp.dot(x, dw1_ref[...], preferred_element_type=jnp.float32) + db1_ref[...])
    logit = jnp.sum(h * dw2_ref[...], axis=-1, keepdims=True) + db2_ref[...]   # (S,1)

    # scatter the S per-token logits into a lane-dense (1,LANES) row (no width-1 output)
    sel = (jax.lax.broadcasted_iota(jnp.int32, (S, LANES), 0) ==
           jax.lax.broadcasted_iota(jnp.int32, (S, LANES), 1)).astype(jnp.float32)
    logits_ref[0] = jnp.sum(logit * sel, axis=0, keepdims=True)          # (1,LANES)

    # BCE-with-logits, reduced in-kernel over active (attention-masked) tokens
    z = dlab_ref[0].astype(jnp.float32)                                  # (S,1)
    bce = jnp.maximum(logit, 0.0) - logit * z + jnp.log1p(jnp.exp(-jnp.abs(logit)))
    msk = lmask_ref[0]                                                   # (S,1) float
    loss_sum = jnp.sum(bce * msk, axis=0, keepdims=True)                 # (1,1)
    msk_sum = jnp.sum(msk, axis=0, keepdims=True)                        # (1,1)
    stats_ref[0] = _stats_row(loss_sum, msk_sum)


# ---------------- BlockSpec helpers ----------------
def _rep_spec(shape):
    if len(shape) == 2:
        return pl.BlockSpec(shape, lambda b: (0, 0))
    return pl.BlockSpec(shape, lambda b: (0, 0, 0))


def _embed_specs():
    return [_rep_spec((V, H)), _rep_spec((S, H)), _rep_spec((1, H)), _rep_spec((1, H))]


def _enc_specs():
    return [_rep_spec((NH, H, DH)), _rep_spec((NH, H, DH)), _rep_spec((NH, H, DH)),
            _rep_spec((NH, DH, H)),
            _rep_spec((NH, 1, DH)), _rep_spec((NH, 1, DH)), _rep_spec((NH, 1, DH)),
            _rep_spec((1, H)),
            _rep_spec((1, H)), _rep_spec((1, H)),
            _rep_spec((H, I)), _rep_spec((1, I)), _rep_spec((I, H)), _rep_spec((1, H)),
            _rep_spec((1, H)), _rep_spec((1, H))]


# ---------------- pallas_call wrappers ----------------
def run_generator(ids, mlm_labels, add_mask, shared_prep, enc_prep, head_p):
    in_specs = ([pl.BlockSpec((1, S, 1), lambda b: (b, 0, 0)),     # ids
                 pl.BlockSpec((1, S, 1), lambda b: (b, 0, 0)),     # mlm labels
                 pl.BlockSpec((1, 1, S), lambda b: (b, 0, 0))]     # additive attention mask
                + _embed_specs() + _enc_specs()
                + [_rep_spec((H, H)), _rep_spec((1, H)), _rep_spec((1, H)),
                   _rep_spec((1, H)), _rep_spec((H, V)), _rep_spec((1, V))])
    logits, stats = pl.pallas_call(
        generator_kernel,
        out_shape=(jax.ShapeDtypeStruct((B, S, V), jnp.float32),
                   jax.ShapeDtypeStruct((B, 1, LANES), jnp.float32)),
        grid_spec=pltpu.PrefetchScalarGridSpec(
            num_scalar_prefetch=0, grid=(B,),
            in_specs=in_specs,
            out_specs=[pl.BlockSpec((1, S, V), lambda b: (b, 0, 0)),
                       pl.BlockSpec((1, 1, LANES), lambda b: (b, 0, 0))]),
        compiler_params=pltpu.CompilerParams(dimension_semantics=("parallel",)),
    )(ids[:, :, None].astype(jnp.int32),
      mlm_labels[:, :, None].astype(jnp.int32),
      add_mask,
      shared_prep["word_emb"], shared_prep["pos_emb"],
      shared_prep["emb_ln_g"], shared_prep["emb_ln_b"],
      *enc_prep,
      head_p["wd"], head_p["bd"], head_p["ln_g"], head_p["ln_b"],
      shared_prep["word_emb_T"], head_p["b_out"])
    loss = stats[:, 0, 0].sum() / jnp.maximum(stats[:, 0, 1].sum(), 1.0)
    return loss, logits


def run_discriminator(ids, disc_labels, attention_mask, add_mask, shared_prep, enc_prep, head_p):
    in_specs = ([pl.BlockSpec((1, S, 1), lambda b: (b, 0, 0)),     # fake tokens
                 pl.BlockSpec((1, S, 1), lambda b: (b, 0, 0)),     # disc labels
                 pl.BlockSpec((1, S, 1), lambda b: (b, 0, 0)),     # loss mask
                 pl.BlockSpec((1, 1, S), lambda b: (b, 0, 0))]     # additive attention mask
                + _embed_specs() + _enc_specs()
                + [_rep_spec((H, H)), _rep_spec((1, H)), _rep_spec((1, H)), _rep_spec((1, 1))])
    logits_row, stats = pl.pallas_call(
        discriminator_kernel,
        out_shape=(jax.ShapeDtypeStruct((B, 1, LANES), jnp.float32),
                   jax.ShapeDtypeStruct((B, 1, LANES), jnp.float32)),
        grid_spec=pltpu.PrefetchScalarGridSpec(
            num_scalar_prefetch=0, grid=(B,),
            in_specs=in_specs,
            out_specs=[pl.BlockSpec((1, 1, LANES), lambda b: (b, 0, 0)),
                       pl.BlockSpec((1, 1, LANES), lambda b: (b, 0, 0))]),
        compiler_params=pltpu.CompilerParams(dimension_semantics=("parallel",)),
    )(ids[:, :, None].astype(jnp.int32),
      disc_labels[:, :, None].astype(jnp.int32),
      attention_mask[:, :, None].astype(jnp.float32),
      add_mask,
      shared_prep["word_emb"], shared_prep["pos_emb"],
      shared_prep["emb_ln_g"], shared_prep["emb_ln_b"],
      *enc_prep,
      head_p["w1"], head_p["b1"], head_p["w2"], head_p["b2"])
    loss = stats[:, 0, 0].sum() / jnp.maximum(stats[:, 0, 1].sum(), 1.0)
    return loss, logits_row[:, 0, :S]                       # (B,S) token logits


# ---------------- host-side weight prep (once, outside the kernels) ----------------
def _prep_shared(sh):
    return dict(word_emb=sh["word_emb"], word_emb_T=sh["word_emb"].T,
                pos_emb=sh["pos_emb"], emb_ln_g=sh["emb_ln_g"], emb_ln_b=sh["emb_ln_b"])


def _prep_encoder(p):
    wq = p["wq"].reshape(H, NH, DH).transpose(1, 0, 2)      # (NH,H,DH)
    wk = p["wk"].reshape(H, NH, DH).transpose(1, 0, 2)
    wv = p["wv"].reshape(H, NH, DH).transpose(1, 0, 2)
    wo = p["wo"].reshape(NH, DH, H)                         # (NH,DH,H)
    bq = p["bq"].reshape(NH, 1, DH)
    bk = p["bk"].reshape(NH, 1, DH)
    bv = p["bv"].reshape(NH, 1, DH)
    return (wq, wk, wv, wo, bq, bk, bv, p["bo"],
            p["ln1_g"], p["ln1_b"], p["w1"], p["b1"], p["w2"], p["b2"],
            p["ln2_g"], p["ln2_b"])


# ---------------- model glue (plain JAX) ----------------
def mask_inputs(key, input_ids):
    # tokens_to_ignore = [cls, sep, mask]
    can_mask = jnp.ones_like(input_ids)
    for tok in (CLS_ID, SEP_ID, MASK_ID):
        can_mask = can_mask - (input_ids == tok).astype(input_ids.dtype)
    sample_prob = can_mask.astype(jnp.float32)
    sample_prob = sample_prob / jnp.sum(sample_prob)
    # weighted sampling without replacement per row (Gumbel top-k == torch.multinomial)
    g = -jnp.log(-jnp.log(jax.random.uniform(key, sample_prob.shape,
                                             minval=1e-9, maxval=1.0)))
    scores = jnp.where(sample_prob > 0, jnp.log(sample_prob + 1e-30), -1e30) + g
    _, positions = jax.lax.top_k(scores, N_MASK)
    positions = positions.astype(jnp.int32)
    masked_lm_ids = jnp.take_along_axis(input_ids, positions, axis=-1)
    return masked_lm_ids, positions


def combined_forward(params, input_ids, attention_mask, labels, key):
    k1, k2, k3 = jax.random.split(key, 3)
    brow = jnp.arange(B)[:, None]

    masked_input_ids, masked_lm_positions = mask_inputs(k1, input_ids)
    masked_lm_labels = jnp.full_like(input_ids, -100)
    masked_lm_labels = masked_lm_labels.at[brow, masked_lm_positions].set(masked_input_ids)

    masked_tokens = jnp.full_like(masked_input_ids, MASK_ID)
    replace = (jax.random.uniform(k2, masked_lm_positions.shape)
               < (1.0 - MASK_PROB)).astype(masked_lm_positions.dtype)
    replace_with_mask_positions = masked_lm_positions * replace   # matches torch reference
    masked_lm_inputs = input_ids.at[brow, replace_with_mask_positions].set(masked_tokens)
    masked_lm_inputs = masked_lm_inputs.at[:, 0].set(101)

    add_mask = ((attention_mask.astype(jnp.float32) - 1.0) * 1e9)[:, None, :]   # (B,1,S)

    shared_prep = _prep_shared(params["shared"])
    gen_enc_prep = _prep_encoder(params["gen_enc"])
    disc_enc_prep = _prep_encoder(params["disc_enc"])

    generator_loss, generator_output = run_generator(
        masked_lm_inputs, masked_lm_labels, add_mask,
        shared_prep, gen_enc_prep, params["gen_head"])

    # gather_positions + sampling
    fake_logits = jnp.take_along_axis(generator_output,
                                      masked_lm_positions[:, :, None], axis=1)
    fake_softmaxed = jax.nn.softmax(fake_logits, axis=-1)
    fake_sampled = jax.random.categorical(
        k3, jnp.log(fake_softmaxed + 1e-30), axis=-1).astype(input_ids.dtype)
    fake_tokens = input_ids.at[brow, masked_lm_positions].set(fake_sampled)
    fake_tokens = fake_tokens.at[:, 0].set(input_ids[:, 0])

    discriminator_labels = (labels != fake_tokens).astype(jnp.int32)
    discriminator_loss, discriminator_output = run_discriminator(
        fake_tokens, discriminator_labels, attention_mask, add_mask,
        shared_prep, disc_enc_prep, params["disc_head"])
    discriminator_predictions = jnp.round((jnp.sign(discriminator_output) + 1.0) * 0.5)

    total_loss = DISC_W * discriminator_loss + GEN_W * generator_loss
    return (total_loss,
            (generator_output, discriminator_output),
            (masked_input_ids, fake_sampled),
            (discriminator_labels, discriminator_predictions))


# ---------------- deterministic parameter init ----------------
def init_params(key):
    keys = jax.random.split(key, 20)
    dense = lambda k, shape: 0.02 * jax.random.normal(k, shape, jnp.float32)
    shared = dict(word_emb=dense(keys[0], (V, H)),
                  pos_emb=dense(keys[1], (S, H)),
                  emb_ln_g=jnp.ones((1, H), jnp.float32),
                  emb_ln_b=jnp.zeros((1, H), jnp.float32))

    def enc(ks):
        return dict(wq=dense(ks[0], (H, H)), wk=dense(ks[1], (H, H)),
                    wv=dense(ks[2], (H, H)), wo=dense(ks[3], (H, H)),
                    bq=jnp.zeros((1, H)), bk=jnp.zeros((1, H)),
                    bv=jnp.zeros((1, H)), bo=jnp.zeros((1, H)),
                    ln1_g=jnp.ones((1, H)), ln1_b=jnp.zeros((1, H)),
                    w1=dense(ks[4], (H, I)), b1=jnp.zeros((1, I)),
                    w2=dense(ks[5], (I, H)), b2=jnp.zeros((1, H)),
                    ln2_g=jnp.ones((1, H)), ln2_b=jnp.zeros((1, H)))

    gen_enc = enc(keys[2:8])
    disc_enc = enc(keys[8:14])
    gen_head = dict(wd=dense(keys[14], (H, H)), bd=jnp.zeros((1, H)),
                    ln_g=jnp.ones((1, H)), ln_b=jnp.zeros((1, H)),
                    b_out=jnp.zeros((1, V)))
    disc_head_p = dict(w1=dense(keys[15], (H, H)), b1=jnp.zeros((1, H)),
                       w2=dense(keys[16], (1, H)), b2=jnp.zeros((1, 1)))
    return dict(shared=shared, gen_enc=gen_enc, disc_enc=disc_enc,
                gen_head=gen_head, disc_head=disc_head_p)


if __name__ == "__main__":
    root = jax.random.PRNGKey(0)
    k_params, k_ids, k_fwd = jax.random.split(root, 3)

    params = init_params(k_params)
    input_ids = jax.random.randint(k_ids, (B, S), 0, V, dtype=jnp.int32)
    input_ids = input_ids.at[:, 0].set(CLS_ID).at[:, -1].set(SEP_ID)
    attention_mask = jnp.ones((B, S), jnp.int32)
    labels = input_ids  # trainer passes input_ids as labels for the discriminator target

    fwd = jax.jit(combined_forward)
    out = fwd(params, input_ids, attention_mask, labels, k_fwd)
    total_loss = jax.block_until_ready(out[0])
    assert jnp.isfinite(total_loss)
    print("KERNEL_OK")
</pallas_src>

<mosaic_0001>
module attributes {stable_mosaic.version = 11 : i64} {
  func.func @generator_kernel(%arg0: i32, %arg1: memref<1x8x1xi32, #tpu.memory_space<vmem>>, %arg2: memref<1x8x1xi32, #tpu.memory_space<vmem>>, %arg3: memref<1x1x8xf32, #tpu.memory_space<vmem>>, %arg4: memref<128x32xf32, #tpu.memory_space<vmem>>, %arg5: memref<8x32xf32, #tpu.memory_space<vmem>>, %arg6: memref<1x32xf32, #tpu.memory_space<vmem>>, %arg7: memref<1x32xf32, #tpu.memory_space<vmem>>, %arg8: memref<2x32x16xf32, #tpu.memory_space<vmem>>, %arg9: memref<2x32x16xf32, #tpu.memory_space<vmem>>, %arg10: memref<2x32x16xf32, #tpu.memory_space<vmem>>, %arg11: memref<2x16x32xf32, #tpu.memory_space<vmem>>, %arg12: memref<2x1x16xf32, #tpu.memory_space<vmem>>, %arg13: memref<2x1x16xf32, #tpu.memory_space<vmem>>, %arg14: memref<2x1x16xf32, #tpu.memory_space<vmem>>, %arg15: memref<1x32xf32, #tpu.memory_space<vmem>>, %arg16: memref<1x32xf32, #tpu.memory_space<vmem>>, %arg17: memref<1x32xf32, #tpu.memory_space<vmem>>, %arg18: memref<32x64xf32, #tpu.memory_space<vmem>>, %arg19: memref<1x64xf32, #tpu.memory_space<vmem>>, %arg20: memref<64x32xf32, #tpu.memory_space<vmem>>, %arg21: memref<1x32xf32, #tpu.memory_space<vmem>>, %arg22: memref<1x32xf32, #tpu.memory_space<vmem>>, %arg23: memref<1x32xf32, #tpu.memory_space<vmem>>, %arg24: memref<32x32xf32, #tpu.memory_space<vmem>>, %arg25: memref<1x32xf32, #tpu.memory_space<vmem>>, %arg26: memref<1x32xf32, #tpu.memory_space<vmem>>, %arg27: memref<1x32xf32, #tpu.memory_space<vmem>>, %arg28: memref<32x128xf32, #tpu.memory_space<vmem>>, %arg29: memref<1x128xf32, #tpu.memory_space<vmem>>, %arg30: memref<1x8x128xf32, #tpu.memory_space<vmem>>, %arg31: memref<1x1x128xf32, #tpu.memory_space<vmem>>) attributes {dimension_semantics = [#tpu.dimension_semantics<parallel>], iteration_bounds = array<i64: 2>, scalar_prefetch = 0 : i64, scratch_operands = 0 : i64, tpu.core_type = #tpu.core_type<tc>, window_params = [{transform_indices = @transform_0, window_bounds = array<i64: 1, 8, 1>}, {transform_indices = @transform_1, window_bounds = array<i64: 1, 8, 1>}, {transform_indices = @transform_2, window_bounds = array<i64: 1, 1, 8>}, {pipeline_mode = #tpu.pipeline_mode<synchronous>, transform_indices = @transform_3, window_bounds = array<i64: 128, 32>}, {pipeline_mode = #tpu.pipeline_mode<synchronous>, transform_indices = @transform_4, window_bounds = array<i64: 8, 32>}, {pipeline_mode = #tpu.pipeline_mode<synchronous>, transform_indices = @transform_5, window_bounds = array<i64: 1, 32>}, {pipeline_mode = #tpu.pipeline_mode<synchronous>, transform_indices = @transform_6, window_bounds = array<i64: 1, 32>}, {pipeline_mode = #tpu.pipeline_mode<synchronous>, transform_indices = @transform_7, window_bounds = array<i64: 2, 32, 16>}, {pipeline_mode = #tpu.pipeline_mode<synchronous>, transform_indices = @transform_8, window_bounds = array<i64: 2, 32, 16>}, {pipeline_mode = #tpu.pipeline_mode<synchronous>, transform_indices = @transform_9, window_bounds = array<i64: 2, 32, 16>}, {pipeline_mode = #tpu.pipeline_mode<synchronous>, transform_indices = @transform_10, window_bounds = array<i64: 2, 16, 32>}, {pipeline_mode = #tpu.pipeline_mode<synchronous>, transform_indices = @transform_11, window_bounds = array<i64: 2, 1, 16>}, {pipeline_mode = #tpu.pipeline_mode<synchronous>, transform_indices = @transform_12, window_bounds = array<i64: 2, 1, 16>}, {pipeline_mode = #tpu.pipeline_mode<synchronous>, transform_indices = @transform_13, window_bounds = array<i64: 2, 1, 16>}, {pipeline_mode = #tpu.pipeline_mode<synchronous>, transform_indices = @transform_14, window_bounds = array<i64: 1, 32>}, {pipeline_mode = #tpu.pipeline_mode<synchronous>, transform_indices = @transform_15, window_bounds = array<i64: 1, 32>}, {pipeline_mode = #tpu.pipeline_mode<synchronous>, transform_indices = @transform_16, window_bounds = array<i64: 1, 32>}, {pipeline_mode = #tpu.pipeline_mode<synchronous>, transform_indices = @transform_17, window_bounds = array<i64: 32, 64>}, {pipeline_mode = #tpu.pipeline_mode<synchronous>, transform_indices = @transform_18, window_bounds = array<i64: 1, 64>}, {pipeline_mode = #tpu.pipeline_mode<synchronous>, transform_indices = @transform_19, window_bounds = array<i64: 64, 32>}, {pipeline_mode = #tpu.pipeline_mode<synchronous>, transform_indices = @transform_20, window_bounds = array<i64: 1, 32>}, {pipeline_mode = #tpu.pipeline_mode<synchronous>, transform_indices = @transform_21, window_bounds = array<i64: 1, 32>}, {pipeline_mode = #tpu.pipeline_mode<synchronous>, transform_indices = @transform_22, window_bounds = array<i64: 1, 32>}, {pipeline_mode = #tpu.pipeline_mode<synchronous>, transform_indices = @transform_23, window_bounds = array<i64: 32, 32>}, {pipeline_mode = #tpu.pipeline_mode<synchronous>, transform_indices = @transform_24, window_bounds = array<i64: 1, 32>}, {pipeline_mode = #tpu.pipeline_mode<synchronous>, transform_indices = @transform_25, window_bounds = array<i64: 1, 32>}, {pipeline_mode = #tpu.pipeline_mode<synchronous>, transform_indices = @transform_26, window_bounds = array<i64: 1, 32>}, {pipeline_mode = #tpu.pipeline_mode<synchronous>, transform_indices = @transform_27, window_bounds = array<i64: 32, 128>}, {pipeline_mode = #tpu.pipeline_mode<synchronous>, transform_indices = @transform_28, window_bounds = array<i64: 1, 128>}, {transform_indices = @transform_29, window_bounds = array<i64: 1, 8, 128>}, {transform_indices = @transform_30, window_bounds = array<i64: 1, 1, 128>}]} {
    %c0 = arith.constant 0 : index
    %c0_0 = arith.constant 0 : index
    %c0_1 = arith.constant 0 : index
    %0 = vector.load %arg1[%c0, %c0_0, %c0_1] : memref<1x8x1xi32, #tpu.memory_space<vmem>>, vector<1x8x1xi32>
    %1 = vector.shape_cast %0 : vector<1x8x1xi32> to vector<8x1xi32>
    %c0_2 = arith.constant 0 : index
    %c0_3 = arith.constant 0 : index
    %2 = vector.load %arg4[%c0_2, %c0_3] : memref<128x32xf32, #tpu.memory_space<vmem>>, vector<128x32xf32>
    %c0_4 = arith.constant 0 : index
    %c0_5 = arith.constant 0 : index
    %3 = vector.load %arg5[%c0_4, %c0_5] : memref<8x32xf32, #tpu.memory_space<vmem>>, vector<8x32xf32>
    %c0_6 = arith.constant 0 : index
    %c0_7 = arith.constant 0 : index
    %4 = vector.load %arg6[%c0_6, %c0_7] : memref<1x32xf32, #tpu.memory_space<vmem>>, vector<1x32xf32>
    %c0_8 = arith.constant 0 : index
    %c0_9 = arith.constant 0 : index
    %5 = vector.load %arg7[%c0_8, %c0_9] : memref<1x32xf32, #tpu.memory_space<vmem>>, vector<1x32xf32>
    %6 = tpu.iota {dimensions = array<i32: 1>} : vector<8x128xi32>
    %7 = vector.broadcast %1 : vector<8x1xi32> to vector<8x128xi32>
    %8 = arith.cmpi eq, %6, %7 : vector<8x128xi32>
    %9 = arith.extui %8 : vector<8x128xi1> to vector<8x128xi32>
    %10 = arith.sitofp %9 : vector<8x128xi32> to vector<8x128xf32>
    %cst = arith.constant dense<0.000000e+00> : vector<8x32xf32>
    %11 = tpu.matmul %10, %2, %cst {dimension_numbers = #tpu.dot_dimension_numbers<[1], [0], [0], [1], [0, 0, 1, 1], [], []>} : vector<8x128xf32>, vector<128x32xf32>, vector<8x32xf32> -> vector<8x32xf32>
    %12 = arith.addf %11, %3 : vector<8x32xf32>
    %cst_10 = arith.constant dense<0.000000e+00> : vector<8xf32>
    %13 = vector.multi_reduction <add>, %12, %cst_10 [1] : vector<8x32xf32> to vector<8xf32>
    %14 = vector.shape_cast %13 : vector<8xf32> to vector<8x1xf32>
    %cst_11 = arith.constant 3.200000e+01 : f32
    %15 = vector.broadcast %cst_11 : f32 to vector<8x1xf32>
    %16 = arith.divf %14, %15 : vector<8x1xf32>
    %17 = vector.broadcast %16 : vector<8x1xf32> to vector<8x32xf32>
    %18 = arith.subf %12, %17 : vector<8x32xf32>
    %19 = arith.mulf %18, %18 : vector<8x32xf32>
    %cst_12 = arith.constant dense<0.000000e+00> : vector<8xf32>
    %20 = vector.multi_reduction <add>, %19, %cst_12 [1] : vector<8x32xf32> to vector<8xf32>
    %21 = vector.shape_cast %20 : vector<8xf32> to vector<8x1xf32>
    %cst_13 = arith.constant 3.200000e+01 : f32
    %22 = vector.broadcast %cst_13 : f32 to vector<8x1xf32>
    %23 = arith.divf %21, %22 : vector<8x1xf32>
    %24 = vector.broadcast %16 : vector<8x1xf32> to vector<8x32xf32>
    %25 = arith.subf %12, %24 : vector<8x32xf32>
    %cst_14 = arith.constant 9.99999996E-13 : f32
    %26 = vector.broadcast %cst_14 : f32 to vector<8x1xf32>
    %27 = arith.addf %23, %26 : vector<8x1xf32>
    %28 = math.rsqrt %27 : vector<8x1xf32>
    %29 = vector.broadcast %28 : vector<8x1xf32> to vector<8x32xf32>
    %30 = arith.mulf %25, %29 : vector<8x32xf32>
    %31 = vector.broadcast %4 : vector<1x32xf32> to vector<8x32xf32>
    %32 = arith.mulf %30, %31 : vector<8x32xf32>
    %33 = vector.broadcast %5 : vector<1x32xf32> to vector<8x32xf32>
    %34 = arith.addf %32, %33 : vector<8x32xf32>
    %c0_15 = arith.constant 0 : index
    %c0_16 = arith.constant 0 : index
    %c0_17 = arith.constant 0 : index
    %35 = vector.load %arg3[%c0_15, %c0_16, %c0_17] : memref<1x1x8xf32, #tpu.memory_space<vmem>>, vector<1x1x8xf32>
    %36 = vector.shape_cast %35 : vector<1x1x8xf32> to vector<1x8xf32>
    %c0_18 = arith.constant 0 : index
    %c0_19 = arith.constant 0 : index
    %37 = vector.load %arg15[%c0_18, %c0_19] : memref<1x32xf32, #tpu.memory_space<vmem>>, vector<1x32xf32>
    %c0_20 = arith.constant 0 : index
    %c0_21 = arith.constant 0 : index
    %c0_22 = arith.constant 0 : index
    %38 = vector.load %arg8[%c0_20, %c0_21, %c0_22] : memref<2x32x16xf32, #tpu.memory_space<vmem>>, vector<1x32x16xf32>
    %39 = vector.shape_cast %38 : vector<1x32x16xf32> to vector<32x16xf32>
    %cst_23 = arith.constant dense<0.000000e+00> : vector<8x16xf32>
    %40 = tpu.matmul %34, %39, %cst_23 {dimension_numbers = #tpu.dot_dimension_numbers<[1], [0], [0], [1], [0, 0, 1, 1], [], []>} : vector<8x32xf32>, vector<32x16xf32>, vector<8x16xf32> -> vector<8x16xf32>
    %c0_24 = arith.constant 0 : index
    %c0_25 = arith.constant 0 : index
    %c0_26 = arith.constant 0 : index
    %41 = vector.load %arg12[%c0_24, %c0_25, %c0_26] : memref<2x1x16xf32, #tpu.memory_space<vmem>>, vector<1x1x16xf32>
    %42 = vector.shape_cast %41 : vector<1x1x16xf32> to vector<1x16xf32>
    %43 = vector.broadcast %42 : vector<1x16xf32> to vector<8x16xf32>
    %44 = arith.addf %40, %43 : vector<8x16xf32>
    %c0_27 = arith.constant 0 : index
    %c0_28 = arith.constant 0 : index
    %c0_29 = arith.constant 0 : index
    %45 = vector.load %arg9[%c0_27, %c0_28, %c0_29] : memref<2x32x16xf32, #tpu.memory_space<vmem>>, vector<1x32x16xf32>
    %46 = vector.shape_cast %45 : vector<1x32x16xf32> to vector<32x16xf32>
    %cst_30 = arith.constant dense<0.000000e+00> : vector<8x16xf32>
    %47 = tpu.matmul %34, %46, %cst_30 {dimension_numbers = #tpu.dot_dimension_numbers<[1], [0], [0], [1], [0, 0, 1, 1], [], []>} : vector<8x32xf32>, vector<32x16xf32>, vector<8x16xf32> -> vector<8x16xf32>
    %c0_31 = arith.constant 0 : index
    %c0_32 = arith.constant 0 : index
    %c0_33 = arith.constant 0 : index
    %48 = vector.load %arg13[%c0_31, %c0_32, %c0_33] : memref<2x1x16xf32, #tpu.memory_space<vmem>>, vector<1x1x16xf32>
    %49 = vector.shape_cast %48 : vector<1x1x16xf32> to vector<1x16xf32>
    %50 = vector.broadcast %49 : vector<1x16xf32> to vector<8x16xf32>
    %51 = arith.addf %47, %50 : vector<8x16xf32>
    %c0_34 = arith.constant 0 : index
    %c0_35 = arith.constant 0 : index
    %c0_36 = arith.constant 0 : index
    %52 = vector.load %arg10[%c0_34, %c0_35, %c0_36] : memref<2x32x16xf32, #tpu.memory_space<vmem>>, vector<1x32x16xf32>
    %53 = vector.shape_cast %52 : vector<1x32x16xf32> to vector<32x16xf32>
    %cst_37 = arith.constant dense<0.000000e+00> : vector<8x16xf32>
    %54 = tpu.matmul %34, %53, %cst_37 {dimension_numbers = #tpu.dot_dimension_numbers<[1], [0], [0], [1], [0, 0, 1, 1], [], []>} : vector<8x32xf32>, vector<32x16xf32>, vector<8x16xf32> -> vector<8x16xf32>
    %c0_38 = arith.constant 0 : index
    %c0_39 = arith.constant 0 : index
    %c0_40 = arith.constant 0 : index
    %55 = vector.load %arg14[%c0_38, %c0_39, %c0_40] : memref<2x1x16xf32, #tpu.memory_space<vmem>>, vector<1x1x16xf32>
    %56 = vector.shape_cast %55 : vector<1x1x16xf32> to vector<1x16xf32>
    %57 = vector.broadcast %56 : vector<1x16xf32> to vector<8x16xf32>
    %58 = arith.addf %54, %57 : vector<8x16xf32>
    %cst_41 = arith.constant dense<0.000000e+00> : vector<8x8xf32>
    %59 = tpu.matmul %44, %51, %cst_41 {dimension_numbers = #tpu.dot_dimension_numbers<[1], [1], [0], [0], [0, 0, 1, 0], [], []>} : vector<8x16xf32>, vector<8x16xf32>, vector<8x8xf32> -> vector<8x8xf32>
    %cst_42 = arith.constant 2.500000e-01 : f32
    %60 = vector.broadcast %cst_42 : f32 to vector<8x8xf32>
    %61 = arith.mulf %59, %60 : vector<8x8xf32>
    %62 = vector.broadcast %36 : vector<1x8xf32> to vector<8x8xf32>
    %63 = arith.addf %61, %62 : vector<8x8xf32>
    %cst_43 = arith.constant dense<0xFF800000> : vector<8xf32>
    %64 = vector.multi_reduction <maximumf>, %63, %cst_43 [1] : vector<8x8xf32> to vector<8xf32>
    %65 = vector.shape_cast %64 : vector<8xf32> to vector<8x1xf32>
    %66 = vector.broadcast %65 : vector<8x1xf32> to vector<8x8xf32>
    %67 = arith.subf %63, %66 : vector<8x8xf32>
    %68 = math.exp %67 : vector<8x8xf32>
    %cst_44 = arith.constant dense<0.000000e+00> : vector<8xf32>
    %69 = vector.multi_reduction <add>, %68, %cst_44 [1] : vector<8x8xf32> to vector<8xf32>
    %70 = vector.shape_cast %69 : vector<8xf32> to vector<8x1xf32>
    %71 = tpu.reciprocal %70 {approx = true} : vector<8x1xf32> -> vector<8x1xf32>
    %72 = vector.broadcast %71 : vector<8x1xf32> to vector<8x8xf32>
    %73 = arith.mulf %68, %72 : vector<8x8xf32>
    %cst_45 = arith.constant dense<0.000000e+00> : vector<8x16xf32>
    %74 = tpu.matmul %73, %58, %cst_45 {dimension_numbers = #tpu.dot_dimension_numbers<[1], [0], [0], [1], [0, 0, 1, 1], [], []>} : vector<8x8xf32>, vector<8x16xf32>, vector<8x16xf32> -> vector<8x16xf32>
    %c0_46 = arith.constant 0 : index
    %c0_47 = arith.constant 0 : index
    %c0_48 = arith.constant 0 : index
    %75 = vector.load %arg11[%c0_46, %c0_47, %c0_48] : memref<2x16x32xf32, #tpu.memory_space<vmem>>, vector<1x16x32xf32>
    %76 = vector.shape_cast %75 : vector<1x16x32xf32> to vector<16x32xf32>
    %cst_49 = arith.constant dense<0.000000e+00> : vector<8x32xf32>
    %77 = tpu.matmul %74, %76, %cst_49 {dimension_numbers = #tpu.dot_dimension_numbers<[1], [0], [0], [1], [0, 0, 1, 1], [], []>} : vector<8x16xf32>, vector<16x32xf32>, vector<8x32xf32> -> vector<8x32xf32>
    %78 = vector.broadcast %37 : vector<1x32xf32> to vector<8x32xf32>
    %79 = arith.addf %78, %77 : vector<8x32xf32>
    %c1 = arith.constant 1 : index
    %c0_50 = arith.constant 0 : index
    %c0_51 = arith.constant 0 : index
    %80 = vector.load %arg8[%c1, %c0_50, %c0_51] : memref<2x32x16xf32, #tpu.memory_space<vmem>>, vector<1x32x16xf32>
    %81 = vector.shape_cast %80 : vector<1x32x16xf32> to vector<32x16xf32>
    %cst_52 = arith.constant dense<0.000000e+00> : vector<8x16xf32>
    %82 = tpu.matmul %34, %81, %cst_52 {dimension_numbers = #tpu.dot_dimension_numbers<[1], [0], [0], [1], [0, 0, 1, 1], [], []>} : vector<8x32xf32>, vector<32x16xf32>, vector<8x16xf32> -> vector<8x16xf32>
    %c1_53 = arith.constant 1 : index
    %c0_54 = arith.constant 0 : index
    %c0_55 = arith.constant 0 : index
    %83 = vector.load %arg12[%c1_53, %c0_54, %c0_55] : memref<2x1x16xf32, #tpu.memory_space<vmem>>, vector<1x1x16xf32>
    %84 = vector.shape_cast %83 : vector<1x1x16xf32> to vector<1x16xf32>
    %85 = vector.broadcast %84 : vector<1x16xf32> to vector<8x16xf32>
    %86 = arith.addf %82, %85 : vector<8x16xf32>
    %c1_56 = arith.constant 1 : index
    %c0_57 = arith.constant 0 : index
    %c0_58 = arith.constant 0 : index
    %87 = vector.load %arg9[%c1_56, %c0_57, %c0_58] : memref<2x32x16xf32, #tpu.memory_space<vmem>>, vector<1x32x16xf32>
    %88 = vector.shape_cast %87 : vector<1x32x16xf32> to vector<32x16xf32>
    %cst_59 = arith.constant dense<0.000000e+00> : vector<8x16xf32>
    %89 = tpu.matmul %34, %88, %cst_59 {dimension_numbers = #tpu.dot_dimension_numbers<[1], [0], [0], [1], [0, 0, 1, 1], [], []>} : vector<8x32xf32>, vector<32x16xf32>, vector<8x16xf32> -> vector<8x16xf32>
    %c1_60 = arith.constant 1 : index
    %c0_61 = arith.constant 0 : index
    %c0_62 = arith.constant 0 : index
    %90 = vector.load %arg13[%c1_60, %c0_61, %c0_62] : memref<2x1x16xf32, #tpu.memory_space<vmem>>, vector<1x1x16xf32>
    %91 = vector.shape_cast %90 : vector<1x1x16xf32> to vector<1x16xf32>
    %92 = vector.broadcast %91 : vector<1x16xf32> to vector<8x16xf32>
    %93 = arith.addf %89, %92 : vector<8x16xf32>
    %c1_63 = arith.constant 1 : index
    %c0_64 = arith.constant 0 : index
    %c0_65 = arith.constant 0 : index
    %94 = vector.load %arg10[%c1_63, %c0_64, %c0_65] : memref<2x32x16xf32, #tpu.memory_space<vmem>>, vector<1x32x16xf32>
    %95 = vector.shape_cast %94 : vector<1x32x16xf32> to vector<32x16xf32>
    %cst_66 = arith.constant dense<0.000000e+00> : vector<8x16xf32>
    %96 = tpu.matmul %34, %95, %cst_66 {dimension_numbers = #tpu.dot_dimension_numbers<[1], [0], [0], [1], [0, 0, 1, 1], [], []>} : vector<8x32xf32>, vector<32x16xf32>, vector<8x16xf32> -> vector<8x16xf32>
    %c1_67 = arith.constant 1 : index
    %c0_68 = arith.constant 0 : index
    %c0_69 = arith.constant 0 : index
    %97 = vector.load %arg14[%c1_67, %c0_68, %c0_69] : memref<2x1x16xf32, #tpu.memory_space<vmem>>, vector<1x1x16xf32>
    %98 = vector.shape_cast %97 : vector<1x1x16xf32> to vector<1x16xf32>
    %99 = vector.broadcast %98 : vector<1x16xf32> to vector<8x16xf32>
    %100 = arith.addf %96, %99 : vector<8x16xf32>
    %cst_70 = arith.constant dense<0.000000e+00> : vector<8x8xf32>
    %101 = tpu.matmul %86, %93, %cst_70 {dimension_numbers = #tpu.dot_dimension_numbers<[1], [1], [0], [0], [0, 0, 1, 0], [], []>} : vector<8x16xf32>, vector<8x16xf32>, vector<8x8xf32> -> vector<8x8xf32>
    %cst_71 = arith.constant 2.500000e-01 : f32
    %102 = vector.broadcast %cst_71 : f32 to vector<8x8xf32>
    %103 = arith.mulf %101, %102 : vector<8x8xf32>
    %104 = vector.broadcast %36 : vector<1x8xf32> to vector<8x8xf32>
    %105 = arith.addf %103, %104 : vector<8x8xf32>
    %cst_72 = arith.constant dense<0xFF800000> : vector<8xf32>
    %106 = vector.multi_reduction <maximumf>, %105, %cst_72 [1] : vector<8x8xf32> to vector<8xf32>
    %107 = vector.shape_cast %106 : vector<8xf32> to vector<8x1xf32>
    %108 = vector.broadcast %107 : vector<8x1xf32> to vector<8x8xf32>
    %109 = arith.subf %105, %108 : vector<8x8xf32>
    %110 = math.exp %109 : vector<8x8xf32>
    %cst_73 = arith.constant dense<0.000000e+00> : vector<8xf32>
    %111 = vector.multi_reduction <add>, %110, %cst_73 [1] : vector<8x8xf32> to vector<8xf32>
    %112 = vector.shape_cast %111 : vector<8xf32> to vector<8x1xf32>
    %113 = tpu.reciprocal %112 {approx = true} : vector<8x1xf32> -> vector<8x1xf32>
    %114 = vector.broadcast %113 : vector<8x1xf32> to vector<8x8xf32>
    %115 = arith.mulf %110, %114 : vector<8x8xf32>
    %cst_74 = arith.constant dense<0.000000e+00> : vector<8x16xf32>
    %116 = tpu.matmul %115, %100, %cst_74 {dimension_numbers = #tpu.dot_dimension_numbers<[1], [0], [0], [1], [0, 0, 1, 1], [], []>} : vector<8x8xf32>, vector<8x16xf32>, vector<8x16xf32> -> vector<8x16xf32>
    %c1_75 = arith.constant 1 : index
    %c0_76 = arith.constant 0 : index
    %c0_77 = arith.constant 0 : index
    %117 = vector.load %arg11[%c1_75, %c0_76, %c0_77] : memref<2x16x32xf32, #tpu.memory_space<vmem>>, vector<1x16x32xf32>
    %118 = vector.shape_cast %117 : vector<1x16x32xf32> to vector<16x32xf32>
    %cst_78 = arith.constant dense<0.000000e+00> : vector<8x32xf32>
    %119 = tpu.matmul %116, %118, %cst_78 {dimension_numbers = #tpu.dot_dimension_numbers<[1], [0], [0], [1], [0, 0, 1, 1], [], []>} : vector<8x16xf32>, vector<16x32xf32>, vector<8x32xf32> -> vector<8x32xf32>
    %120 = arith.addf %79, %119 : vector<8x32xf32>
    %121 = arith.addf %34, %120 : vector<8x32xf32>
    %c0_79 = arith.constant 0 : index
    %c0_80 = arith.constant 0 : index
    %122 = vector.load %arg16[%c0_79, %c0_80] : memref<1x32xf32, #tpu.memory_space<vmem>>, vector<1x32xf32>
    %c0_81 = arith.constant 0 : index
    %c0_82 = arith.constant 0 : index
    %123 = vector.load %arg17[%c0_81, %c0_82] : memref<1x32xf32, #tpu.memory_space<vmem>>, vector<1x32xf32>
    %cst_83 = arith.constant dense<0.000000e+00> : vector<8xf32>
    %124 = vector.multi_reduction <add>, %121, %cst_83 [1] : vector<8x32xf32> to vector<8xf32>
    %125 = vector.shape_cast %124 : vector<8xf32> to vector<8x1xf32>
    %cst_84 = arith.constant 3.200000e+01 : f32
    %126 = vector.broadcast %cst_84 : f32 to vector<8x1xf32>
    %127 = arith.divf %125, %126 : vector<8x1xf32>
    %128 = vector.broadcast %127 : vector<8x1xf32> to vector<8x32xf32>
    %129 = arith.subf %121, %128 : vector<8x32xf32>
    %130 = arith.mulf %129, %129 : vector<8x32xf32>
    %cst_85 = arith.constant dense<0.000000e+00> : vector<8xf32>
    %131 = vector.multi_reduction <add>, %130, %cst_85 [1] : vector<8x32xf32> to vector<8xf32>
    %132 = vector.shape_cast %131 : vector<8xf32> to vector<8x1xf32>
    %cst_86 = arith.constant 3.200000e+01 : f32
    %133 = vector.broadcast %cst_86 : f32 to vector<8x1xf32>
    %134 = arith.divf %132, %133 : vector<8x1xf32>
    %135 = vector.broadcast %127 : vector<8x1xf32> to vector<8x32xf32>
    %136 = arith.subf %121, %135 : vector<8x32xf32>
    %cst_87 = arith.constant 9.99999996E-13 : f32
    %137 = vector.broadcast %cst_87 : f32 to vector<8x1xf32>
    %138 = arith.addf %134, %137 : vector<8x1xf32>
    %139 = math.rsqrt %138 : vector<8x1xf32>
    %140 = vector.broadcast %139 : vector<8x1xf32> to vector<8x32xf32>
    %141 = arith.mulf %136, %140 : vector<8x32xf32>
    %142 = vector.broadcast %122 : vector<1x32xf32> to vector<8x32xf32>
    %143 = arith.mulf %141, %142 : vector<8x32xf32>
    %144 = vector.broadcast %123 : vector<1x32xf32> to vector<8x32xf32>
    %145 = arith.addf %143, %144 : vector<8x32xf32>
    %c0_88 = arith.constant 0 : index
    %c0_89 = arith.constant 0 : index
    %146 = vector.load %arg18[%c0_88, %c0_89] : memref<32x64xf32, #tpu.memory_space<vmem>>, vector<32x64xf32>
    %cst_90 = arith.constant dense<0.000000e+00> : vector<8x64xf32>
    %147 = tpu.matmul %145, %146, %cst_90 {dimension_numbers = #tpu.dot_dimension_numbers<[1], [0], [0], [1], [0, 0, 1, 1], [], []>} : vector<8x32xf32>, vector<32x64xf32>, vector<8x64xf32> -> vector<8x64xf32>
    %c0_91 = arith.constant 0 : index
    %c0_92 = arith.constant 0 : index
    %148 = vector.load %arg19[%c0_91, %c0_92] : memref<1x64xf32, #tpu.memory_space<vmem>>, vector<1x64xf32>
    %149 = vector.broadcast %148 : vector<1x64xf32> to vector<8x64xf32>
    %150 = arith.addf %147, %149 : vector<8x64xf32>
    %cst_93 = arith.constant 5.000000e-01 : f32
    %151 = vector.broadcast %cst_93 : f32 to vector<8x64xf32>
    %152 = arith.mulf %151, %150 : vector<8x64xf32>
    %cst_94 = arith.constant 4.471500e-02 : f32
    %153 = vector.broadcast %cst_94 : f32 to vector<8x64xf32>
    %154 = arith.mulf %153, %150 : vector<8x64xf32>
    %155 = arith.mulf %154, %150 : vector<8x64xf32>
    %156 = arith.mulf %155, %150 : vector<8x64xf32>
    %157 = arith.addf %150, %156 : vector<8x64xf32>
    %cst_95 = arith.constant 0.797884583 : f32
    %158 = vector.broadcast %cst_95 : f32 to vector<8x64xf32>
    %159 = arith.mulf %158, %157 : vector<8x64xf32>
    %160 = math.tanh %159 : vector<8x64xf32>
    %cst_96 = arith.constant 1.000000e+00 : f32
    %161 = vector.broadcast %cst_96 : f32 to vector<8x64xf32>
    %162 = arith.addf %161, %160 : vector<8x64xf32>
    %163 = arith.mulf %152, %162 : vector<8x64xf32>
    %c0_97 = arith.constant 0 : index
    %c0_98 = arith.constant 0 : index
    %164 = vector.load %arg20[%c0_97, %c0_98] : memref<64x32xf32, #tpu.memory_space<vmem>>, vector<64x32xf32>
    %cst_99 = arith.constant dense<0.000000e+00> : vector<8x32xf32>
    %165 = tpu.matmul %163, %164, %cst_99 {dimension_numbers = #tpu.dot_dimension_numbers<[1], [0], [0], [1], [0, 0, 1, 1], [], []>} : vector<8x64xf32>, vector<64x32xf32>, vector<8x32xf32> -> vector<8x32xf32>
    %c0_100 = arith.constant 0 : index
    %c0_101 = arith.constant 0 : index
    %166 = vector.load %arg21[%c0_100, %c0_101] : memref<1x32xf32, #tpu.memory_space<vmem>>, vector<1x32xf32>
    %167 = vector.broadcast %166 : vector<1x32xf32> to vector<8x32xf32>
    %168 = arith.addf %165, %167 : vector<8x32xf32>
    %169 = arith.addf %145, %168 : vector<8x32xf32>
    %c0_102 = arith.constant 0 : index
    %c0_103 = arith.constant 0 : index
    %170 = vector.load %arg22[%c0_102, %c0_103] : memref<1x32xf32, #tpu.memory_space<vmem>>, vector<1x32xf32>
    %c0_104 = arith.constant 0 : index
    %c0_105 = arith.constant 0 : index
    %171 = vector.load %arg23[%c0_104, %c0_105] : memref<1x32xf32, #tpu.memory_space<vmem>>, vector<1x32xf32>
    %cst_106 = arith.constant dense<0.000000e+00> : vector<8xf32>
    %172 = vector.multi_reduction <add>, %169, %cst_106 [1] : vector<8x32xf32> to vector<8xf32>
    %173 = vector.shape_cast %172 : vector<8xf32> to vector<8x1xf32>
    %cst_107 = arith.constant 3.200000e+01 : f32
    %174 = vector.broadcast %cst_107 : f32 to vector<8x1xf32>
    %175 = arith.divf %173, %174 : vector<8x1xf32>
    %176 = vector.broadcast %175 : vector<8x1xf32> to vector<8x32xf32>
    %177 = arith.subf %169, %176 : vector<8x32xf32>
    %178 = arith.mulf %177, %177 : vector<8x32xf32>
    %cst_108 = arith.constant dense<0.000000e+00> : vector<8xf32>
    %179 = vector.multi_reduction <add>, %178, %cst_108 [1] : vector<8x32xf32> to vector<8xf32>
    %180 = vector.shape_cast %179 : vector<8xf32> to vector<8x1xf32>
    %cst_109 = arith.constant 3.200000e+01 : f32
    %181 = vector.broadcast %cst_109 : f32 to vector<8x1xf32>
    %182 = arith.divf %180, %181 : vector<8x1xf32>
    %183 = vector.broadcast %175 : vector<8x1xf32> to vector<8x32xf32>
    %184 = arith.subf %169, %183 : vector<8x32xf32>
    %cst_110 = arith.constant 9.99999996E-13 : f32
    %185 = vector.broadcast %cst_110 : f32 to vector<8x1xf32>
    %186 = arith.addf %182, %185 : vector<8x1xf32>
    %187 = math.rsqrt %186 : vector<8x1xf32>
    %188 = vector.broadcast %187 : vector<8x1xf32> to vector<8x32xf32>
    %189 = arith.mulf %184, %188 : vector<8x32xf32>
    %190 = vector.broadcast %170 : vector<1x32xf32> to vector<8x32xf32>
    %191 = arith.mulf %189, %190 : vector<8x32xf32>
    %192 = vector.broadcast %171 : vector<1x32xf32> to vector<8x32xf32>
    %193 = arith.addf %191, %192 : vector<8x32xf32>
    %c0_111 = arith.constant 0 : index
    %c0_112 = arith.constant 0 : index
    %194 = vector.load %arg24[%c0_111, %c0_112] : memref<32x32xf32, #tpu.memory_space<vmem>>, vector<32x32xf32>
    %cst_113 = arith.constant dense<0.000000e+00> : vector<8x32xf32>
    %195 = tpu.matmul %193, %194, %cst_113 {dimension_numbers = #tpu.dot_dimension_numbers<[1], [0], [0], [1], [0, 0, 1, 1], [], []>} : vector<8x32xf32>, vector<32x32xf32>, vector<8x32xf32> -> vector<8x32xf32>
    %c0_114 = arith.constant 0 : index
    %c0_115 = arith.constant 0 : index
    %196 = vector.load %arg25[%c0_114, %c0_115] : memref<1x32xf32, #tpu.memory_space<vmem>>, vector<1x32xf32>
    %197 = vector.broadcast %196 : vector<1x32xf32> to vector<8x32xf32>
    %198 = arith.addf %195, %197 : vector<8x32xf32>
    %cst_116 = arith.constant 5.000000e-01 : f32
    %199 = vector.broadcast %cst_116 : f32 to vector<8x32xf32>
    %200 = arith.mulf %199, %198 : vector<8x32xf32>
    %cst_117 = arith.constant 4.471500e-02 : f32
    %201 = vector.broadcast %cst_117 : f32 to vector<8x32xf32>
    %202 = arith.mulf %201, %198 : vector<8x32xf32>
    %203 = arith.mulf %202, %198 : vector<8x32xf32>
    %204 = arith.mulf %203, %198 : vector<8x32xf32>
    %205 = arith.addf %198, %204 : vector<8x32xf32>
    %cst_118 = arith.constant 0.797884583 : f32
    %206 = vector.broadcast %cst_118 : f32 to vector<8x32xf32>
    %207 = arith.mulf %206, %205 : vector<8x32xf32>
    %208 = math.tanh %207 : vector<8x32xf32>
    %cst_119 = arith.constant 1.000000e+00 : f32
    %209 = vector.broadcast %cst_119 : f32 to vector<8x32xf32>
    %210 = arith.addf %209, %208 : vector<8x32xf32>
    %211 = arith.mulf %200, %210 : vector<8x32xf32>
    %c0_120 = arith.constant 0 : index
    %c0_121 = arith.constant 0 : index
    %212 = vector.load %arg26[%c0_120, %c0_121] : memref<1x32xf32, #tpu.memory_space<vmem>>, vector<1x32xf32>
    %c0_122 = arith.constant 0 : index
    %c0_123 = arith.constant 0 : index
    %213 = vector.load %arg27[%c0_122, %c0_123] : memref<1x32xf32, #tpu.memory_space<vmem>>, vector<1x32xf32>
    %cst_124 = arith.constant dense<0.000000e+00> : vector<8xf32>
    %214 = vector.multi_reduction <add>, %211, %cst_124 [1] : vector<8x32xf32> to vector<8xf32>
    %215 = vector.shape_cast %214 : vector<8xf32> to vector<8x1xf32>
    %cst_125 = arith.constant 3.200000e+01 : f32
    %216 = vector.broadcast %cst_125 : f32 to vector<8x1xf32>
    %217 = arith.divf %215, %216 : vector<8x1xf32>
    %218 = vector.broadcast %217 : vector<8x1xf32> to vector<8x32xf32>
    %219 = arith.subf %211, %218 : vector<8x32xf32>
    %220 = arith.mulf %219, %219 : vector<8x32xf32>
    %cst_126 = arith.constant dense<0.000000e+00> : vector<8xf32>
    %221 = vector.multi_reduction <add>, %220, %cst_126 [1] : vector<8x32xf32> to vector<8xf32>
    %222 = vector.shape_cast %221 : vector<8xf32> to vector<8x1xf32>
    %cst_127 = arith.constant 3.200000e+01 : f32
    %223 = vector.broadcast %cst_127 : f32 to vector<8x1xf32>
    %224 = arith.divf %222, %223 : vector<8x1xf32>
    %225 = vector.broadcast %217 : vector<8x1xf32> to vector<8x32xf32>
    %226 = arith.subf %211, %225 : vector<8x32xf32>
    %cst_128 = arith.constant 9.99999996E-13 : f32
    %227 = vector.broadcast %cst_128 : f32 to vector<8x1xf32>
    %228 = arith.addf %224, %227 : vector<8x1xf32>
    %229 = math.rsqrt %228 : vector<8x1xf32>
    %230 = vector.broadcast %229 : vector<8x1xf32> to vector<8x32xf32>
    %231 = arith.mulf %226, %230 : vector<8x32xf32>
    %232 = vector.broadcast %212 : vector<1x32xf32> to vector<8x32xf32>
    %233 = arith.mulf %231, %232 : vector<8x32xf32>
    %234 = vector.broadcast %213 : vector<1x32xf32> to vector<8x32xf32>
    %235 = arith.addf %233, %234 : vector<8x32xf32>
    %c0_129 = arith.constant 0 : index
    %c0_130 = arith.constant 0 : index
    %236 = vector.load %arg28[%c0_129, %c0_130] : memref<32x128xf32, #tpu.memory_space<vmem>>, vector<32x128xf32>
    %cst_131 = arith.constant dense<0.000000e+00> : vector<8x128xf32>
    %237 = tpu.matmul %235, %236, %cst_131 {dimension_numbers = #tpu.dot_dimension_numbers<[1], [0], [0], [1], [0, 0, 1, 1], [], []>} : vector<8x32xf32>, vector<32x128xf32>, vector<8x128xf32> -> vector<8x128xf32>
    %c0_132 = arith.constant 0 : index
    %c0_133 = arith.constant 0 : index
    %238 = vector.load %arg29[%c0_132, %c0_133] : memref<1x128xf32, #tpu.memory_space<vmem>>, vector<1x128xf32>
    %239 = vector.broadcast %238 : vector<1x128xf32> to vector<8x128xf32>
    %240 = arith.addf %237, %239 : vector<8x128xf32>
    %c0_134 = arith.constant 0 : index
    %c0_135 = arith.constant 0 : index
    %c0_136 = arith.constant 0 : index
    %241 = vector.load %arg30[%c0_134, %c0_135, %c0_136] : memref<1x8x128xf32, #tpu.memory_space<vmem>>, vector<1x8x128xf32>
    %242 = vector.shape_cast %241 : vector<1x8x128xf32> to vector<8x128xf32>
    %243 = vector.shape_cast %240 : vector<8x128xf32> to vector<1x8x128xf32>
    tpu.vector_store %arg30[%c0_134, %c0_135, %c0_136], %243 {strides = array<i32>} : memref<1x8x128xf32, #tpu.memory_space<vmem>>, vector<1x8x128xf32>,
    %c0_137 = arith.constant 0 : index
    %c0_138 = arith.constant 0 : index
    %c0_139 = arith.constant 0 : index
    %244 = vector.load %arg2[%c0_137, %c0_138, %c0_139] : memref<1x8x1xi32, #tpu.memory_space<vmem>>, vector<1x8x1xi32>
    %245 = vector.shape_cast %244 : vector<1x8x1xi32> to vector<8x1xi32>
    %cst_140 = arith.constant dense<0xFF800000> : vector<8xf32>
    %246 = vector.multi_reduction <maximumf>, %240, %cst_140 [1] : vector<8x128xf32> to vector<8xf32>
    %247 = vector.shape_cast %246 : vector<8xf32> to vector<8x1xf32>
    %248 = vector.broadcast %247 : vector<8x1xf32> to vector<8x128xf32>
    %249 = arith.subf %240, %248 : vector<8x128xf32>
    %250 = math.exp %249 : vector<8x128xf32>
    %cst_141 = arith.constant dense<0.000000e+00> : vector<8xf32>
    %251 = vector.multi_reduction <add>, %250, %cst_141 [1] : vector<8x128xf32> to vector<8xf32>
    %252 = vector.shape_cast %251 : vector<8xf32> to vector<8x1xf32>
    %253 = math.log %252 : vector<8x1xf32>
    %254 = arith.addf %253, %247 : vector<8x1xf32>
    %255 = tpu.iota {dimensions = array<i32: 1>} : vector<8x128xi32>
    %256 = vector.broadcast %245 : vector<8x1xi32> to vector<8x128xi32>
    %257 = arith.cmpi eq, %255, %256 : vector<8x128xi32>
    %258 = arith.extui %257 : vector<8x128xi1> to vector<8x128xi32>
    %259 = arith.sitofp %258 : vector<8x128xi32> to vector<8x128xf32>
    %260 = arith.mulf %240, %259 : vector<8x128xf32>
    %cst_142 = arith.constant dense<0.000000e+00> : vector<8xf32>
    %261 = vector.multi_reduction <add>, %260, %cst_142 [1] : vector<8x128xf32> to vector<8xf32>
    %262 = vector.shape_cast %261 : vector<8xf32> to vector<8x1xf32>
    %c-100_i32 = arith.constant -100 : i32
    %263 = vector.broadcast %c-100_i32 : i32 to vector<8x1xi32>
    %264 = arith.cmpi ne, %245, %263 : vector<8x1xi32>
    %265 = arith.extui %264 : vector<8x1xi1> to vector<8x1xi32>
    %266 = arith.sitofp %265 : vector<8x1xi32> to vector<8x1xf32>
    %267 = arith.subf %254, %262 : vector<8x1xf32>
    %268 = arith.mulf %267, %266 : vector<8x1xf32>
    %cst_143 = arith.constant dense<0.000000e+00> : vector<1xf32>
    %269 = vector.multi_reduction <add>, %268, %cst_143 [0] : vector<8x1xf32> to vector<1xf32>
    %270 = vector.shape_cast %269 : vector<1xf32> to vector<1x1xf32>
    %cst_144 = arith.constant dense<0.000000e+00> : vector<1xf32>
    %271 = vector.multi_reduction <add>, %266, %cst_144 [0] : vector<8x1xf32> to vector<1xf32>
    %272 = vector.shape_cast %271 : vector<1xf32> to vector<1x1xf32>
    %273 = tpu.iota {dimensions = array<i32: 1>} : vector<1x128xi32>
    %c0_i32 = arith.constant 0 : i32
    %274 = vector.broadcast %c0_i32 : i32 to vector<1x128xi32>
    %275 = arith.cmpi eq, %273, %274 : vector<1x128xi32>
    %c1_i32 = arith.constant 1 : i32
    %276 = vector.broadcast %c1_i32 : i32 to vector<1x128xi32>
    %277 = arith.cmpi eq, %273, %276 : vector<1x128xi32>
    %cst_145 = arith.constant 0.000000e+00 : f32
    %278 = vector.broadcast %cst_145 : f32 to vector<1x1xf32>
    %279 = vector.shape_cast %272 : vector<1x1xf32> to vector<1x1xf32>
    %280 = vector.broadcast %279 : vector<1x1xf32> to vector<1x128xf32>
    %281 = vector.shape_cast %278 : vector<1x1xf32> to vector<1x1xf32>
    %282 = vector.broadcast %281 : vector<1x1xf32> to vector<1x128xf32>
    %283 = arith.select %277, %280, %282 : vector<1x128xi1>, vector<1x128xf32>
    %284 = vector.shape_cast %270 : vector<1x1xf32> to vector<1x1xf32>
    %285 = vector.broadcast %284 : vector<1x1xf32> to vector<1x128xf32>
    %286 = arith.select %275, %285, %283 : vector<1x128xi1>, vector<1x128xf32>
    %c0_146 = arith.constant 0 : index
    %c0_147 = arith.constant 0 : index
    %c0_148 = arith.constant 0 : index
    %287 = vector.load %arg31[%c0_146, %c0_147, %c0_148] : memref<1x1x128xf32, #tpu.memory_space<vmem>>, vector<1x1x128xf32>
    %288 = vector.shape_cast %287 : vector<1x1x128xf32> to vector<1x128xf32>
    %289 = vector.shape_cast %286 : vector<1x128xf32> to vector<1x1x128xf32>
    tpu.vector_store %arg31[%c0_146, %c0_147, %c0_148], %289 {strides = array<i32>} : memref<1x1x128xf32, #tpu.memory_space<vmem>>, vector<1x1x128xf32>,
    return
  }
  func.func @transform_0(%arg0: i32) -> (i32, i32, i32) {
    %c0_i32 = arith.constant 0 : i32
    %c0_i32_0 = arith.constant 0 : i32
    %c0_i32_1 = arith.constant 0 : i32
    return %arg0, %c0_i32, %c0_i32_0 : i32, i32, i32
  }
  func.func @transform_1(%arg0: i32) -> (i32, i32, i32) {
    %c0_i32 = arith.constant 0 : i32
    %c0_i32_0 = arith.constant 0 : i32
    %c0_i32_1 = arith.constant 0 : i32
    return %arg0, %c0_i32, %c0_i32_0 : i32, i32, i32
  }
  func.func @transform_2(%arg0: i32) -> (i32, i32, i32) {
    %c0_i32 = arith.constant 0 : i32
    %c0_i32_0 = arith.constant 0 : i32
    %c0_i32_1 = arith.constant 0 : i32
    return %arg0, %c0_i32, %c0_i32_0 : i32, i32, i32
  }
  func.func @transform_3(%arg0: i32) -> (i32, i32) {
    %c0_i32 = arith.constant 0 : i32
    %c0_i32_0 = arith.constant 0 : i32
    %c0_i32_1 = arith.constant 0 : i32
    return %c0_i32, %c0_i32_0 : i32, i32
  }
  func.func @transform_4(%arg0: i32) -> (i32, i32) {
    %c0_i32 = arith.constant 0 : i32
    %c0_i32_0 = arith.constant 0 : i32
    %c0_i32_1 = arith.constant 0 : i32
    return %c0_i32, %c0_i32_0 : i32, i32
  }
  func.func @transform_5(%arg0: i32) -> (i32, i32) {
    %c0_i32 = arith.constant 0 : i32
    %c0_i32_0 = arith.constant 0 : i32
    %c0_i32_1 = arith.constant 0 : i32
    return %c0_i32, %c0_i32_0 : i32, i32
  }
  func.func @transform_6(%arg0: i32) -> (i32, i32) {
    %c0_i32 = arith.constant 0 : i32
    %c0_i32_0 = arith.constant 0 : i32
    %c0_i32_1 = arith.constant 0 : i32
    return %c0_i32, %c0_i32_0 : i32, i32
  }
  func.func @transform_7(%arg0: i32) -> (i32, i32, i32) {
    %c0_i32 = arith.constant 0 : i32
    %c0_i32_0 = arith.constant 0 : i32
    %c0_i32_1 = arith.constant 0 : i32
    %c0_i32_2 = arith.constant 0 : i32
    return %c0_i32, %c0_i32_0, %c0_i32_1 : i32, i32, i32
  }
  func.func @transform_8(%arg0: i32) -> (i32, i32, i32) {
    %c0_i32 = arith.constant 0 : i32
    %c0_i32_0 = arith.constant 0 : i32
    %c0_i32_1 = arith.constant 0 : i32
    %c0_i32_2 = arith.constant 0 : i32
    return %c0_i32, %c0_i32_0, %c0_i32_1 : i32, i32, i32
  }
  func.func @transform_9(%arg0: i32) -> (i32, i32, i32) {
    %c0_i32 = arith.constant 0 : i32
    %c0_i32_0 = arith.constant 0 : i32
    %c0_i32_1 = arith.constant 0 : i32
    %c0_i32_2 = arith.constant 0 : i32
    return %c0_i32, %c0_i32_0, %c0_i32_1 : i32, i32, i32
  }
  func.func @transform_10(%arg0: i32) -> (i32, i32, i32) {
    %c0_i32 = arith.constant 0 : i32
    %c0_i32_0 = arith.constant 0 : i32
    %c0_i32_1 = arith.constant 0 : i32
    %c0_i32_2 = arith.constant 0 : i32
    return %c0_i32, %c0_i32_0, %c0_i32_1 : i32, i32, i32
  }
  func.func @transform_11(%arg0: i32) -> (i32, i32, i32) {
    %c0_i32 = arith.constant 0 : i32
    %c0_i32_0 = arith.constant 0 : i32
    %c0_i32_1 = arith.constant 0 : i32
    %c0_i32_2 = arith.constant 0 : i32
    return %c0_i32, %c0_i32_0, %c0_i32_1 : i32, i32, i32
  }
  func.func @transform_12(%arg0: i32) -> (i32, i32, i32) {
    %c0_i32 = arith.constant 0 : i32
    %c0_i32_0 = arith.constant 0 : i32
    %c0_i32_1 = arith.constant 0 : i32
    %c0_i32_2 = arith.constant 0 : i32
    return %c0_i32, %c0_i32_0, %c0_i32_1 : i32, i32, i32
  }
  func.func @transform_13(%arg0: i32) -> (i32, i32, i32) {
    %c0_i32 = arith.constant 0 : i32
    %c0_i32_0 = arith.constant 0 : i32
    %c0_i32_1 = arith.constant 0 : i32
    %c0_i32_2 = arith.constant 0 : i32
    return %c0_i32, %c0_i32_0, %c0_i32_1 : i32, i32, i32
  }
  func.func @transform_14(%arg0: i32) -> (i32, i32) {
    %c0_i32 = arith.constant 0 : i32
    %c0_i32_0 = arith.constant 0 : i32
    %c0_i32_1 = arith.constant 0 : i32
    return %c0_i32, %c0_i32_0 : i32, i32
  }
  func.func @transform_15(%arg0: i32) -> (i32, i32) {
    %c0_i32 = arith.constant 0 : i32
    %c0_i32_0 = arith.constant 0 : i32
    %c0_i32_1 = arith.constant 0 : i32
    return %c0_i32, %c0_i32_0 : i32, i32
  }
  func.func @transform_16(%arg0: i32) -> (i32, i32) {
    %c0_i32 = arith.constant 0 : i32
    %c0_i32_0 = arith.constant 0 : i32
    %c0_i32_1 = arith.constant 0 : i32
    return %c0_i32, %c0_i32_0 : i32, i32
  }
  func.func @transform_17(%arg0: i32) -> (i32, i32) {
    %c0_i32 = arith.constant 0 : i32
    %c0_i32_0 = arith.constant 0 : i32
    %c0_i32_1 = arith.constant 0 : i32
    return %c0_i32, %c0_i32_0 : i32, i32
  }
  func.func @transform_18(%arg0: i32) -> (i32, i32) {
    %c0_i32 = arith.constant 0 : i32
    %c0_i32_0 = arith.constant 0 : i32
    %c0_i32_1 = arith.constant 0 : i32
    return %c0_i32, %c0_i32_0 : i32, i32
  }
  func.func @transform_19(%arg0: i32) -> (i32, i32) {
    %c0_i32 = arith.constant 0 : i32
    %c0_i32_0 = arith.constant 0 : i32
    %c0_i32_1 = arith.constant 0 : i32
    return %c0_i32, %c0_i32_0 : i32, i32
  }
  func.func @transform_20(%arg0: i32) -> (i32, i32) {
    %c0_i32 = arith.constant 0 : i32
    %c0_i32_0 = arith.constant 0 : i32
    %c0_i32_1 = arith.constant 0 : i32
    return %c0_i32, %c0_i32_0 : i32, i32
  }
  func.func @transform_21(%arg0: i32) -> (i32, i32) {
    %c0_i32 = arith.constant 0 : i32
    %c0_i32_0 = arith.constant 0 : i32
    %c0_i32_1 = arith.constant 0 : i32
    return %c0_i32, %c0_i32_0 : i32, i32
  }
  func.func @transform_22(%arg0: i32) -> (i32, i32) {
    %c0_i32 = arith.constant 0 : i32
    %c0_i32_0 = arith.constant 0 : i32
    %c0_i32_1 = arith.constant 0 : i32
    return %c0_i32, %c0_i32_0 : i32, i32
  }
  func.func @transform_23(%arg0: i32) -> (i32, i32) {
    %c0_i32 = arith.constant 0 : i32
    %c0_i32_0 = arith.constant 0 : i32
    %c0_i32_1 = arith.constant 0 : i32
    return %c0_i32, %c0_i32_0 : i32, i32
  }
  func.func @transform_24(%arg0: i32) -> (i32, i32) {
    %c0_i32 = arith.constant 0 : i32
    %c0_i32_0 = arith.constant 0 : i32
    %c0_i32_1 = arith.constant 0 : i32
    return %c0_i32, %c0_i32_0 : i32, i32
  }
  func.func @transform_25(%arg0: i32) -> (i32, i32) {
    %c0_i32 = arith.constant 0 : i32
    %c0_i32_0 = arith.constant 0 : i32
    %c0_i32_1 = arith.constant 0 : i32
    return %c0_i32, %c0_i32_0 : i32, i32
  }
  func.func @transform_26(%arg0: i32) -> (i32, i32) {
    %c0_i32 = arith.constant 0 : i32
    %c0_i32_0 = arith.constant 0 : i32
    %c0_i32_1 = arith.constant 0 : i32
    return %c0_i32, %c0_i32_0 : i32, i32
  }
  func.func @transform_27(%arg0: i32) -> (i32, i32) {
    %c0_i32 = arith.constant 0 : i32
    %c0_i32_0 = arith.constant 0 : i32
    %c0_i32_1 = arith.constant 0 : i32
    return %c0_i32, %c0_i32_0 : i32, i32
  }
  func.func @transform_28(%arg0: i32) -> (i32, i32) {
    %c0_i32 = arith.constant 0 : i32
    %c0_i32_0 = arith.constant 0 : i32
    %c0_i32_1 = arith.constant 0 : i32
    return %c0_i32, %c0_i32_0 : i32, i32
  }
  func.func @transform_29(%arg0: i32) -> (i32, i32, i32) {
    %c0_i32 = arith.constant 0 : i32
    %c0_i32_0 = arith.constant 0 : i32
    %c0_i32_1 = arith.constant 0 : i32
    return %arg0, %c0_i32, %c0_i32_0 : i32, i32, i32
  }
  func.func @transform_30(%arg0: i32) -> (i32, i32, i32) {
    %c0_i32 = arith.constant 0 : i32
    %c0_i32_0 = arith.constant 0 : i32
    %c0_i32_1 = arith.constant 0 : i32
    return %arg0, %c0_i32, %c0_i32_0 : i32, i32, i32
  }
}

module attributes {stable_mosaic.version = 11 : i64} {
  func.func @discriminator_kernel(%arg0: i32, %arg1: memref<1x8x1xi32, #tpu.memory_space<vmem>>, %arg2: memref<1x8x1xi32, #tpu.memory_space<vmem>>, %arg3: memref<1x8x1xf32, #tpu.memory_space<vmem>>, %arg4: memref<1x1x8xf32, #tpu.memory_space<vmem>>, %arg5: memref<128x32xf32, #tpu.memory_space<vmem>>, %arg6: memref<8x32xf32, #tpu.memory_space<vmem>>, %arg7: memref<1x32xf32, #tpu.memory_space<vmem>>, %arg8: memref<1x32xf32, #tpu.memory_space<vmem>>, %arg9: memref<2x32x16xf32, #tpu.memory_space<vmem>>, %arg10: memref<2x32x16xf32, #tpu.memory_space<vmem>>, %arg11: memref<2x32x16xf32, #tpu.memory_space<vmem>>, %arg12: memref<2x16x32xf32, #tpu.memory_space<vmem>>, %arg13: memref<2x1x16xf32, #tpu.memory_space<vmem>>, %arg14: memref<2x1x16xf32, #tpu.memory_space<vmem>>, %arg15: memref<2x1x16xf32, #tpu.memory_space<vmem>>, %arg16: memref<1x32xf32, #tpu.memory_space<vmem>>, %arg17: memref<1x32xf32, #tpu.memory_space<vmem>>, %arg18: memref<1x32xf32, #tpu.memory_space<vmem>>, %arg19: memref<32x64xf32, #tpu.memory_space<vmem>>, %arg20: memref<1x64xf32, #tpu.memory_space<vmem>>, %arg21: memref<64x32xf32, #tpu.memory_space<vmem>>, %arg22: memref<1x32xf32, #tpu.memory_space<vmem>>, %arg23: memref<1x32xf32, #tpu.memory_space<vmem>>, %arg24: memref<1x32xf32, #tpu.memory_space<vmem>>, %arg25: memref<32x32xf32, #tpu.memory_space<vmem>>, %arg26: memref<1x32xf32, #tpu.memory_space<vmem>>, %arg27: memref<1x32xf32, #tpu.memory_space<vmem>>, %arg28: memref<1x1xf32, #tpu.memory_space<vmem>>, %arg29: memref<1x1x128xf32, #tpu.memory_space<vmem>>, %arg30: memref<1x1x128xf32, #tpu.memory_space<vmem>>) attributes {dimension_semantics = [#tpu.dimension_semantics<parallel>], iteration_bounds = array<i64: 2>, scalar_prefetch = 0 : i64, scratch_operands = 0 : i64, tpu.core_type = #tpu.core_type<tc>, window_params = [{transform_indices = @transform_0, window_bounds = array<i64: 1, 8, 1>}, {transform_indices = @transform_1, window_bounds = array<i64: 1, 8, 1>}, {transform_indices = @transform_2, window_bounds = array<i64: 1, 8, 1>}, {transform_indices = @transform_3, window_bounds = array<i64: 1, 1, 8>}, {pipeline_mode = #tpu.pipeline_mode<synchronous>, transform_indices = @transform_4, window_bounds = array<i64: 128, 32>}, {pipeline_mode = #tpu.pipeline_mode<synchronous>, transform_indices = @transform_5, window_bounds = array<i64: 8, 32>}, {pipeline_mode = #tpu.pipeline_mode<synchronous>, transform_indices = @transform_6, window_bounds = array<i64: 1, 32>}, {pipeline_mode = #tpu.pipeline_mode<synchronous>, transform_indices = @transform_7, window_bounds = array<i64: 1, 32>}, {pipeline_mode = #tpu.pipeline_mode<synchronous>, transform_indices = @transform_8, window_bounds = array<i64: 2, 32, 16>}, {pipeline_mode = #tpu.pipeline_mode<synchronous>, transform_indices = @transform_9, window_bounds = array<i64: 2, 32, 16>}, {pipeline_mode = #tpu.pipeline_mode<synchronous>, transform_indices = @transform_10, window_bounds = array<i64: 2, 32, 16>}, {pipeline_mode = #tpu.pipeline_mode<synchronous>, transform_indices = @transform_11, window_bounds = array<i64: 2, 16, 32>}, {pipeline_mode = #tpu.pipeline_mode<synchronous>, transform_indices = @transform_12, window_bounds = array<i64: 2, 1, 16>}, {pipeline_mode = #tpu.pipeline_mode<synchronous>, transform_indices = @transform_13, window_bounds = array<i64: 2, 1, 16>}, {pipeline_mode = #tpu.pipeline_mode<synchronous>, transform_indices = @transform_14, window_bounds = array<i64: 2, 1, 16>}, {pipeline_mode = #tpu.pipeline_mode<synchronous>, transform_indices = @transform_15, window_bounds = array<i64: 1, 32>}, {pipeline_mode = #tpu.pipeline_mode<synchronous>, transform_indices = @transform_16, window_bounds = array<i64: 1, 32>}, {pipeline_mode = #tpu.pipeline_mode<synchronous>, transform_indices = @transform_17, window_bounds = array<i64: 1, 32>}, {pipeline_mode = #tpu.pipeline_mode<synchronous>, transform_indices = @transform_18, window_bounds = array<i64: 32, 64>}, {pipeline_mode = #tpu.pipeline_mode<synchronous>, transform_indices = @transform_19, window_bounds = array<i64: 1, 64>}, {pipeline_mode = #tpu.pipeline_mode<synchronous>, transform_indices = @transform_20, window_bounds = array<i64: 64, 32>}, {pipeline_mode = #tpu.pipeline_mode<synchronous>, transform_indices = @transform_21, window_bounds = array<i64: 1, 32>}, {pipeline_mode = #tpu.pipeline_mode<synchronous>, transform_indices = @transform_22, window_bounds = array<i64: 1, 32>}, {pipeline_mode = #tpu.pipeline_mode<synchronous>, transform_indices = @transform_23, window_bounds = array<i64: 1, 32>}, {pipeline_mode = #tpu.pipeline_mode<synchronous>, transform_indices = @transform_24, window_bounds = array<i64: 32, 32>}, {pipeline_mode = #tpu.pipeline_mode<synchronous>, transform_indices = @transform_25, window_bounds = array<i64: 1, 32>}, {pipeline_mode = #tpu.pipeline_mode<synchronous>, transform_indices = @transform_26, window_bounds = array<i64: 1, 32>}, {pipeline_mode = #tpu.pipeline_mode<synchronous>, transform_indices = @transform_27, window_bounds = array<i64: 1, 1>}, {transform_indices = @transform_28, window_bounds = array<i64: 1, 1, 128>}, {transform_indices = @transform_29, window_bounds = array<i64: 1, 1, 128>}]} {
    %c0 = arith.constant 0 : index
    %c0_0 = arith.constant 0 : index
    %c0_1 = arith.constant 0 : index
    %0 = vector.load %arg1[%c0, %c0_0, %c0_1] : memref<1x8x1xi32, #tpu.memory_space<vmem>>, vector<1x8x1xi32>
    %1 = vector.shape_cast %0 : vector<1x8x1xi32> to vector<8x1xi32>
    %c0_2 = arith.constant 0 : index
    %c0_3 = arith.constant 0 : index
    %2 = vector.load %arg5[%c0_2, %c0_3] : memref<128x32xf32, #tpu.memory_space<vmem>>, vector<128x32xf32>
    %c0_4 = arith.constant 0 : index
    %c0_5 = arith.constant 0 : index
    %3 = vector.load %arg6[%c0_4, %c0_5] : memref<8x32xf32, #tpu.memory_space<vmem>>, vector<8x32xf32>
    %c0_6 = arith.constant 0 : index
    %c0_7 = arith.constant 0 : index
    %4 = vector.load %arg7[%c0_6, %c0_7] : memref<1x32xf32, #tpu.memory_space<vmem>>, vector<1x32xf32>
    %c0_8 = arith.constant 0 : index
    %c0_9 = arith.constant 0 : index
    %5 = vector.load %arg8[%c0_8, %c0_9] : memref<1x32xf32, #tpu.memory_space<vmem>>, vector<1x32xf32>
    %6 = tpu.iota {dimensions = array<i32: 1>} : vector<8x128xi32>
    %7 = vector.broadcast %1 : vector<8x1xi32> to vector<8x128xi32>
    %8 = arith.cmpi eq, %6, %7 : vector<8x128xi32>
    %9 = arith.extui %8 : vector<8x128xi1> to vector<8x128xi32>
    %10 = arith.sitofp %9 : vector<8x128xi32> to vector<8x128xf32>
    %cst = arith.constant dense<0.000000e+00> : vector<8x32xf32>
    %11 = tpu.matmul %10, %2, %cst {dimension_numbers = #tpu.dot_dimension_numbers<[1], [0], [0], [1], [0, 0, 1, 1], [], []>} : vector<8x128xf32>, vector<128x32xf32>, vector<8x32xf32> -> vector<8x32xf32>
    %12 = arith.addf %11, %3 : vector<8x32xf32>
    %cst_10 = arith.constant dense<0.000000e+00> : vector<8xf32>
    %13 = vector.multi_reduction <add>, %12, %cst_10 [1] : vector<8x32xf32> to vector<8xf32>
    %14 = vector.shape_cast %13 : vector<8xf32> to vector<8x1xf32>
    %cst_11 = arith.constant 3.200000e+01 : f32
    %15 = vector.broadcast %cst_11 : f32 to vector<8x1xf32>
    %16 = arith.divf %14, %15 : vector<8x1xf32>
    %17 = vector.broadcast %16 : vector<8x1xf32> to vector<8x32xf32>
    %18 = arith.subf %12, %17 : vector<8x32xf32>
    %19 = arith.mulf %18, %18 : vector<8x32xf32>
    %cst_12 = arith.constant dense<0.000000e+00> : vector<8xf32>
    %20 = vector.multi_reduction <add>, %19, %cst_12 [1] : vector<8x32xf32> to vector<8xf32>
    %21 = vector.shape_cast %20 : vector<8xf32> to vector<8x1xf32>
    %cst_13 = arith.constant 3.200000e+01 : f32
    %22 = vector.broadcast %cst_13 : f32 to vector<8x1xf32>
    %23 = arith.divf %21, %22 : vector<8x1xf32>
    %24 = vector.broadcast %16 : vector<8x1xf32> to vector<8x32xf32>
    %25 = arith.subf %12, %24 : vector<8x32xf32>
    %cst_14 = arith.constant 9.99999996E-13 : f32
    %26 = vector.broadcast %cst_14 : f32 to vector<8x1xf32>
    %27 = arith.addf %23, %26 : vector<8x1xf32>
    %28 = math.rsqrt %27 : vector<8x1xf32>
    %29 = vector.broadcast %28 : vector<8x1xf32> to vector<8x32xf32>
    %30 = arith.mulf %25, %29 : vector<8x32xf32>
    %31 = vector.broadcast %4 : vector<1x32xf32> to vector<8x32xf32>
    %32 = arith.mulf %30, %31 : vector<8x32xf32>
    %33 = vector.broadcast %5 : vector<1x32xf32> to vector<8x32xf32>
    %34 = arith.addf %32, %33 : vector<8x32xf32>
    %c0_15 = arith.constant 0 : index
    %c0_16 = arith.constant 0 : index
    %c0_17 = arith.constant 0 : index
    %35 = vector.load %arg4[%c0_15, %c0_16, %c0_17] : memref<1x1x8xf32, #tpu.memory_space<vmem>>, vector<1x1x8xf32>
    %36 = vector.shape_cast %35 : vector<1x1x8xf32> to vector<1x8xf32>
    %c0_18 = arith.constant 0 : index
    %c0_19 = arith.constant 0 : index
    %37 = vector.load %arg16[%c0_18, %c0_19] : memref<1x32xf32, #tpu.memory_space<vmem>>, vector<1x32xf32>
    %c0_20 = arith.constant 0 : index
    %c0_21 = arith.constant 0 : index
    %c0_22 = arith.constant 0 : index
    %38 = vector.load %arg9[%c0_20, %c0_21, %c0_22] : memref<2x32x16xf32, #tpu.memory_space<vmem>>, vector<1x32x16xf32>
    %39 = vector.shape_cast %38 : vector<1x32x16xf32> to vector<32x16xf32>
    %cst_23 = arith.constant dense<0.000000e+00> : vector<8x16xf32>
    %40 = tpu.matmul %34, %39, %cst_23 {dimension_numbers = #tpu.dot_dimension_numbers<[1], [0], [0], [1], [0, 0, 1, 1], [], []>} : vector<8x32xf32>, vector<32x16xf32>, vector<8x16xf32> -> vector<8x16xf32>
    %c0_24 = arith.constant 0 : index
    %c0_25 = arith.constant 0 : index
    %c0_26 = arith.constant 0 : index
    %41 = vector.load %arg13[%c0_24, %c0_25, %c0_26] : memref<2x1x16xf32, #tpu.memory_space<vmem>>, vector<1x1x16xf32>
    %42 = vector.shape_cast %41 : vector<1x1x16xf32> to vector<1x16xf32>
    %43 = vector.broadcast %42 : vector<1x16xf32> to vector<8x16xf32>
    %44 = arith.addf %40, %43 : vector<8x16xf32>
    %c0_27 = arith.constant 0 : index
    %c0_28 = arith.constant 0 : index
    %c0_29 = arith.constant 0 : index
    %45 = vector.load %arg10[%c0_27, %c0_28, %c0_29] : memref<2x32x16xf32, #tpu.memory_space<vmem>>, vector<1x32x16xf32>
    %46 = vector.shape_cast %45 : vector<1x32x16xf32> to vector<32x16xf32>
    %cst_30 = arith.constant dense<0.000000e+00> : vector<8x16xf32>
    %47 = tpu.matmul %34, %46, %cst_30 {dimension_numbers = #tpu.dot_dimension_numbers<[1], [0], [0], [1], [0, 0, 1, 1], [], []>} : vector<8x32xf32>, vector<32x16xf32>, vector<8x16xf32> -> vector<8x16xf32>
    %c0_31 = arith.constant 0 : index
    %c0_32 = arith.constant 0 : index
    %c0_33 = arith.constant 0 : index
    %48 = vector.load %arg14[%c0_31, %c0_32, %c0_33] : memref<2x1x16xf32, #tpu.memory_space<vmem>>, vector<1x1x16xf32>
    %49 = vector.shape_cast %48 : vector<1x1x16xf32> to vector<1x16xf32>
    %50 = vector.broadcast %49 : vector<1x16xf32> to vector<8x16xf32>
    %51 = arith.addf %47, %50 : vector<8x16xf32>
    %c0_34 = arith.constant 0 : index
    %c0_35 = arith.constant 0 : index
    %c0_36 = arith.constant 0 : index
    %52 = vector.load %arg11[%c0_34, %c0_35, %c0_36] : memref<2x32x16xf32, #tpu.memory_space<vmem>>, vector<1x32x16xf32>
    %53 = vector.shape_cast %52 : vector<1x32x16xf32> to vector<32x16xf32>
    %cst_37 = arith.constant dense<0.000000e+00> : vector<8x16xf32>
    %54 = tpu.matmul %34, %53, %cst_37 {dimension_numbers = #tpu.dot_dimension_numbers<[1], [0], [0], [1], [0, 0, 1, 1], [], []>} : vector<8x32xf32>, vector<32x16xf32>, vector<8x16xf32> -> vector<8x16xf32>
    %c0_38 = arith.constant 0 : index
    %c0_39 = arith.constant 0 : index
    %c0_40 = arith.constant 0 : index
    %55 = vector.load %arg15[%c0_38, %c0_39, %c0_40] : memref<2x1x16xf32, #tpu.memory_space<vmem>>, vector<1x1x16xf32>
    %56 = vector.shape_cast %55 : vector<1x1x16xf32> to vector<1x16xf32>
    %57 = vector.broadcast %56 : vector<1x16xf32> to vector<8x16xf32>
    %58 = arith.addf %54, %57 : vector<8x16xf32>
    %cst_41 = arith.constant dense<0.000000e+00> : vector<8x8xf32>
    %59 = tpu.matmul %44, %51, %cst_41 {dimension_numbers = #tpu.dot_dimension_numbers<[1], [1], [0], [0], [0, 0, 1, 0], [], []>} : vector<8x16xf32>, vector<8x16xf32>, vector<8x8xf32> -> vector<8x8xf32>
    %cst_42 = arith.constant 2.500000e-01 : f32
    %60 = vector.broadcast %cst_42 : f32 to vector<8x8xf32>
    %61 = arith.mulf %59, %60 : vector<8x8xf32>
    %62 = vector.broadcast %36 : vector<1x8xf32> to vector<8x8xf32>
    %63 = arith.addf %61, %62 : vector<8x8xf32>
    %cst_43 = arith.constant dense<0xFF800000> : vector<8xf32>
    %64 = vector.multi_reduction <maximumf>, %63, %cst_43 [1] : vector<8x8xf32> to vector<8xf32>
    %65 = vector.shape_cast %64 : vector<8xf32> to vector<8x1xf32>
    %66 = vector.broadcast %65 : vector<8x1xf32> to vector<8x8xf32>
    %67 = arith.subf %63, %66 : vector<8x8xf32>
    %68 = math.exp %67 : vector<8x8xf32>
    %cst_44 = arith.constant dense<0.000000e+00> : vector<8xf32>
    %69 = vector.multi_reduction <add>, %68, %cst_44 [1] : vector<8x8xf32> to vector<8xf32>
    %70 = vector.shape_cast %69 : vector<8xf32> to vector<8x1xf32>
    %71 = tpu.reciprocal %70 {approx = true} : vector<8x1xf32> -> vector<8x1xf32>
    %72 = vector.broadcast %71 : vector<8x1xf32> to vector<8x8xf32>
    %73 = arith.mulf %68, %72 : vector<8x8xf32>
    %cst_45 = arith.constant dense<0.000000e+00> : vector<8x16xf32>
    %74 = tpu.matmul %73, %58, %cst_45 {dimension_numbers = #tpu.dot_dimension_numbers<[1], [0], [0], [1], [0, 0, 1, 1], [], []>} : vector<8x8xf32>, vector<8x16xf32>, vector<8x16xf32> -> vector<8x16xf32>
    %c0_46 = arith.constant 0 : index
    %c0_47 = arith.constant 0 : index
    %c0_48 = arith.constant 0 : index
    %75 = vector.load %arg12[%c0_46, %c0_47, %c0_48] : memref<2x16x32xf32, #tpu.memory_space<vmem>>, vector<1x16x32xf32>
    %76 = vector.shape_cast %75 : vector<1x16x32xf32> to vector<16x32xf32>
    %cst_49 = arith.constant dense<0.000000e+00> : vector<8x32xf32>
    %77 = tpu.matmul %74, %76, %cst_49 {dimension_numbers = #tpu.dot_dimension_numbers<[1], [0], [0], [1], [0, 0, 1, 1], [], []>} : vector<8x16xf32>, vector<16x32xf32>, vector<8x32xf32> -> vector<8x32xf32>
    %78 = vector.broadcast %37 : vector<1x32xf32> to vector<8x32xf32>
    %79 = arith.addf %78, %77 : vector<8x32xf32>
    %c1 = arith.constant 1 : index
    %c0_50 = arith.constant 0 : index
    %c0_51 = arith.constant 0 : index
    %80 = vector.load %arg9[%c1, %c0_50, %c0_51] : memref<2x32x16xf32, #tpu.memory_space<vmem>>, vector<1x32x16xf32>
    %81 = vector.shape_cast %80 : vector<1x32x16xf32> to vector<32x16xf32>
    %cst_52 = arith.constant dense<0.000000e+00> : vector<8x16xf32>
    %82 = tpu.matmul %34, %81, %cst_52 {dimension_numbers = #tpu.dot_dimension_numbers<[1], [0], [0], [1], [0, 0, 1, 1], [], []>} : vector<8x32xf32>, vector<32x16xf32>, vector<8x16xf32> -> vector<8x16xf32>
    %c1_53 = arith.constant 1 : index
    %c0_54 = arith.constant 0 : index
    %c0_55 = arith.constant 0 : index
    %83 = vector.load %arg13[%c1_53, %c0_54, %c0_55] : memref<2x1x16xf32, #tpu.memory_space<vmem>>, vector<1x1x16xf32>
    %84 = vector.shape_cast %83 : vector<1x1x16xf32> to vector<1x16xf32>
    %85 = vector.broadcast %84 : vector<1x16xf32> to vector<8x16xf32>
    %86 = arith.addf %82, %85 : vector<8x16xf32>
    %c1_56 = arith.constant 1 : index
    %c0_57 = arith.constant 0 : index
    %c0_58 = arith.constant 0 : index
    %87 = vector.load %arg10[%c1_56, %c0_57, %c0_58] : memref<2x32x16xf32, #tpu.memory_space<vmem>>, vector<1x32x16xf32>
    %88 = vector.shape_cast %87 : vector<1x32x16xf32> to vector<32x16xf32>
    %cst_59 = arith.constant dense<0.000000e+00> : vector<8x16xf32>
    %89 = tpu.matmul %34, %88, %cst_59 {dimension_numbers = #tpu.dot_dimension_numbers<[1], [0], [0], [1], [0, 0, 1, 1], [], []>} : vector<8x32xf32>, vector<32x16xf32>, vector<8x16xf32> -> vector<8x16xf32>
    %c1_60 = arith.constant 1 : index
    %c0_61 = arith.constant 0 : index
    %c0_62 = arith.constant 0 : index
    %90 = vector.load %arg14[%c1_60, %c0_61, %c0_62] : memref<2x1x16xf32, #tpu.memory_space<vmem>>, vector<1x1x16xf32>
    %91 = vector.shape_cast %90 : vector<1x1x16xf32> to vector<1x16xf32>
    %92 = vector.broadcast %91 : vector<1x16xf32> to vector<8x16xf32>
    %93 = arith.addf %89, %92 : vector<8x16xf32>
    %c1_63 = arith.constant 1 : index
    %c0_64 = arith.constant 0 : index
    %c0_65 = arith.constant 0 : index
    %94 = vector.load %arg11[%c1_63, %c0_64, %c0_65] : memref<2x32x16xf32, #tpu.memory_space<vmem>>, vector<1x32x16xf32>
    %95 = vector.shape_cast %94 : vector<1x32x16xf32> to vector<32x16xf32>
    %cst_66 = arith.constant dense<0.000000e+00> : vector<8x16xf32>
    %96 = tpu.matmul %34, %95, %cst_66 {dimension_numbers = #tpu.dot_dimension_numbers<[1], [0], [0], [1], [0, 0, 1, 1], [], []>} : vector<8x32xf32>, vector<32x16xf32>, vector<8x16xf32> -> vector<8x16xf32>
    %c1_67 = arith.constant 1 : index
    %c0_68 = arith.constant 0 : index
    %c0_69 = arith.constant 0 : index
    %97 = vector.load %arg15[%c1_67, %c0_68, %c0_69] : memref<2x1x16xf32, #tpu.memory_space<vmem>>, vector<1x1x16xf32>
    %98 = vector.shape_cast %97 : vector<1x1x16xf32> to vector<1x16xf32>
    %99 = vector.broadcast %98 : vector<1x16xf32> to vector<8x16xf32>
    %100 = arith.addf %96, %99 : vector<8x16xf32>
    %cst_70 = arith.constant dense<0.000000e+00> : vector<8x8xf32>
    %101 = tpu.matmul %86, %93, %cst_70 {dimension_numbers = #tpu.dot_dimension_numbers<[1], [1], [0], [0], [0, 0, 1, 0], [], []>} : vector<8x16xf32>, vector<8x16xf32>, vector<8x8xf32> -> vector<8x8xf32>
    %cst_71 = arith.constant 2.500000e-01 : f32
    %102 = vector.broadcast %cst_71 : f32 to vector<8x8xf32>
    %103 = arith.mulf %101, %102 : vector<8x8xf32>
    %104 = vector.broadcast %36 : vector<1x8xf32> to vector<8x8xf32>
    %105 = arith.addf %103, %104 : vector<8x8xf32>
    %cst_72 = arith.constant dense<0xFF800000> : vector<8xf32>
    %106 = vector.multi_reduction <maximumf>, %105, %cst_72 [1] : vector<8x8xf32> to vector<8xf32>
    %107 = vector.shape_cast %106 : vector<8xf32> to vector<8x1xf32>
    %108 = vector.broadcast %107 : vector<8x1xf32> to vector<8x8xf32>
    %109 = arith.subf %105, %108 : vector<8x8xf32>
    %110 = math.exp %109 : vector<8x8xf32>
    %cst_73 = arith.constant dense<0.000000e+00> : vector<8xf32>
    %111 = vector.multi_reduction <add>, %110, %cst_73 [1] : vector<8x8xf32> to vector<8xf32>
    %112 = vector.shape_cast %111 : vector<8xf32> to vector<8x1xf32>
    %113 = tpu.reciprocal %112 {approx = true} : vector<8x1xf32> -> vector<8x1xf32>
    %114 = vector.broadcast %113 : vector<8x1xf32> to vector<8x8xf32>
    %115 = arith.mulf %110, %114 : vector<8x8xf32>
    %cst_74 = arith.constant dense<0.000000e+00> : vector<8x16xf32>
    %116 = tpu.matmul %115, %100, %cst_74 {dimension_numbers = #tpu.dot_dimension_numbers<[1], [0], [0], [1], [0, 0, 1, 1], [], []>} : vector<8x8xf32>, vector<8x16xf32>, vector<8x16xf32> -> vector<8x16xf32>
    %c1_75 = arith.constant 1 : index
    %c0_76 = arith.constant 0 : index
    %c0_77 = arith.constant 0 : index
    %117 = vector.load %arg12[%c1_75, %c0_76, %c0_77] : memref<2x16x32xf32, #tpu.memory_space<vmem>>, vector<1x16x32xf32>
    %118 = vector.shape_cast %117 : vector<1x16x32xf32> to vector<16x32xf32>
    %cst_78 = arith.constant dense<0.000000e+00> : vector<8x32xf32>
    %119 = tpu.matmul %116, %118, %cst_78 {dimension_numbers = #tpu.dot_dimension_numbers<[1], [0], [0], [1], [0, 0, 1, 1], [], []>} : vector<8x16xf32>, vector<16x32xf32>, vector<8x32xf32> -> vector<8x32xf32>
    %120 = arith.addf %79, %119 : vector<8x32xf32>
    %121 = arith.addf %34, %120 : vector<8x32xf32>
    %c0_79 = arith.constant 0 : index
    %c0_80 = arith.constant 0 : index
    %122 = vector.load %arg17[%c0_79, %c0_80] : memref<1x32xf32, #tpu.memory_space<vmem>>, vector<1x32xf32>
    %c0_81 = arith.constant 0 : index
    %c0_82 = arith.constant 0 : index
    %123 = vector.load %arg18[%c0_81, %c0_82] : memref<1x32xf32, #tpu.memory_space<vmem>>, vector<1x32xf32>
    %cst_83 = arith.constant dense<0.000000e+00> : vector<8xf32>
    %124 = vector.multi_reduction <add>, %121, %cst_83 [1] : vector<8x32xf32> to vector<8xf32>
    %125 = vector.shape_cast %124 : vector<8xf32> to vector<8x1xf32>
    %cst_84 = arith.constant 3.200000e+01 : f32
    %126 = vector.broadcast %cst_84 : f32 to vector<8x1xf32>
    %127 = arith.divf %125, %126 : vector<8x1xf32>
    %128 = vector.broadcast %127 : vector<8x1xf32> to vector<8x32xf32>
    %129 = arith.subf %121, %128 : vector<8x32xf32>
    %130 = arith.mulf %129, %129 : vector<8x32xf32>
    %cst_85 = arith.constant dense<0.000000e+00> : vector<8xf32>
    %131 = vector.multi_reduction <add>, %130, %cst_85 [1] : vector<8x32xf32> to vector<8xf32>
    %132 = vector.shape_cast %131 : vector<8xf32> to vector<8x1xf32>
    %cst_86 = arith.constant 3.200000e+01 : f32
    %133 = vector.broadcast %cst_86 : f32 to vector<8x1xf32>
    %134 = arith.divf %132, %133 : vector<8x1xf32>
    %135 = vector.broadcast %127 : vector<8x1xf32> to vector<8x32xf32>
    %136 = arith.subf %121, %135 : vector<8x32xf32>
    %cst_87 = arith.constant 9.99999996E-13 : f32
    %137 = vector.broadcast %cst_87 : f32 to vector<8x1xf32>
    %138 = arith.addf %134, %137 : vector<8x1xf32>
    %139 = math.rsqrt %138 : vector<8x1xf32>
    %140 = vector.broadcast %139 : vector<8x1xf32> to vector<8x32xf32>
    %141 = arith.mulf %136, %140 : vector<8x32xf32>
    %142 = vector.broadcast %122 : vector<1x32xf32> to vector<8x32xf32>
    %143 = arith.mulf %141, %142 : vector<8x32xf32>
    %144 = vector.broadcast %123 : vector<1x32xf32> to vector<8x32xf32>
    %145 = arith.addf %143, %144 : vector<8x32xf32>
    %c0_88 = arith.constant 0 : index
    %c0_89 = arith.constant 0 : index
    %146 = vector.load %arg19[%c0_88, %c0_89] : memref<32x64xf32, #tpu.memory_space<vmem>>, vector<32x64xf32>
    %cst_90 = arith.constant dense<0.000000e+00> : vector<8x64xf32>
    %147 = tpu.matmul %145, %146, %cst_90 {dimension_numbers = #tpu.dot_dimension_numbers<[1], [0], [0], [1], [0, 0, 1, 1], [], []>} : vector<8x32xf32>, vector<32x64xf32>, vector<8x64xf32> -> vector<8x64xf32>
    %c0_91 = arith.constant 0 : index
    %c0_92 = arith.constant 0 : index
    %148 = vector.load %arg20[%c0_91, %c0_92] : memref<1x64xf32, #tpu.memory_space<vmem>>, vector<1x64xf32>
    %149 = vector.broadcast %148 : vector<1x64xf32> to vector<8x64xf32>
    %150 = arith.addf %147, %149 : vector<8x64xf32>
    %cst_93 = arith.constant 5.000000e-01 : f32
    %151 = vector.broadcast %cst_93 : f32 to vector<8x64xf32>
    %152 = arith.mulf %151, %150 : vector<8x64xf32>
    %cst_94 = arith.constant 4.471500e-02 : f32
    %153 = vector.broadcast %cst_94 : f32 to vector<8x64xf32>
    %154 = arith.mulf %153, %150 : vector<8x64xf32>
    %155 = arith.mulf %154, %150 : vector<8x64xf32>
    %156 = arith.mulf %155, %150 : vector<8x64xf32>
    %157 = arith.addf %150, %156 : vector<8x64xf32>
    %cst_95 = arith.constant 0.797884583 : f32
    %158 = vector.broadcast %cst_95 : f32 to vector<8x64xf32>
    %159 = arith.mulf %158, %157 : vector<8x64xf32>
    %160 = math.tanh %159 : vector<8x64xf32>
    %cst_96 = arith.constant 1.000000e+00 : f32
    %161 = vector.broadcast %cst_96 : f32 to vector<8x64xf32>
    %162 = arith.addf %161, %160 : vector<8x64xf32>
    %163 = arith.mulf %152, %162 : vector<8x64xf32>
    %c0_97 = arith.constant 0 : index
    %c0_98 = arith.constant 0 : index
    %164 = vector.load %arg21[%c0_97, %c0_98] : memref<64x32xf32, #tpu.memory_space<vmem>>, vector<64x32xf32>
    %cst_99 = arith.constant dense<0.000000e+00> : vector<8x32xf32>
    %165 = tpu.matmul %163, %164, %cst_99 {dimension_numbers = #tpu.dot_dimension_numbers<[1], [0], [0], [1], [0, 0, 1, 1], [], []>} : vector<8x64xf32>, vector<64x32xf32>, vector<8x32xf32> -> vector<8x32xf32>
    %c0_100 = arith.constant 0 : index
    %c0_101 = arith.constant 0 : index
    %166 = vector.load %arg22[%c0_100, %c0_101] : memref<1x32xf32, #tpu.memory_space<vmem>>, vector<1x32xf32>
    %167 = vector.broadcast %166 : vector<1x32xf32> to vector<8x32xf32>
    %168 = arith.addf %165, %167 : vector<8x32xf32>
    %169 = arith.addf %145, %168 : vector<8x32xf32>
    %c0_102 = arith.constant 0 : index
    %c0_103 = arith.constant 0 : index
    %170 = vector.load %arg23[%c0_102, %c0_103] : memref<1x32xf32, #tpu.memory_space<vmem>>, vector<1x32xf32>
    %c0_104 = arith.constant 0 : index
    %c0_105 = arith.constant 0 : index
    %171 = vector.load %arg24[%c0_104, %c0_105] : memref<1x32xf32, #tpu.memory_space<vmem>>, vector<1x32xf32>
    %cst_106 = arith.constant dense<0.000000e+00> : vector<8xf32>
    %172 = vector.multi_reduction <add>, %169, %cst_106 [1] : vector<8x32xf32> to vector<8xf32>
    %173 = vector.shape_cast %172 : vector<8xf32> to vector<8x1xf32>
    %cst_107 = arith.constant 3.200000e+01 : f32
    %174 = vector.broadcast %cst_107 : f32 to vector<8x1xf32>
    %175 = arith.divf %173, %174 : vector<8x1xf32>
    %176 = vector.broadcast %175 : vector<8x1xf32> to vector<8x32xf32>
    %177 = arith.subf %169, %176 : vector<8x32xf32>
    %178 = arith.mulf %177, %177 : vector<8x32xf32>
    %cst_108 = arith.constant dense<0.000000e+00> : vector<8xf32>
    %179 = vector.multi_reduction <add>, %178, %cst_108 [1] : vector<8x32xf32> to vector<8xf32>
    %180 = vector.shape_cast %179 : vector<8xf32> to vector<8x1xf32>
    %cst_109 = arith.constant 3.200000e+01 : f32
    %181 = vector.broadcast %cst_109 : f32 to vector<8x1xf32>
    %182 = arith.divf %180, %181 : vector<8x1xf32>
    %183 = vector.broadcast %175 : vector<8x1xf32> to vector<8x32xf32>
    %184 = arith.subf %169, %183 : vector<8x32xf32>
    %cst_110 = arith.constant 9.99999996E-13 : f32
    %185 = vector.broadcast %cst_110 : f32 to vector<8x1xf32>
    %186 = arith.addf %182, %185 : vector<8x1xf32>
    %187 = math.rsqrt %186 : vector<8x1xf32>
    %188 = vector.broadcast %187 : vector<8x1xf32> to vector<8x32xf32>
    %189 = arith.mulf %184, %188 : vector<8x32xf32>
    %190 = vector.broadcast %170 : vector<1x32xf32> to vector<8x32xf32>
    %191 = arith.mulf %189, %190 : vector<8x32xf32>
    %192 = vector.broadcast %171 : vector<1x32xf32> to vector<8x32xf32>
    %193 = arith.addf %191, %192 : vector<8x32xf32>
    %c0_111 = arith.constant 0 : index
    %c0_112 = arith.constant 0 : index
    %194 = vector.load %arg25[%c0_111, %c0_112] : memref<32x32xf32, #tpu.memory_space<vmem>>, vector<32x32xf32>
    %cst_113 = arith.constant dense<0.000000e+00> : vector<8x32xf32>
    %195 = tpu.matmul %193, %194, %cst_113 {dimension_numbers = #tpu.dot_dimension_numbers<[1], [0], [0], [1], [0, 0, 1, 1], [], []>} : vector<8x32xf32>, vector<32x32xf32>, vector<8x32xf32> -> vector<8x32xf32>
    %c0_114 = arith.constant 0 : index
    %c0_115 = arith.constant 0 : index
    %196 = vector.load %arg26[%c0_114, %c0_115] : memref<1x32xf32, #tpu.memory_space<vmem>>, vector<1x32xf32>
    %197 = vector.broadcast %196 : vector<1x32xf32> to vector<8x32xf32>
    %198 = arith.addf %195, %197 : vector<8x32xf32>
    %cst_116 = arith.constant 5.000000e-01 : f32
    %199 = vector.broadcast %cst_116 : f32 to vector<8x32xf32>
    %200 = arith.mulf %199, %198 : vector<8x32xf32>
    %cst_117 = arith.constant 4.471500e-02 : f32
    %201 = vector.broadcast %cst_117 : f32 to vector<8x32xf32>
    %202 = arith.mulf %201, %198 : vector<8x32xf32>
    %203 = arith.mulf %202, %198 : vector<8x32xf32>
    %204 = arith.mulf %203, %198 : vector<8x32xf32>
    %205 = arith.addf %198, %204 : vector<8x32xf32>
    %cst_118 = arith.constant 0.797884583 : f32
    %206 = vector.broadcast %cst_118 : f32 to vector<8x32xf32>
    %207 = arith.mulf %206, %205 : vector<8x32xf32>
    %208 = math.tanh %207 : vector<8x32xf32>
    %cst_119 = arith.constant 1.000000e+00 : f32
    %209 = vector.broadcast %cst_119 : f32 to vector<8x32xf32>
    %210 = arith.addf %209, %208 : vector<8x32xf32>
    %211 = arith.mulf %200, %210 : vector<8x32xf32>
    %c0_120 = arith.constant 0 : index
    %c0_121 = arith.constant 0 : index
    %212 = vector.load %arg27[%c0_120, %c0_121] : memref<1x32xf32, #tpu.memory_space<vmem>>, vector<1x32xf32>
    %213 = vector.broadcast %212 : vector<1x32xf32> to vector<8x32xf32>
    %214 = arith.mulf %211, %213 : vector<8x32xf32>
    %cst_122 = arith.constant dense<0.000000e+00> : vector<8xf32>
    %215 = vector.multi_reduction <add>, %214, %cst_122 [1] : vector<8x32xf32> to vector<8xf32>
    %216 = vector.shape_cast %215 : vector<8xf32> to vector<8x1xf32>
    %c0_123 = arith.constant 0 : index
    %c0_124 = arith.constant 0 : index
    %217 = vector.load %arg28[%c0_123, %c0_124] : memref<1x1xf32, #tpu.memory_space<vmem>>, vector<1x1xf32>
    %218 = vector.broadcast %217 : vector<1x1xf32> to vector<8x1xf32>
    %219 = arith.addf %216, %218 : vector<8x1xf32>
    %220 = tpu.iota {dimensions = array<i32: 0>} : vector<8x128xi32>
    %221 = tpu.iota {dimensions = array<i32: 1>} : vector<8x128xi32>
    %222 = arith.cmpi eq, %220, %221 : vector<8x128xi32>
    %223 = arith.extui %222 : vector<8x128xi1> to vector<8x128xi32>
    %224 = arith.sitofp %223 : vector<8x128xi32> to vector<8x128xf32>
    %225 = vector.broadcast %219 : vector<8x1xf32> to vector<8x128xf32>
    %226 = arith.mulf %225, %224 : vector<8x128xf32>
    %cst_125 = arith.constant dense<0.000000e+00> : vector<128xf32>
    %227 = vector.multi_reduction <add>, %226, %cst_125 [0] : vector<8x128xf32> to vector<128xf32>
    %228 = vector.shape_cast %227 : vector<128xf32> to vector<1x128xf32>
    %c0_126 = arith.constant 0 : index
    %c0_127 = arith.constant 0 : index
    %c0_128 = arith.constant 0 : index
    %229 = vector.load %arg29[%c0_126, %c0_127, %c0_128] : memref<1x1x128xf32, #tpu.memory_space<vmem>>, vector<1x1x128xf32>
    %230 = vector.shape_cast %229 : vector<1x1x128xf32> to vector<1x128xf32>
    %231 = vector.shape_cast %228 : vector<1x128xf32> to vector<1x1x128xf32>
    tpu.vector_store %arg29[%c0_126, %c0_127, %c0_128], %231 {strides = array<i32>} : memref<1x1x128xf32, #tpu.memory_space<vmem>>, vector<1x1x128xf32>,
    %c0_129 = arith.constant 0 : index
    %c0_130 = arith.constant 0 : index
    %c0_131 = arith.constant 0 : index
    %232 = vector.load %arg2[%c0_129, %c0_130, %c0_131] : memref<1x8x1xi32, #tpu.memory_space<vmem>>, vector<1x8x1xi32>
    %233 = vector.shape_cast %232 : vector<1x8x1xi32> to vector<8x1xi32>
    %234 = arith.sitofp %233 : vector<8x1xi32> to vector<8x1xf32>
    %cst_132 = arith.constant 0.000000e+00 : f32
    %235 = vector.broadcast %cst_132 : f32 to vector<8x1xf32>
    %236 = arith.maximumf %219, %235 : vector<8x1xf32>
    %237 = arith.mulf %219, %234 : vector<8x1xf32>
    %238 = arith.subf %236, %237 : vector<8x1xf32>
    %239 = math.absf %219 : vector<8x1xf32>
    %cst_133 = arith.constant 0.000000e+00 : f32
    %240 = vector.broadcast %cst_133 : f32 to vector<8x1xf32>
    %241 = arith.subf %240, %239 : vector<8x1xf32>
    %242 = math.exp %241 : vector<8x1xf32>
    %243 = math.log1p %242 : vector<8x1xf32>
    %244 = arith.addf %238, %243 : vector<8x1xf32>
    %c0_134 = arith.constant 0 : index
    %c0_135 = arith.constant 0 : index
    %c0_136 = arith.constant 0 : index
    %245 = vector.load %arg3[%c0_134, %c0_135, %c0_136] : memref<1x8x1xf32, #tpu.memory_space<vmem>>, vector<1x8x1xf32>
    %246 = vector.shape_cast %245 : vector<1x8x1xf32> to vector<8x1xf32>
    %247 = arith.mulf %244, %246 : vector<8x1xf32>
    %cst_137 = arith.constant dense<0.000000e+00> : vector<1xf32>
    %248 = vector.multi_reduction <add>, %247, %cst_137 [0] : vector<8x1xf32> to vector<1xf32>
    %249 = vector.shape_cast %248 : vector<1xf32> to vector<1x1xf32>
    %cst_138 = arith.constant dense<0.000000e+00> : vector<1xf32>
    %250 = vector.multi_reduction <add>, %246, %cst_138 [0] : vector<8x1xf32> to vector<1xf32>
    %251 = vector.shape_cast %250 : vector<1xf32> to vector<1x1xf32>
    %252 = tpu.iota {dimensions = array<i32: 1>} : vector<1x128xi32>
    %c0_i32 = arith.constant 0 : i32
    %253 = vector.broadcast %c0_i32 : i32 to vector<1x128xi32>
    %254 = arith.cmpi eq, %252, %253 : vector<1x128xi32>
    %c1_i32 = arith.constant 1 : i32
    %255 = vector.broadcast %c1_i32 : i32 to vector<1x128xi32>
    %256 = arith.cmpi eq, %252, %255 : vector<1x128xi32>
    %cst_139 = arith.constant 0.000000e+00 : f32
    %257 = vector.broadcast %cst_139 : f32 to vector<1x1xf32>
    %258 = vector.shape_cast %251 : vector<1x1xf32> to vector<1x1xf32>
    %259 = vector.broadcast %258 : vector<1x1xf32> to vector<1x128xf32>
    %260 = vector.shape_cast %257 : vector<1x1xf32> to vector<1x1xf32>
    %261 = vector.broadcast %260 : vector<1x1xf32> to vector<1x128xf32>
    %262 = arith.select %256, %259, %261 : vector<1x128xi1>, vector<1x128xf32>
    %263 = vector.shape_cast %249 : vector<1x1xf32> to vector<1x1xf32>
    %264 = vector.broadcast %263 : vector<1x1xf32> to vector<1x128xf32>
    %265 = arith.select %254, %264, %262 : vector<1x128xi1>, vector<1x128xf32>
    %c0_140 = arith.constant 0 : index
    %c0_141 = arith.constant 0 : index
    %c0_142 = arith.constant 0 : index
    %266 = vector.load %arg30[%c0_140, %c0_141, %c0_142] : memref<1x1x128xf32, #tpu.memory_space<vmem>>, vector<1x1x128xf32>
    %267 = vector.shape_cast %266 : vector<1x1x128xf32> to vector<1x128xf32>
    %268 = vector.shape_cast %265 : vector<1x128xf32> to vector<1x1x128xf32>
    tpu.vector_store %arg30[%c0_140, %c0_141, %c0_142], %268 {strides = array<i32>} : memref<1x1x128xf32, #tpu.memory_space<vmem>>, vector<1x1x128xf32>,
    return
  }
  func.func @transform_0(%arg0: i32) -> (i32, i32, i32) {
    %c0_i32 = arith.constant 0 : i32
    %c0_i32_0 = arith.constant 0 : i32
    %c0_i32_1 = arith.constant 0 : i32
    return %arg0, %c0_i32, %c0_i32_0 : i32, i32, i32
  }
  func.func @transform_1(%arg0: i32) -> (i32, i32, i32) {
    %c0_i32 = arith.constant 0 : i32
    %c0_i32_0 = arith.constant 0 : i32
    %c0_i32_1 = arith.constant 0 : i32
    return %arg0, %c0_i32, %c0_i32_0 : i32, i32, i32
  }
  func.func @transform_2(%arg0: i32) -> (i32, i32, i32) {
    %c0_i32 = arith.constant 0 : i32
    %c0_i32_0 = arith.constant 0 : i32
    %c0_i32_1 = arith.constant 0 : i32
    return %arg0, %c0_i32, %c0_i32_0 : i32, i32, i32
  }
  func.func @transform_3(%arg0: i32) -> (i32, i32, i32) {
    %c0_i32 = arith.constant 0 : i32
    %c0_i32_0 = arith.constant 0 : i32
    %c0_i32_1 = arith.constant 0 : i32
    return %arg0, %c0_i32, %c0_i32_0 : i32, i32, i32
  }
  func.func @transform_4(%arg0: i32) -> (i32, i32) {
    %c0_i32 = arith.constant 0 : i32
    %c0_i32_0 = arith.constant 0 : i32
    %c0_i32_1 = arith.constant 0 : i32
    return %c0_i32, %c0_i32_0 : i32, i32
  }
  func.func @transform_5(%arg0: i32) -> (i32, i32) {
    %c0_i32 = arith.constant 0 : i32
    %c0_i32_0 = arith.constant 0 : i32
    %c0_i32_1 = arith.constant 0 : i32
    return %c0_i32, %c0_i32_0 : i32, i32
  }
  func.func @transform_6(%arg0: i32) -> (i32, i32) {
    %c0_i32 = arith.constant 0 : i32
    %c0_i32_0 = arith.constant 0 : i32
    %c0_i32_1 = arith.constant 0 : i32
    return %c0_i32, %c0_i32_0 : i32, i32
  }
  func.func @transform_7(%arg0: i32) -> (i32, i32) {
    %c0_i32 = arith.constant 0 : i32
    %c0_i32_0 = arith.constant 0 : i32
    %c0_i32_1 = arith.constant 0 : i32
    return %c0_i32, %c0_i32_0 : i32, i32
  }
  func.func @transform_8(%arg0: i32) -> (i32, i32, i32) {
    %c0_i32 = arith.constant 0 : i32
    %c0_i32_0 = arith.constant 0 : i32
    %c0_i32_1 = arith.constant 0 : i32
    %c0_i32_2 = arith.constant 0 : i32
    return %c0_i32, %c0_i32_0, %c0_i32_1 : i32, i32, i32
  }
  func.func @transform_9(%arg0: i32) -> (i32, i32, i32) {
    %c0_i32 = arith.constant 0 : i32
    %c0_i32_0 = arith.constant 0 : i32
    %c0_i32_1 = arith.constant 0 : i32
    %c0_i32_2 = arith.constant 0 : i32
    return %c0_i32, %c0_i32_0, %c0_i32_1 : i32, i32, i32
  }
  func.func @transform_10(%arg0: i32) -> (i32, i32, i32) {
    %c0_i32 = arith.constant 0 : i32
    %c0_i32_0 = arith.constant 0 : i32
    %c0_i32_1 = arith.constant 0 : i32
    %c0_i32_2 = arith.constant 0 : i32
    return %c0_i32, %c0_i32_0, %c0_i32_1 : i32, i32, i32
  }
  func.func @transform_11(%arg0: i32) -> (i32, i32, i32) {
    %c0_i32 = arith.constant 0 : i32
    %c0_i32_0 = arith.constant 0 : i32
    %c0_i32_1 = arith.constant 0 : i32
    %c0_i32_2 = arith.constant 0 : i32
    return %c0_i32, %c0_i32_0, %c0_i32_1 : i32, i32, i32
  }
  func.func @transform_12(%arg0: i32) -> (i32, i32, i32) {
    %c0_i32 = arith.constant 0 : i32
    %c0_i32_0 = arith.constant 0 : i32
    %c0_i32_1 = arith.constant 0 : i32
    %c0_i32_2 = arith.constant 0 : i32
    return %c0_i32, %c0_i32_0, %c0_i32_1 : i32, i32, i32
  }
  func.func @transform_13(%arg0: i32) -> (i32, i32, i32) {
    %c0_i32 = arith.constant 0 : i32
    %c0_i32_0 = arith.constant 0 : i32
    %c0_i32_1 = arith.constant 0 : i32
    %c0_i32_2 = arith.constant 0 : i32
    return %c0_i32, %c0_i32_0, %c0_i32_1 : i32, i32, i32
  }
  func.func @transform_14(%arg0: i32) -> (i32, i32, i32) {
    %c0_i32 = arith.constant 0 : i32
    %c0_i32_0 = arith.constant 0 : i32
    %c0_i32_1 = arith.constant 0 : i32
    %c0_i32_2 = arith.constant 0 : i32
    return %c0_i32, %c0_i32_0, %c0_i32_1 : i32, i32, i32
  }
  func.func @transform_15(%arg0: i32) -> (i32, i32) {
    %c0_i32 = arith.constant 0 : i32
    %c0_i32_0 = arith.constant 0 : i32
    %c0_i32_1 = arith.constant 0 : i32
    return %c0_i32, %c0_i32_0 : i32, i32
  }
  func.func @transform_16(%arg0: i32) -> (i32, i32) {
    %c0_i32 = arith.constant 0 : i32
    %c0_i32_0 = arith.constant 0 : i32
    %c0_i32_1 = arith.constant 0 : i32
    return %c0_i32, %c0_i32_0 : i32, i32
  }
  func.func @transform_17(%arg0: i32) -> (i32, i32) {
    %c0_i32 = arith.constant 0 : i32
    %c0_i32_0 = arith.constant 0 : i32
    %c0_i32_1 = arith.constant 0 : i32
    return %c0_i32, %c0_i32_0 : i32, i32
  }
  func.func @transform_18(%arg0: i32) -> (i32, i32) {
    %c0_i32 = arith.constant 0 : i32
    %c0_i32_0 = arith.constant 0 : i32
    %c0_i32_1 = arith.constant 0 : i32
    return %c0_i32, %c0_i32_0 : i32, i32
  }
  func.func @transform_19(%arg0: i32) -> (i32, i32) {
    %c0_i32 = arith.constant 0 : i32
    %c0_i32_0 = arith.constant 0 : i32
    %c0_i32_1 = arith.constant 0 : i32
    return %c0_i32, %c0_i32_0 : i32, i32
  }
  func.func @transform_20(%arg0: i32) -> (i32, i32) {
    %c0_i32 = arith.constant 0 : i32
    %c0_i32_0 = arith.constant 0 : i32
    %c0_i32_1 = arith.constant 0 : i32
    return %c0_i32, %c0_i32_0 : i32, i32
  }
  func.func @transform_21(%arg0: i32) -> (i32, i32) {
    %c0_i32 = arith.constant 0 : i32
    %c0_i32_0 = arith.constant 0 : i32
    %c0_i32_1 = arith.constant 0 : i32
    return %c0_i32, %c0_i32_0 : i32, i32
  }
  func.func @transform_22(%arg0: i32) -> (i32, i32) {
    %c0_i32 = arith.constant 0 : i32
    %c0_i32_0 = arith.constant 0 : i32
    %c0_i32_1 = arith.constant 0 : i32
    return %c0_i32, %c0_i32_0 : i32, i32
  }
  func.func @transform_23(%arg0: i32) -> (i32, i32) {
    %c0_i32 = arith.constant 0 : i32
    %c0_i32_0 = arith.constant 0 : i32
    %c0_i32_1 = arith.constant 0 : i32
    return %c0_i32, %c0_i32_0 : i32, i32
  }
  func.func @transform_24(%arg0: i32) -> (i32, i32) {
    %c0_i32 = arith.constant 0 : i32
    %c0_i32_0 = arith.constant 0 : i32
    %c0_i32_1 = arith.constant 0 : i32
    return %c0_i32, %c0_i32_0 : i32, i32
  }
  func.func @transform_25(%arg0: i32) -> (i32, i32) {
    %c0_i32 = arith.constant 0 : i32
    %c0_i32_0 = arith.constant 0 : i32
    %c0_i32_1 = arith.constant 0 : i32
    return %c0_i32, %c0_i32_0 : i32, i32
  }
  func.func @transform_26(%arg0: i32) -> (i32, i32) {
    %c0_i32 = arith.constant 0 : i32
    %c0_i32_0 = arith.constant 0 : i32
    %c0_i32_1 = arith.constant 0 : i32
    return %c0_i32, %c0_i32_0 : i32, i32
  }
  func.func @transform_27(%arg0: i32) -> (i32, i32) {
    %c0_i32 = arith.constant 0 : i32
    %c0_i32_0 = arith.constant 0 : i32
    %c0_i32_1 = arith.constant 0 : i32
    return %c0_i32, %c0_i32_0 : i32, i32
  }
  func.func @transform_28(%arg0: i32) -> (i32, i32, i32) {
    %c0_i32 = arith.constant 0 : i32
    %c0_i32_0 = arith.constant 0 : i32
    %c0_i32_1 = arith.constant 0 : i32
    return %arg0, %c0_i32, %c0_i32_0 : i32, i32, i32
  }
  func.func @transform_29(%arg0: i32) -> (i32, i32, i32) {
    %c0_i32 = arith.constant 0 : i32
    %c0_i32_0 = arith.constant 0 : i32
    %c0_i32_1 = arith.constant 0 : i32
    return %arg0, %c0_i32, %c0_i32_0 : i32, i32, i32
  }
}

</mosaic_0001>

<llo_original>
// kernel: combined_forward.4
$region0: #{combined_forward.4}
  #allocation0 [shape = 'u32[]', space=smem, size = 0x4, offset = 0x4, fixed_abs, tag = 'smem constant byte address 0x4 - core index']
  #allocation1 [shape = 'u32[72,128]{1,0:T(1,128)}', space=vmem, size = 0x9000, scoped, tag = 'internal scratch']
  %s0 = inlined_call_operand.smem [shape: u32[31], index: -1, kind: input, shape index: {}]
  %s1 = sld [smem:[%s0]]
  %s2 = scalar_lea.smem %s0, 1
  %s3 = sld [smem:[%s2]]
  %s4 = scalar_lea.smem %s0, 2
  %s5 = sld [smem:[%s4]]
  %s6 = scalar_lea.smem %s0, 3
  %s7 = sld [smem:[%s6]]
  %s8 = scalar_lea.smem %s0, 4
  %s9 = sld [smem:[%s8]]
  %s10 = scalar_lea.smem %s0, 5
  %s11 = sld [smem:[%s10]]
  %s12 = scalar_lea.smem %s0, 6
  %s13 = sld [smem:[%s12]]
  %s14 = scalar_lea.smem %s0, 7
  %s15 = sld [smem:[%s14]]
  %s16 = scalar_lea.smem %s0, 8
  %s17 = sld [smem:[%s16]]
  %s18 = scalar_lea.smem %s0, 9
  %s19 = sld [smem:[%s18]]
  %s20 = scalar_lea.smem %s0, 10
  %s21 = sld [smem:[%s20]]
  %s22 = scalar_lea.smem %s0, 11
  %s23 = sld [smem:[%s22]]
  %s24 = scalar_lea.smem %s0, 12
  %s25 = sld [smem:[%s24]]
  %s26 = scalar_lea.smem %s0, 13
  %s27 = sld [smem:[%s26]]
  %s28 = scalar_lea.smem %s0, 14
  %s29 = sld [smem:[%s28]]
  %s30 = scalar_lea.smem %s0, 15
  %s31 = sld [smem:[%s30]]
  %s32 = scalar_lea.smem %s0, 16
  %s33 = sld [smem:[%s32]]
  %s34 = scalar_lea.smem %s0, 17
  %s35 = sld [smem:[%s34]]
  %s36 = scalar_lea.smem %s0, 18
  %s37 = sld [smem:[%s36]]
  %s38 = scalar_lea.smem %s0, 19
  %s39 = sld [smem:[%s38]]
  %s40 = scalar_lea.smem %s0, 20
  %s41 = sld [smem:[%s40]]
  %s42 = scalar_lea.smem %s0, 21
  %s43 = sld [smem:[%s42]]
  %s44 = scalar_lea.smem %s0, 22
  %s45 = sld [smem:[%s44]]
  %s46 = scalar_lea.smem %s0, 23
  %s47 = sld [smem:[%s46]]
  %s48 = scalar_lea.smem %s0, 24
  %s49 = sld [smem:[%s48]]
  %s50 = scalar_lea.smem %s0, 25
  %s51 = sld [smem:[%s50]]
  %s52 = scalar_lea.smem %s0, 26
  %s53 = sld [smem:[%s52]]
  %s54 = scalar_lea.smem %s0, 27
  %s55 = sld [smem:[%s54]]
  %s56 = scalar_lea.smem %s0, 28
  %s57 = sld [smem:[%s56]]
  %s58 = scalar_lea.smem %s0, 29
  %s59 = sld [smem:[%s58]]
  %s60 = scalar_lea.smem %s0, 30
  %s61 = sld [smem:[%s60]]
  %62 = xla_tuple %s59, %s61
  %s63 = sld [smem:[#allocation0]]
  $region157: #{combined_forward.4} parent=0
    _
  %s65 = ssub.s32 1, %s63
  %s66 = scalar_select 0, %s65, %s63
  loop: start=0, step=1, limit=4
  $region2: #{combined_forward.4} parent=0 // loop_pre_header
    _
  $region3: #{combined_forward.4} parent=0 // loop_header
    %s68 = sphi 0, %s72
    %p69 = scmp.ge.s32.totalorder %s68, 4
    %s78 = sphi 0, %s80
    %s81 = sphi 0, %s78
    %s82 = sphi 0, %s81
    %s98 = sphi 0, %s82
    %s104 = sphi 0, %s106
    %s107 = sphi 0, %s104
    %s108 = sphi 0, %s107
    %s124 = sphi 0, %s108
    %s130 = sphi 0, %s132
    %s133 = sphi 0, %s130
    %s134 = sphi 0, %s133
    %s150 = sphi 0, %s134
    %s154 = sphi 0, %s154
    %s156 = sphi 0, %s154
    %s157 = sphi 0, %s156
    %s171 = sphi 0, %s157
    %s175 = sphi 0, %s175
    %s177 = sphi 0, %s175
    %s178 = sphi 0, %s177
    %s192 = sphi 0, %s178
    %s196 = sphi 0, %s196
    %s198 = sphi 0, %s196
    %s199 = sphi 0, %s198
    %s213 = sphi 0, %s199
    %s217 = sphi 0, %s217
    %s219 = sphi 0, %s217
    %s220 = sphi 0, %s219
    %s234 = sphi 0, %s220
    %s238 = sphi 0, %s238
    %s240 = sphi 0, %s238
    %s241 = sphi 0, %s240
    %s255 = sphi 0, %s241
    %s259 = sphi 0, %s259
    %s261 = sphi 0, %s259
    %s262 = sphi 0, %s261
    %s276 = sphi 0, %s262
    %s280 = sphi 0, %s280
    %s282 = sphi 0, %s280
    %s283 = sphi 0, %s282
    %s297 = sphi 0, %s283
    %s301 = sphi 0, %s301
    %s303 = sphi 0, %s301
    %s304 = sphi 0, %s303
    %s318 = sphi 0, %s304
    %s322 = sphi 0, %s322
    %s324 = sphi 0, %s322
    %s325 = sphi 0, %s324
    %s339 = sphi 0, %s325
    %s343 = sphi 0, %s343
    %s345 = sphi 0, %s343
    %s346 = sphi 0, %s345
    %s360 = sphi 0, %s346
    %s364 = sphi 0, %s364
    %s366 = sphi 0, %s364
    %s367 = sphi 0, %s366
    %s381 = sphi 0, %s367
    %s385 = sphi 0, %s385
    %s387 = sphi 0, %s385
    %s388 = sphi 0, %s387
    %s402 = sphi 0, %s388
    %s406 = sphi 0, %s406
    %s408 = sphi 0, %s406
    %s409 = sphi 0, %s408
    %s423 = sphi 0, %s409
    %s427 = sphi 0, %s427
    %s429 = sphi 0, %s427
    %s430 = sphi 0, %s429
    %s444 = sphi 0, %s430
    %s448 = sphi 0, %s448
    %s450 = sphi 0, %s448
    %s451 = sphi 0, %s450
    %s465 = sphi 0, %s451
    %s469 = sphi 0, %s469
    %s471 = sphi 0, %s469
    %s472 = sphi 0, %s471
    %s486 = sphi 0, %s472
    %s490 = sphi 0, %s490
    %s492 = sphi 0, %s490
    %s493 = sphi 0, %s492
    %s507 = sphi 0, %s493
    %s511 = sphi 0, %s511
    %s513 = sphi 0, %s511
    %s514 = sphi 0, %s513
    %s528 = sphi 0, %s514
    %s532 = sphi 0, %s532
    %s534 = sphi 0, %s532
    %s535 = sphi 0, %s534
    %s549 = sphi 0, %s535
    %s553 = sphi 0, %s553
    %s555 = sphi 0, %s553
    %s556 = sphi 0, %s555
    %s570 = sphi 0, %s556
    %s574 = sphi 0, %s574
    %s576 = sphi 0, %s574
    %s577 = sphi 0, %s576
    %s591 = sphi 0, %s577
    %s595 = sphi 0, %s595
    %s597 = sphi 0, %s595
    %s598 = sphi 0, %s597
    %s612 = sphi 0, %s598
    %s616 = sphi 0, %s616
    %s618 = sphi 0, %s616
    %s619 = sphi 0, %s618
    %s633 = sphi 0, %s619
    %s637 = sphi 0, %s637
    %s639 = sphi 0, %s637
    %s640 = sphi 0, %s639
    %s654 = sphi 0, %s640
    %s658 = sphi 0, %s658
    %s660 = sphi 0, %s658
    %s661 = sphi 0, %s660
    %s675 = sphi 0, %s661
    %s679 = sphi 0, %s679
    %s681 = sphi 0, %s679
    %s682 = sphi 0, %s681
    %s696 = sphi 0, %s682
    %s702 = sphi 0, %s704
    %s705 = sphi 0, %s702
    %s706 = sphi 0, %s705
    %s722 = sphi 0, %s706
    %s728 = sphi 0, %s730
    %s731 = sphi 0, %s728
    %s732 = sphi 0, %s731
    %s748 = sphi 0, %s732
  $region4: #{combined_forward.4} parent=0 // loop_header_branch
    %71 = sbr.rel (%p69) target = $region8
  $region5: #{combined_forward.4} parent=0 // loop_body
    %s73 = ssub.s32 %s68, 1
    %s74 = ssub.s32 %s68, 2
    %s75 = sadd.s32 %s68, 1
    %s76 = ssub.s32 %s68, %s75
    %p77 = scmp.eq.s32.totalorder %s76, 0
    %s79 = sadd.s32 %s78, 1
    %s80 = scalar_select %p77, %s78, %s79
    %p83 = pneg %p77
    %p84 = scmp.eq.s32.totalorder %s68, 1
    %p85 = por %p83, %p84
    %p86 = scmp.ne.s32.totalorder %s78, %s81
    %p87 = scmp.eq.s32.totalorder %s68, 0
    %p88 = por %p86, %p87
    %p89 = scmp.ne.s32.totalorder %s78, %s81
    %p90 = scmp.eq.s32.totalorder %s73, 1
    %p91 = por %p89, %p90
    %p92 = scmp.ne.s32.totalorder %s81, %s82
    %p93 = scmp.eq.s32.totalorder %s73, 0
    %p94 = por %p92, %p93
    %p95 = scmp.ne.s32.totalorder %s81, %s82
    %p96 = scmp.eq.s32.totalorder %s74, 1
    %p97 = por %p95, %p96
    %p99 = scmp.ne.s32.totalorder %s82, %s98
    %p100 = scmp.eq.s32.totalorder %s74, 0
    %p101 = por %p99, %p100
    %s102 = ssub.s32 %s68, %s75
    %p103 = scmp.eq.s32.totalorder %s102, 0
    %s105 = sadd.s32 %s104, 1
    %s106 = scalar_select %p103, %s104, %s105
    %p109 = pneg %p103
    %p110 = scmp.eq.s32.totalorder %s68, 1
    %p111 = por %p109, %p110
    %p112 = scmp.ne.s32.totalorder %s104, %s107
    %p113 = scmp.eq.s32.totalorder %s68, 0
    %p114 = por %p112, %p113
    %p115 = scmp.ne.s32.totalorder %s104, %s107
    %p116 = scmp.eq.s32.totalorder %s73, 1
    %p117 = por %p115, %p116
    %p118 = scmp.ne.s32.totalorder %s107, %s108
    %p119 = scmp.eq.s32.totalorder %s73, 0
    %p120 = por %p118, %p119
    %p121 = scmp.ne.s32.totalorder %s107, %s108
    %p122 = scmp.eq.s32.totalorder %s74, 1
    %p123 = por %p121, %p122
    %p125 = scmp.ne.s32.totalorder %s108, %s124
    %p126 = scmp.eq.s32.totalorder %s74, 0
    %p127 = por %p125, %p126
    %s128 = ssub.s32 %s68, %s75
    %p129 = scmp.eq.s32.totalorder %s128, 0
    %s131 = sadd.s32 %s130, 1
    %s132 = scalar_select %p129, %s130, %s131
    %p135 = pneg %p129
    %p136 = scmp.eq.s32.totalorder %s68, 1
    %p137 = por %p135, %p136
    %p138 = scmp.ne.s32.totalorder %s130, %s133
    %p139 = scmp.eq.s32.totalorder %s68, 0
    %p140 = por %p138, %p139
    %p141 = scmp.ne.s32.totalorder %s130, %s133
    %p142 = scmp.eq.s32.totalorder %s73, 1
    %p143 = por %p141, %p142
    %p144 = scmp.ne.s32.totalorder %s133, %s134
    %p145 = scmp.eq.s32.totalorder %s73, 0
    %p146 = por %p144, %p145
    %p147 = scmp.ne.s32.totalorder %s133, %s134
    %p148 = scmp.eq.s32.totalorder %s74, 1
    %p149 = por %p147, %p148
    %p151 = scmp.ne.s32.totalorder %s134, %s150
    %p152 = scmp.eq.s32.totalorder %s74, 0
    %p153 = por %p151, %p152
    %s155 = sadd.s32 %s154, 1
    %p158 = scmp.eq.s32.totalorder %s68, 1
    %p159 = scmp.ne.s32.totalorder %s154, %s156
    %p160 = scmp.eq.s32.totalorder %s68, 0
    %p161 = por %p159, %p160
    %p162 = scmp.ne.s32.totalorder %s154, %s156
    %p163 = scmp.eq.s32.totalorder %s73, 1
    %p164 = por %p162, %p163
    %p165 = scmp.ne.s32.totalorder %s156, %s157
    %p166 = scmp.eq.s32.totalorder %s73, 0
    %p167 = por %p165, %p166
    %p168 = scmp.ne.s32.totalorder %s156, %s157
    %p169 = scmp.eq.s32.totalorder %s74, 1
    %p170 = por %p168, %p169
    %p172 = scmp.ne.s32.totalorder %s157, %s171
    %p173 = scmp.eq.s32.totalorder %s74, 0
    %p174 = por %p172, %p173
    %s176 = sadd.s32 %s175, 1
    %p179 = scmp.eq.s32.totalorder %s68, 1
    %p180 = scmp.ne.s32.totalorder %s175, %s177
    %p181 = scmp.eq.s32.totalorder %s68, 0
    %p182 = por %p180, %p181
    %p183 = scmp.ne.s32.totalorder %s175, %s177
    %p184 = scmp.eq.s32.totalorder %s73, 1
    %p185 = por %p183, %p184
    %p186 = scmp.ne.s32.totalorder %s177, %s178
    %p187 = scmp.eq.s32.totalorder %s73, 0
    %p188 = por %p186, %p187
    %p189 = scmp.ne.s32.totalorder %s177, %s178
    %p190 = scmp.eq.s32.totalorder %s74, 1
    %p191 = por %p189, %p190
    %p193 = scmp.ne.s32.totalorder %s178, %s192
    %p194 = scmp.eq.s32.totalorder %s74, 0
    %p195 = por %p193, %p194
    %s197 = sadd.s32 %s196, 1
    %p200 = scmp.eq.s32.totalorder %s68, 1
    %p201 = scmp.ne.s32.totalorder %s196, %s198
    %p202 = scmp.eq.s32.totalorder %s68, 0
    %p203 = por %p201, %p202
    %p204 = scmp.ne.s32.totalorder %s196, %s198
    %p205 = scmp.eq.s32.totalorder %s73, 1
    %p206 = por %p204, %p205
    %p207 = scmp.ne.s32.totalorder %s198, %s199
    %p208 = scmp.eq.s32.totalorder %s73, 0
    %p209 = por %p207, %p208
    %p210 = scmp.ne.s32.totalorder %s198, %s199
    %p211 = scmp.eq.s32.totalorder %s74, 1
    %p212 = por %p210, %p211
    %p214 = scmp.ne.s32.totalorder %s199, %s213
    %p215 = scmp.eq.s32.totalorder %s74, 0
    %p216 = por %p214, %p215
    %s218 = sadd.s32 %s217, 1
    %p221 = scmp.eq.s32.totalorder %s68, 1
    %p222 = scmp.ne.s32.totalorder %s217, %s219
    %p223 = scmp.eq.s32.totalorder %s68, 0
    %p224 = por %p222, %p223
    %p225 = scmp.ne.s32.totalorder %s217, %s219
    %p226 = scmp.eq.s32.totalorder %s73, 1
    %p227 = por %p225, %p226
    %p228 = scmp.ne.s32.totalorder %s219, %s220
    %p229 = scmp.eq.s32.totalorder %s73, 0
    %p230 = por %p228, %p229
    %p231 = scmp.ne.s32.totalorder %s219, %s220
    %p232 = scmp.eq.s32.totalorder %s74, 1
    %p233 = por %p231, %p232
    %p235 = scmp.ne.s32.totalorder %s220, %s234
    %p236 = scmp.eq.s32.totalorder %s74, 0
    %p237 = por %p235, %p236
    %s239 = sadd.s32 %s238, 1
    %p242 = scmp.eq.s32.totalorder %s68, 1
    %p243 = scmp.ne.s32.totalorder %s238, %s240
    %p244 = scmp.eq.s32.totalorder %s68, 0
    %p245 = por %p243, %p244
    %p246 = scmp.ne.s32.totalorder %s238, %s240
    %p247 = scmp.eq.s32.totalorder %s73, 1
    %p248 = por %p246, %p247
    %p249 = scmp.ne.s32.totalorder %s240, %s241
    %p250 = scmp.eq.s32.totalorder %s73, 0
    %p251 = por %p249, %p250
    %p252 = scmp.ne.s32.totalorder %s240, %s241
    %p253 = scmp.eq.s32.totalorder %s74, 1
    %p254 = por %p252, %p253
    %p256 = scmp.ne.s32.totalorder %s241, %s255
    %p257 = scmp.eq.s32.totalorder %s74, 0
    %p258 = por %p256, %p257
    %s260 = sadd.s32 %s259, 1
    %p263 = scmp.eq.s32.totalorder %s68, 1
    %p264 = scmp.ne.s32.totalorder %s259, %s261
    %p265 = scmp.eq.s32.totalorder %s68, 0
    %p266 = por %p264, %p265
    %p267 = scmp.ne.s32.totalorder %s259, %s261
    %p268 = scmp.eq.s32.totalorder %s73, 1
    %p269 = por %p267, %p268
    %p270 = scmp.ne.s32.totalorder %s261, %s262
    %p271 = scmp.eq.s32.totalorder %s73, 0
    %p272 = por %p270, %p271
    %p273 = scmp.ne.s32.totalorder %s261, %s262
    %p274 = scmp.eq.s32.totalorder %s74, 1
    %p275 = por %p273, %p274
    %p277 = scmp.ne.s32.totalorder %s262, %s276
    %p278 = scmp.eq.s32.totalorder %s74, 0
    %p279 = por %p277, %p278
    %s281 = sadd.s32 %s280, 1
    %p284 = scmp.eq.s32.totalorder %s68, 1
    %p285 = scmp.ne.s32.totalorder %s280, %s282
    %p286 = scmp.eq.s32.totalorder %s68, 0
    %p287 = por %p285, %p286
    %p288 = scmp.ne.s32.totalorder %s280, %s282
    %p289 = scmp.eq.s32.totalorder %s73, 1
    %p290 = por %p288, %p289
    %p291 = scmp.ne.s32.totalorder %s282, %s283
    %p292 = scmp.eq.s32.totalorder %s73, 0
    %p293 = por %p291, %p292
    %p294 = scmp.ne.s32.totalorder %s282, %s283
    %p295 = scmp.eq.s32.totalorder %s74, 1
    %p296 = por %p294, %p295
    %p298 = scmp.ne.s32.totalorder %s283, %s297
    %p299 = scmp.eq.s32.totalorder %s74, 0
    %p300 = por %p298, %p299
    %s302 = sadd.s32 %s301, 1
    %p305 = scmp.eq.s32.totalorder %s68, 1
    %p306 = scmp.ne.s32.totalorder %s301, %s303
    %p307 = scmp.eq.s32.totalorder %s68, 0
    %p308 = por %p306, %p307
    %p309 = scmp.ne.s32.totalorder %s301, %s303
    %p310 = scmp.eq.s32.totalorder %s73, 1
    %p311 = por %p309, %p310
    %p312 = scmp.ne.s32.totalorder %s303, %s304
    %p313 = scmp.eq.s32.totalorder %s73, 0
    %p314 = por %p312, %p313
    %p315 = scmp.ne.s32.totalorder %s303, %s304
    %p316 = scmp.eq.s32.totalorder %s74, 1
    %p317 = por %p315, %p316
    %p319 = scmp.ne.s32.totalorder %s304, %s318
    %p320 = scmp.eq.s32.totalorder %s74, 0
    %p321 = por %p319, %p320
    %s323 = sadd.s32 %s322, 1
    %p326 = scmp.eq.s32.totalorder %s68, 1
    %p327 = scmp.ne.s32.totalorder %s322, %s324
    %p328 = scmp.eq.s32.totalorder %s68, 0
    %p329 = por %p327, %p328
    %p330 = scmp.ne.s32.totalorder %s322, %s324
    %p331 = scmp.eq.s32.totalorder %s73, 1
    %p332 = por %p330, %p331
    %p333 = scmp.ne.s32.totalorder %s324, %s325
    %p334 = scmp.eq.s32.totalorder %s73, 0
    %p335 = por %p333, %p334
    %p336 = scmp.ne.s32.totalorder %s324, %s325
    %p337 = scmp.eq.s32.totalorder %s74, 1
    %p338 = por %p336, %p337
    %p340 = scmp.ne.s32.totalorder %s325, %s339
    %p341 = scmp.eq.s32.totalorder %s74, 0
    %p342 = por %p340, %p341
    %s344 = sadd.s32 %s343, 1
    %p347 = scmp.eq.s32.totalorder %s68, 1
    %p348 = scmp.ne.s32.totalorder %s343, %s345
    %p349 = scmp.eq.s32.totalorder %s68, 0
    %p350 = por %p348, %p349
    %p351 = scmp.ne.s32.totalorder %s343, %s345
    %p352 = scmp.eq.s32.totalorder %s73, 1
    %p353 = por %p351, %p352
    %p354 = scmp.ne.s32.totalorder %s345, %s346
    %p355 = scmp.eq.s32.totalorder %s73, 0
    %p356 = por %p354, %p355
    %p357 = scmp.ne.s32.totalorder %s345, %s346
    %p358 = scmp.eq.s32.totalorder %s74, 1
    %p359 = por %p357, %p358
    %p361 = scmp.ne.s32.totalorder %s346, %s360
    %p362 = scmp.eq.s32.totalorder %s74, 0
    %p363 = por %p361, %p362
    %s365 = sadd.s32 %s364, 1
    %p368 = scmp.eq.s32.totalorder %s68, 1
    %p369 = scmp.ne.s32.totalorder %s364, %s366
    %p370 = scmp.eq.s32.totalorder %s68, 0
    %p371 = por %p369, %p370
    %p372 = scmp.ne.s32.totalorder %s364, %s366
    %p373 = scmp.eq.s32.totalorder %s73, 1
    %p374 = por %p372, %p373
    %p375 = scmp.ne.s32.totalorder %s366, %s367
    %p376 = scmp.eq.s32.totalorder %s73, 0
    %p377 = por %p375, %p376
    %p378 = scmp.ne.s32.totalorder %s366, %s367
    %p379 = scmp.eq.s32.totalorder %s74, 1
    %p380 = por %p378, %p379
    %p382 = scmp.ne.s32.totalorder %s367, %s381
    %p383 = scmp.eq.s32.totalorder %s74, 0
    %p384 = por %p382, %p383
    %s386 = sadd.s32 %s385, 1
    %p389 = scmp.eq.s32.totalorder %s68, 1
    %p390 = scmp.ne.s32.totalorder %s385, %s387
    %p391 = scmp.eq.s32.totalorder %s68, 0
    %p392 = por %p390, %p391
    %p393 = scmp.ne.s32.totalorder %s385, %s387
    %p394 = scmp.eq.s32.totalorder %s73, 1
    %p395 = por %p393, %p394
    %p396 = scmp.ne.s32.totalorder %s387, %s388
    %p397 = scmp.eq.s32.totalorder %s73, 0
    %p398 = por %p396, %p397
    %p399 = scmp.ne.s32.totalorder %s387, %s388
    %p400 = scmp.eq.s32.totalorder %s74, 1
    %p401 = por %p399, %p400
    %p403 = scmp.ne.s32.totalorder %s388, %s402
    %p404 = scmp.eq.s32.totalorder %s74, 0
    %p405 = por %p403, %p404
    %s407 = sadd.s32 %s406, 1
    %p410 = scmp.eq.s32.totalorder %s68, 1
    %p411 = scmp.ne.s32.totalorder %s406, %s408
    %p412 = scmp.eq.s32.totalorder %s68, 0
    %p413 = por %p411, %p412
    %p414 = scmp.ne.s32.totalorder %s406, %s408
    %p415 = scmp.eq.s32.totalorder %s73, 1
    %p416 = por %p414, %p415
    %p417 = scmp.ne.s32.totalorder %s408, %s409
    %p418 = scmp.eq.s32.totalorder %s73, 0
    %p419 = por %p417, %p418
    %p420 = scmp.ne.s32.totalorder %s408, %s409
    %p421 = scmp.eq.s32.totalorder %s74, 1
    %p422 = por %p420, %p421
    %p424 = scmp.ne.s32.totalorder %s409, %s423
    %p425 = scmp.eq.s32.totalorder %s74, 0
    %p426 = por %p424, %p425
    %s428 = sadd.s32 %s427, 1
    %p431 = scmp.eq.s32.totalorder %s68, 1
    %p432 = scmp.ne.s32.totalorder %s427, %s429
    %p433 = scmp.eq.s32.totalorder %s68, 0
    %p434 = por %p432, %p433
    %p435 = scmp.ne.s32.totalorder %s427, %s429
    %p436 = scmp.eq.s32.totalorder %s73, 1
    %p437 = por %p435, %p436
    %p438 = scmp.ne.s32.totalorder %s429, %s430
    %p439 = scmp.eq.s32.totalorder %s73, 0
    %p440 = por %p438, %p439
    %p441 = scmp.ne.s32.totalorder %s429, %s430
    %p442 = scmp.eq.s32.totalorder %s74, 1
    %p443 = por %p441, %p442
    %p445 = scmp.ne.s32.totalorder %s430, %s444
    %p446 = scmp.eq.s32.totalorder %s74, 0
    %p447 = por %p445, %p446
    %s449 = sadd.s32 %s448, 1
    %p452 = scmp.eq.s32.totalorder %s68, 1
    %p453 = scmp.ne.s32.totalorder %s448, %s450
    %p454 = scmp.eq.s32.totalorder %s68, 0
    %p455 = por %p453, %p454
    %p456 = scmp.ne.s32.totalorder %s448, %s450
    %p457 = scmp.eq.s32.totalorder %s73, 1
    %p458 = por %p456, %p457
    %p459 = scmp.ne.s32.totalorder %s450, %s451
    %p460 = scmp.eq.s32.totalorder %s73, 0
    %p461 = por %p459, %p460
    %p462 = scmp.ne.s32.totalorder %s450, %s451
    %p463 = scmp.eq.s32.totalorder %s74, 1
    %p464 = por %p462, %p463
    %p466 = scmp.ne.s32.totalorder %s451, %s465
    %p467 = scmp.eq.s32.totalorder %s74, 0
    %p468 = por %p466, %p467
    %s470 = sadd.s32 %s469, 1
    %p473 = scmp.eq.s32.totalorder %s68, 1
    %p474 = scmp.ne.s32.totalorder %s469, %s471
    %p475 = scmp.eq.s32.totalorder %s68, 0
    %p476 = por %p474, %p475
    %p477 = scmp.ne.s32.totalorder %s469, %s471
    %p478 = scmp.eq.s32.totalorder %s73, 1
    %p479 = por %p477, %p478
    %p480 = scmp.ne.s32.totalorder %s471, %s472
    %p481 = scmp.eq.s32.totalorder %s73, 0
    %p482 = por %p480, %p481
    %p483 = scmp.ne.s32.totalorder %s471, %s472
    %p484 = scmp.eq.s32.totalorder %s74, 1
    %p485 = por %p483, %p484
    %p487 = scmp.ne.s32.totalorder %s472, %s486
    %p488 = scmp.eq.s32.totalorder %s74, 0
    %p489 = por %p487, %p488
    %s491 = sadd.s32 %s490, 1
    %p494 = scmp.eq.s32.totalorder %s68, 1
    %p495 = scmp.ne.s32.totalorder %s490, %s492
    %p496 = scmp.eq.s32.totalorder %s68, 0
    %p497 = por %p495, %p496
    %p498 = scmp.ne.s32.totalorder %s490, %s492
    %p499 = scmp.eq.s32.totalorder %s73, 1
    %p500 = por %p498, %p499
    %p501 = scmp.ne.s32.totalorder %s492, %s493
    %p502 = scmp.eq.s32.totalorder %s73, 0
    %p503 = por %p501, %p502
    %p504 = scmp.ne.s32.totalorder %s492, %s493
    %p505 = scmp.eq.s32.totalorder %s74, 1
    %p506 = por %p504, %p505
    %p508 = scmp.ne.s32.totalorder %s493, %s507
    %p509 = scmp.eq.s32.totalorder %s74, 0
    %p510 = por %p508, %p509
    %s512 = sadd.s32 %s511, 1
    %p515 = scmp.eq.s32.totalorder %s68, 1
    %p516 = scmp.ne.s32.totalorder %s511, %s513
    %p517 = scmp.eq.s32.totalorder %s68, 0
    %p518 = por %p516, %p517
    %p519 = scmp.ne.s32.totalorder %s511, %s513
    %p520 = scmp.eq.s32.totalorder %s73, 1
    %p521 = por %p519, %p520
    %p522 = scmp.ne.s32.totalorder %s513, %s514
    %p523 = scmp.eq.s32.totalorder %s73, 0
    %p524 = por %p522, %p523
    %p525 = scmp.ne.s32.totalorder %s513, %s514
    %p526 = scmp.eq.s32.totalorder %s74, 1
    %p527 = por %p525, %p526
    %p529 = scmp.ne.s32.totalorder %s514, %s528
    %p530 = scmp.eq.s32.totalorder %s74, 0
    %p531 = por %p529, %p530
    %s533 = sadd.s32 %s532, 1
    %p536 = scmp.eq.s32.totalorder %s68, 1
    %p537 = scmp.ne.s32.totalorder %s532, %s534
    %p538 = scmp.eq.s32.totalorder %s68, 0
    %p539 = por %p537, %p538
    %p540 = scmp.ne.s32.totalorder %s532, %s534
    %p541 = scmp.eq.s32.totalorder %s73, 1
    %p542 = por %p540, %p541
    %p543 = scmp.ne.s32.totalorder %s534, %s535
    %p544 = scmp.eq.s32.totalorder %s73, 0
    %p545 = por %p543, %p544
    %p546 = scmp.ne.s32.totalorder %s534, %s535
    %p547 = scmp.eq.s32.totalorder %s74, 1
    %p548 = por %p546, %p547
    %p550 = scmp.ne.s32.totalorder %s535, %s549
    %p551 = scmp.eq.s32.totalorder %s74, 0
    %p552 = por %p550, %p551
    %s554 = sadd.s32 %s553, 1
    %p557 = scmp.eq.s32.totalorder %s68, 1
    %p558 = scmp.ne.s32.totalorder %s553, %s555
    %p559 = scmp.eq.s32.totalorder %s68, 0
    %p560 = por %p558, %p559
    %p561 = scmp.ne.s32.totalorder %s553, %s555
    %p562 = scmp.eq.s32.totalorder %s73, 1
    %p563 = por %p561, %p562
    %p564 = scmp.ne.s32.totalorder %s555, %s556
    %p565 = scmp.eq.s32.totalorder %s73, 0
    %p566 = por %p564, %p565
    %p567 = scmp.ne.s32.totalorder %s555, %s556
    %p568 = scmp.eq.s32.totalorder %s74, 1
    %p569 = por %p567, %p568
    %p571 = scmp.ne.s32.totalorder %s556, %s570
    %p572 = scmp.eq.s32.totalorder %s74, 0
    %p573 = por %p571, %p572
    %s575 = sadd.s32 %s574, 1
    %p578 = scmp.eq.s32.totalorder %s68, 1
    %p579 = scmp.ne.s32.totalorder %s574, %s576
    %p580 = scmp.eq.s32.totalorder %s68, 0
    %p581 = por %p579, %p580
    %p582 = scmp.ne.s32.totalorder %s574, %s576
    %p583 = scmp.eq.s32.totalorder %s73, 1
    %p584 = por %p582, %p583
    %p585 = scmp.ne.s32.totalorder %s576, %s577
    %p586 = scmp.eq.s32.totalorder %s73, 0
    %p587 = por %p585, %p586
    %p588 = scmp.ne.s32.totalorder %s576, %s577
    %p589 = scmp.eq.s32.totalorder %s74, 1
    %p590 = por %p588, %p589
    %p592 = scmp.ne.s32.totalorder %s577, %s591
    %p593 = scmp.eq.s32.totalorder %s74, 0
    %p594 = por %p592, %p593
    %s596 = sadd.s32 %s595, 1
    %p599 = scmp.eq.s32.totalorder %s68, 1
    %p600 = scmp.ne.s32.totalorder %s595, %s597
    %p601 = scmp.eq.s32.totalorder %s68, 0
    %p602 = por %p600, %p601
    %p603 = scmp.ne.s32.totalorder %s595, %s597
    %p604 = scmp.eq.s32.totalorder %s73, 1
    %p605 = por %p603, %p604
    %p606 = scmp.ne.s32.totalorder %s597, %s598
    %p607 = scmp.eq.s32.totalorder %s73, 0
    %p608 = por %p606, %p607
    %p609 = scmp.ne.s32.totalorder %s597, %s598
    %p610 = scmp.eq.s32.totalorder %s74, 1
    %p611 = por %p609, %p610
    %p613 = scmp.ne.s32.totalorder %s598, %s612
    %p614 = scmp.eq.s32.totalorder %s74, 0
    %p615 = por %p613, %p614
    %s617 = sadd.s32 %s616, 1
    %p620 = scmp.eq.s32.totalorder %s68, 1
    %p621 = scmp.ne.s32.totalorder %s616, %s618
    %p622 = scmp.eq.s32.totalorder %s68, 0
    %p623 = por %p621, %p622
    %p624 = scmp.ne.s32.totalorder %s616, %s618
    %p625 = scmp.eq.s32.totalorder %s73, 1
    %p626 = por %p624, %p625
    %p627 = scmp.ne.s32.totalorder %s618, %s619
    %p628 = scmp.eq.s32.totalorder %s73, 0
    %p629 = por %p627, %p628
    %p630 = scmp.ne.s32.totalorder %s618, %s619
    %p631 = scmp.eq.s32.totalorder %s74, 1
    %p632 = por %p630, %p631
    %p634 = scmp.ne.s32.totalorder %s619, %s633
    %p635 = scmp.eq.s32.totalorder %s74, 0
    %p636 = por %p634, %p635
    %s638 = sadd.s32 %s637, 1
    %p641 = scmp.eq.s32.totalorder %s68, 1
    %p642 = scmp.ne.s32.totalorder %s637, %s639
    %p643 = scmp.eq.s32.totalorder %s68, 0
    %p644 = por %p642, %p643
    %p645 = scmp.ne.s32.totalorder %s637, %s639
    %p646 = scmp.eq.s32.totalorder %s73, 1
    %p647 = por %p645, %p646
    %p648 = scmp.ne.s32.totalorder %s639, %s640
    %p649 = scmp.eq.s32.totalorder %s73, 0
    %p650 = por %p648, %p649
    %p651 = scmp.ne.s32.totalorder %s639, %s640
    %p652 = scmp.eq.s32.totalorder %s74, 1
    %p653 = por %p651, %p652
    %p655 = scmp.ne.s32.totalorder %s640, %s654
    %p656 = scmp.eq.s32.totalorder %s74, 0
    %p657 = por %p655, %p656
    %s659 = sadd.s32 %s658, 1
    %p662 = scmp.eq.s32.totalorder %s68, 1
    %p663 = scmp.ne.s32.totalorder %s658, %s660
    %p664 = scmp.eq.s32.totalorder %s68, 0
    %p665 = por %p663, %p664
    %p666 = scmp.ne.s32.totalorder %s658, %s660
    %p667 = scmp.eq.s32.totalorder %s73, 1
    %p668 = por %p666, %p667
    %p669 = scmp.ne.s32.totalorder %s660, %s661
    %p670 = scmp.eq.s32.totalorder %s73, 0
    %p671 = por %p669, %p670
    %p672 = scmp.ne.s32.totalorder %s660, %s661
    %p673 = scmp.eq.s32.totalorder %s74, 1
    %p674 = por %p672, %p673
    %p676 = scmp.ne.s32.totalorder %s661, %s675
    %p677 = scmp.eq.s32.totalorder %s74, 0
    %p678 = por %p676, %p677
    %s680 = sadd.s32 %s679, 1
    %p683 = scmp.eq.s32.totalorder %s68, 1
    %p684 = scmp.ne.s32.totalorder %s679, %s681
    %p685 = scmp.eq.s32.totalorder %s68, 0
    %p686 = por %p684, %p685
    %p687 = scmp.ne.s32.totalorder %s679, %s681
    %p688 = scmp.eq.s32.totalorder %s73, 1
    %p689 = por %p687, %p688
    %p690 = scmp.ne.s32.totalorder %s681, %s682
    %p691 = scmp.eq.s32.totalorder %s73, 0
    %p692 = por %p690, %p691
    %p693 = scmp.ne.s32.totalorder %s681, %s682
    %p694 = scmp.eq.s32.totalorder %s74, 1
    %p695 = por %p693, %p694
    %p697 = scmp.ne.s32.totalorder %s682, %s696
    %p698 = scmp.eq.s32.totalorder %s74, 0
    %p699 = por %p697, %p698
    %s700 = ssub.s32 %s68, %s75
    %p701 = scmp.eq.s32.totalorder %s700, 0
    %s703 = sadd.s32 %s702, 1
    %s704 = scalar_select %p701, %s702, %s703
    %p707 = pneg %p701
    %p708 = scmp.eq.s32.totalorder %s68, 1
    %p709 = por %p707, %p708
    %p710 = scmp.ne.s32.totalorder %s702, %s705
    %p711 = scmp.eq.s32.totalorder %s68, 0
    %p712 = por %p710, %p711
    %p713 = scmp.ne.s32.totalorder %s702, %s705
    %p714 = scmp.eq.s32.totalorder %s73, 1
    %p715 = por %p713, %p714
    %p716 = scmp.ne.s32.totalorder %s705, %s706
    %p717 = scmp.eq.s32.totalorder %s73, 0
    %p718 = por %p716, %p717
    %p719 = scmp.ne.s32.totalorder %s705, %s706
    %p720 = scmp.eq.s32.totalorder %s74, 1
    %p721 = por %p719, %p720
    %p723 = scmp.ne.s32.totalorder %s706, %s722
    %p724 = scmp.eq.s32.totalorder %s74, 0
    %p725 = por %p723, %p724
    %s726 = ssub.s32 %s68, %s75
    %p727 = scmp.eq.s32.totalorder %s726, 0
    %s729 = sadd.s32 %s728, 1
    %s730 = scalar_select %p727, %s728, %s729
    %p733 = pneg %p727
    %p734 = scmp.eq.s32.totalorder %s68, 1
    %p735 = por %p733, %p734
    %p736 = scmp.ne.s32.totalorder %s728, %s731
    %p737 = scmp.eq.s32.totalorder %s68, 0
    %p738 = por %p736, %p737
    %p739 = scmp.ne.s32.totalorder %s728, %s731
    %p740 = scmp.eq.s32.totalorder %s73, 1
    %p741 = por %p739, %p740
    %p742 = scmp.ne.s32.totalorder %s731, %s732
    %p743 = scmp.eq.s32.totalorder %s73, 0
    %p744 = por %p742, %p743
    %p745 = scmp.ne.s32.totalorder %s731, %s732
    %p746 = scmp.eq.s32.totalorder %s74, 1
    %p747 = por %p745, %p746
    %p749 = scmp.ne.s32.totalorder %s732, %s748
    %p750 = scmp.eq.s32.totalorder %s74, 0
    %p751 = por %p749, %p750
    %p752 = scmp.le.s32.totalorder 1, %s68
    %p753 = scmp.lt.s32.totalorder %s68, 3
    %p754 = pnand %p752, %p753
    %p755 = pneg %p754
    // Predicated region
    $region9: #{combined_forward.4} parent=5 // pred_check
      _
    $region10: #{combined_forward.4} parent=5 // pred_check_branch
      %757 = sbr.rel (%p754) target = $region12
    $region11: #{combined_forward.4} parent=5 // pred_region
      %s758 = ssub.s32 %s68, 1
      // Predicated region
      $region13: #{combined_forward.4} parent=11 // pred_check
        %p759 = pneg %p167
      $region14: #{combined_forward.4} parent=11 // pred_check_branch
        %761 = sbr.rel (%p759) target = $region16
      $region15: #{combined_forward.4} parent=11 // pred_region
        _
      $region16: #{combined_forward.4} parent=11 // pred_fallthru
        _
      // Predicated region
      $region17: #{combined_forward.4} parent=11 // pred_check
        %p762 = pneg %p188
      $region18: #{combined_forward.4} parent=11 // pred_check_branch
        %764 = sbr.rel (%p762) target = $region20
      $region19: #{combined_forward.4} parent=11 // pred_region
        _
      $region20: #{combined_forward.4} parent=11 // pred_fallthru
        _
      // Predicated region
      $region21: #{combined_forward.4} parent=11 // pred_check
        %p765 = pneg %p209
      $region22: #{combined_forward.4} parent=11 // pred_check_branch
        %767 = sbr.rel (%p765) target = $region24
      $region23: #{combined_forward.4} parent=11 // pred_region
        _
      $region24: #{combined_forward.4} parent=11 // pred_fallthru
        _
      // Predicated region
      $region25: #{combined_forward.4} parent=11 // pred_check
        %p768 = pneg %p230
      $region26: #{combined_forward.4} parent=11 // pred_check_branch
        %770 = sbr.rel (%p768) target = $region28
      $region27: #{combined_forward.4} parent=11 // pred_region
        _
      $region28: #{combined_forward.4} parent=11 // pred_fallthru
        _
      // Predicated region
      $region29: #{combined_forward.4} parent=11 // pred_check
        %p771 = pneg %p251
      $region30: #{combined_forward.4} parent=11 // pred_check_branch
        %773 = sbr.rel (%p771) target = $region32
      $region31: #{combined_forward.4} parent=11 // pred_region
        _
      $region32: #{combined_forward.4} parent=11 // pred_fallthru
        _
      // Predicated region
      $region33: #{combined_forward.4} parent=11 // pred_check
        %p774 = pneg %p272
      $region34: #{combined_forward.4} parent=11 // pred_check_branch
        %776 = sbr.rel (%p774) target = $region36
      $region35: #{combined_forward.4} parent=11 // pred_region
        _
      $region36: #{combined_forward.4} parent=11 // pred_fallthru
        _
      // Predicated region
      $region37: #{combined_forward.4} parent=11 // pred_check
        %p777 = pneg %p293
      $region38: #{combined_forward.4} parent=11 // pred_check_branch
        %779 = sbr.rel (%p777) target = $region40
      $region39: #{combined_forward.4} parent=11 // pred_region
        _
      $region40: #{combined_forward.4} parent=11 // pred_fallthru
        _
      // Predicated region
      $region41: #{combined_forward.4} parent=11 // pred_check
        %p780 = pneg %p314
      $region42: #{combined_forward.4} parent=11 // pred_check_branch
        %782 = sbr.rel (%p780) target = $region44
      $region43: #{combined_forward.4} parent=11 // pred_region
        _
      $region44: #{combined_forward.4} parent=11 // pred_fallthru
        _
      // Predicated region
      $region45: #{combined_forward.4} parent=11 // pred_check
        %p783 = pneg %p335
      $region46: #{combined_forward.4} parent=11 // pred_check_branch
        %785 = sbr.rel (%p783) target = $region48
      $region47: #{combined_forward.4} parent=11 // pred_region
        _
      $region48: #{combined_forward.4} parent=11 // pred_fallthru
        _
      // Predicated region
      $region49: #{combined_forward.4} parent=11 // pred_check
        %p786 = pneg %p356
      $region50: #{combined_forward.4} parent=11 // pred_check_branch
        %788 = sbr.rel (%p786) target = $region52
      $region51: #{combined_forward.4} parent=11 // pred_region
        _
      $region52: #{combined_forward.4} parent=11 // pred_fallthru
        _
      // Predicated region
      $region53: #{combined_forward.4} parent=11 // pred_check
        %p789 = pneg %p377
      $region54: #{combined_forward.4} parent=11 // pred_check_branch
        %791 = sbr.rel (%p789) target = $region56
      $region55: #{combined_forward.4} parent=11 // pred_region
        _
      $region56: #{combined_forward.4} parent=11 // pred_fallthru
        _
      // Predicated region
      $region57: #{combined_forward.4} parent=11 // pred_check
        %p792 = pneg %p398
      $region58: #{combined_forward.4} parent=11 // pred_check_branch
        %794 = sbr.rel (%p792) target = $region60
      $region59: #{combined_forward.4} parent=11 // pred_region
        _
      $region60: #{combined_forward.4} parent=11 // pred_fallthru
        _
      // Predicated region
      $region61: #{combined_forward.4} parent=11 // pred_check
        %p795 = pneg %p419
      $region62: #{combined_forward.4} parent=11 // pred_check_branch
        %797 = sbr.rel (%p795) target = $region64
      $region63: #{combined_forward.4} parent=11 // pred_region
        _
      $region64: #{combined_forward.4} parent=11 // pred_fallthru
        _
      // Predicated region
      $region65: #{combined_forward.4} parent=11 // pred_check
        %p798 = pneg %p440
      $region66: #{combined_forward.4} parent=11 // pred_check_branch
        %800 = sbr.rel (%p798) target = $region68
      $region67: #{combined_forward.4} parent=11 // pred_region
        _
      $region68: #{combined_forward.4} parent=11 // pred_fallthru
        _
      // Predicated region
      $region69: #{combined_forward.4} parent=11 // pred_check
        %p801 = pneg %p461
      $region70: #{combined_forward.4} parent=11 // pred_check_branch
        %803 = sbr.rel (%p801) target = $region72
      $region71: #{combined_forward.4} parent=11 // pred_region
        _
      $region72: #{combined_forward.4} parent=11 // pred_fallthru
        _
      // Predicated region
      $region73: #{combined_forward.4} parent=11 // pred_check
        %p804 = pneg %p482
      $region74: #{combined_forward.4} parent=11 // pred_check_branch
        %806 = sbr.rel (%p804) target = $region76
      $region75: #{combined_forward.4} parent=11 // pred_region
        _
      $region76: #{combined_forward.4} parent=11 // pred_fallthru
        _
      // Predicated region
      $region77: #{combined_forward.4} parent=11 // pred_check
        %p807 = pneg %p503
      $region78: #{combined_forward.4} parent=11 // pred_check_branch
        %809 = sbr.rel (%p807) target = $region80
      $region79: #{combined_forward.4} parent=11 // pred_region
        _
      $region80: #{combined_forward.4} parent=11 // pred_fallthru
        _
      // Predicated region
      $region81: #{combined_forward.4} parent=11 // pred_check
        %p810 = pneg %p524
      $region82: #{combined_forward.4} parent=11 // pred_check_branch
        %812 = sbr.rel (%p810) target = $region84
      $region83: #{combined_forward.4} parent=11 // pred_region
        _
      $region84: #{combined_forward.4} parent=11 // pred_fallthru
        _
      // Predicated region
      $region85: #{combined_forward.4} parent=11 // pred_check
        %p813 = pneg %p545
      $region86: #{combined_forward.4} parent=11 // pred_check_branch
        %815 = sbr.rel (%p813) target = $region88
      $region87: #{combined_forward.4} parent=11 // pred_region
        _
      $region88: #{combined_forward.4} parent=11 // pred_fallthru
        _
      // Predicated region
      $region89: #{combined_forward.4} parent=11 // pred_check
        %p816 = pneg %p566
      $region90: #{combined_forward.4} parent=11 // pred_check_branch
        %818 = sbr.rel (%p816) target = $region92
      $region91: #{combined_forward.4} parent=11 // pred_region
        _
      $region92: #{combined_forward.4} parent=11 // pred_fallthru
        _
      // Predicated region
      $region93: #{combined_forward.4} parent=11 // pred_check
        %p819 = pneg %p587
      $region94: #{combined_forward.4} parent=11 // pred_check_branch
        %821 = sbr.rel (%p819) target = $region96
      $region95: #{combined_forward.4} parent=11 // pred_region
        _
      $region96: #{combined_forward.4} parent=11 // pred_fallthru
        _
      // Predicated region
      $region97: #{combined_forward.4} parent=11 // pred_check
        %p822 = pneg %p608
      $region98: #{combined_forward.4} parent=11 // pred_check_branch
        %824 = sbr.rel (%p822) target = $region100
      $region99: #{combined_forward.4} parent=11 // pred_region
        _
      $region100: #{combined_forward.4} parent=11 // pred_fallthru
        _
      // Predicated region
      $region101: #{combined_forward.4} parent=11 // pred_check
        %p825 = pneg %p629
      $region102: #{combined_forward.4} parent=11 // pred_check_branch
        %827 = sbr.rel (%p825) target = $region104
      $region103: #{combined_forward.4} parent=11 // pred_region
        _
      $region104: #{combined_forward.4} parent=11 // pred_fallthru
        _
      // Predicated region
      $region105: #{combined_forward.4} parent=11 // pred_check
        %p828 = pneg %p650
      $region106: #{combined_forward.4} parent=11 // pred_check_branch
        %830 = sbr.rel (%p828) target = $region108
      $region107: #{combined_forward.4} parent=11 // pred_region
        _
      $region108: #{combined_forward.4} parent=11 // pred_fallthru
        _
      // Predicated region
      $region109: #{combined_forward.4} parent=11 // pred_check
        %p831 = pneg %p671
      $region110: #{combined_forward.4} parent=11 // pred_check_branch
        %833 = sbr.rel (%p831) target = $region112
      $region111: #{combined_forward.4} parent=11 // pred_region
        _
      $region112: #{combined_forward.4} parent=11 // pred_fallthru
        _
      // Predicated region
      $region113: #{combined_forward.4} parent=11 // pred_check
        %p834 = pneg %p692
      $region114: #{combined_forward.4} parent=11 // pred_check_branch
        %836 = sbr.rel (%p834) target = $region116
      $region115: #{combined_forward.4} parent=11 // pred_region
        _
      $region116: #{combined_forward.4} parent=11 // pred_fallthru
        _
    $region12: #{combined_forward.4} parent=5 // pred_fallthru
      _
    %p837 = scmp.lt.s32.totalorder %s68, 2
    // Predicated region
    $region117: #{combined_forward.4} parent=5 // pred_check
      %p838 = pneg %p837
    $region118: #{combined_forward.4} parent=5 // pred_check_branch
      %840 = sbr.rel (%p838) target = $region120
    $region119: #{combined_forward.4} parent=5 // pred_region
      // Predicated region
      $region121: #{combined_forward.4} parent=119 // pred_check
        %p841 = pneg %p88
      $region122: #{combined_forward.4} parent=119 // pred_check_branch
        %843 = sbr.rel (%p841) target = $region124
      $region123: #{combined_forward.4} parent=119 // pred_region
        %p844 = scmp.lt.s32.totalorder %s68, 1
        %s845 = scalar_select %p844, %s68, 1
        %s846 = smul.addr %s845, 8
        %s847 = scalar_lea.vmem %s1, %s846
      $region124: #{combined_forward.4} parent=119 // pred_fallthru
        _
      // Predicated region
      $region125: #{combined_forward.4} parent=119 // pred_check
        %p848 = pneg %p114
      $region126: #{combined_forward.4} parent=119 // pred_check_branch
        %850 = sbr.rel (%p848) target = $region128
      $region127: #{combined_forward.4} parent=119 // pred_region
        %p851 = scmp.lt.s32.totalorder %s68, 1
        %s852 = scalar_select %p851, %s68, 1
        %s853 = smul.addr %s852, 8
        %s854 = scalar_lea.vmem %s3, %s853
      $region128: #{combined_forward.4} parent=119 // pred_fallthru
        _
      // Predicated region
      $region129: #{combined_forward.4} parent=119 // pred_check
        %p855 = pneg %p140
      $region130: #{combined_forward.4} parent=119 // pred_check_branch
        %857 = sbr.rel (%p855) target = $region132
      $region131: #{combined_forward.4} parent=119 // pred_region
        %p858 = scmp.lt.s32.totalorder %s68, 1
        %s859 = scalar_select %p858, %s68, 1
        %s860 = scalar_lea.vmem %s5, %s859
      $region132: #{combined_forward.4} parent=119 // pred_fallthru
        _
    $region120: #{combined_forward.4} parent=5 // pred_fallthru
      _
    %p861 = scmp.le.s32.totalorder 1, %s68
    %p862 = scmp.lt.s32.totalorder %s68, 3
    %p863 = pnand %p861, %p862
    %p864 = pneg %p863
    // Predicated region
    $region133: #{combined_forward.4} parent=5 // pred_check
      _
    $region134: #{combined_forward.4} parent=5 // pred_check_branch
      %866 = sbr.rel (%p863) target = $region136
    $region135: #{combined_forward.4} parent=5 // pred_region
      %s867 = ssub.s32 %s68, 1
      %p868 = scmp.lt.s32.totalorder %s73, 1
      %s869 = scalar_select %p868, %s73, 1
      %s870 = smul.addr %s869, 8
      %s871 = scalar_lea.vmem %s1, %s870
      %p872 = pneg %p94
      %p873 = pneg %p91
      %p874 = scmp.lt.s32.totalorder %s73, 1
      %s875 = scalar_select %p874, %s73, 1
      %s876 = smul.addr %s875, 8
      %s877 = scalar_lea.vmem %s3, %s876
      %p878 = pneg %p120
      %p879 = pneg %p117
      %p880 = scmp.lt.s32.totalorder %s73, 1
      %s881 = scalar_select %p880, %s73, 1
      %s882 = scalar_lea.vmem %s5, %s881
      %p883 = pneg %p146
      %p884 = pneg %p143
      %p885 = pneg %p167
      %p886 = pneg %p164
      %p887 = pneg %p188
      %p888 = pneg %p185
      %p889 = pneg %p209
      %p890 = pneg %p206
      %p891 = pneg %p230
      %p892 = pneg %p227
      %p893 = pneg %p251
      %p894 = pneg %p248
      %p895 = pneg %p272
      %p896 = pneg %p269
      %p897 = pneg %p293
      %p898 = pneg %p290
      %p899 = pneg %p314
      %p900 = pneg %p311
      %p901 = pneg %p335
      %p902 = pneg %p332
      %p903 = pneg %p356
      %p904 = pneg %p353
      %p905 = pneg %p377
      %p906 = pneg %p374
      %p907 = pneg %p398
      %p908 = pneg %p395
      %p909 = pneg %p419
      %p910 = pneg %p416
      %p911 = pneg %p440
      %p912 = pneg %p437
      %p913 = pneg %p461
      %p914 = pneg %p458
      %p915 = pneg %p482
      %p916 = pneg %p479
      %p917 = pneg %p503
      %p918 = pneg %p500
      %p919 = pneg %p524
      %p920 = pneg %p521
      %p921 = pneg %p545
      %p922 = pneg %p542
      %p923 = pneg %p566
      %p924 = pneg %p563
      %p925 = pneg %p587
      %p926 = pneg %p584
      %p927 = pneg %p608
      %p928 = pneg %p605
      %p929 = pneg %p629
      %p930 = pneg %p626
      %p931 = pneg %p650
      %p932 = pneg %p647
      %p933 = pneg %p671
      %p934 = pneg %p668
      %p935 = pneg %p692
      %p936 = pneg %p689
      %p937 = pneg %p718
      %p938 = pneg %p715
      %p939 = scmp.lt.s32.totalorder %s73, 1
      %s940 = scalar_select %p939, %s73, 1
      %s941 = smul.addr %s940, 8
      %s942 = scalar_lea.vmem %s59, %s941
      %p943 = pneg %p744
      %p944 = pneg %p741
      %p945 = scmp.lt.s32.totalorder %s73, 1
      %s946 = scalar_select %p945, %s73, 1
      %s947 = scalar_lea.vmem %s61, %s946
      %p948 = scmp.lt.s32.totalorder %s73, 1
      %s949 = scalar_select %p948, %s73, 1
      %s950 = smul.addr %s949, 8
      %s951 = scalar_lea.vmem %s1, %s950
      %p952 = scmp.lt.s32.totalorder %s73, 1
      %s953 = scalar_select %p952, %s73, 1
      %s954 = smul.addr %s953, 8
      %s955 = scalar_lea.vmem %s3, %s954
      %p956 = scmp.lt.s32.totalorder %s73, 1
      %s957 = scalar_select %p956, %s73, 1
      %s958 = scalar_lea.vmem %s5, %s957
      %p959 = scmp.lt.s32.totalorder %s73, 1
      %s960 = scalar_select %p959, %s73, 1
      %s961 = smul.addr %s960, 8
      %s962 = scalar_lea.vmem %s59, %s961
      %p963 = scmp.lt.s32.totalorder %s73, 1
      %s964 = scalar_select %p963, %s73, 1
      %s965 = scalar_lea.vmem %s61, %s964
      %v966 = vld [vmem:[%s951] sm:$0xff]
      %v967 = vld [vmem:[%s7] sm:$0xff]
      %v968 = vld [vmem:[%s7 + $0x8] sm:$0xff]
      %v969 = vld [vmem:[%s7 + $0x10] sm:$0xff]
      %v970 = vld [vmem:[%s7 + $0x18] sm:$0xff]
      %v971 = vld [vmem:[%s7 + $0x20] sm:$0xff]
      %v972 = vld [vmem:[%s7 + $0x28] sm:$0xff]
      %v973 = vld [vmem:[%s7 + $0x30] sm:$0xff]
      %v974 = vld [vmem:[%s7 + $0x38] sm:$0xff]
      %v975 = vld [vmem:[%s7 + $0x40] sm:$0xff]
      %v976 = vld [vmem:[%s7 + $0x48] sm:$0xff]
      %v977 = vld [vmem:[%s7 + $0x50] sm:$0xff]
      %v978 = vld [vmem:[%s7 + $0x58] sm:$0xff]
      %v979 = vld [vmem:[%s7 + $0x60] sm:$0xff]
      %v980 = vld [vmem:[%s7 + $0x68] sm:$0xff]
      %v981 = vld [vmem:[%s7 + $0x70] sm:$0xff]
      %v982 = vld [vmem:[%s7 + $0x78] sm:$0xff]
      %v983 = vld [vmem:[%s9] sm:$0xff]
      %v984 = vld [vmem:[%s11] sm:$0x1]
      %v985 = vld [vmem:[%s13] sm:$0x1]
      %v986 = vlaneseq
      %v987 = vand.u32 %v986, 127
      %988 = vset.pattern.permute.xlu0 0
      %989 = vperm.xlu0 %988, %v966
      %v990 = vpop.permute.xlu0 %989
      %vm991 = vcmp.eq.s32.totalorder %v987, %v990
      %v992 = vsel %vm991, 1, 0
      %v993 = vcvt.s32.f32 %v992
      %994 = vmatpush.msra.mxu0 %v982
      %995 = vmatpush.msra.mxu0 %v981
      %996 = vmatpush.msra.mxu0 %v980
      %997 = vmatpush.msra.mxu0 %v979
      %998 = vmatpush.msra.mxu0 %v978
      %999 = vmatpush.msra.mxu0 %v977
      %1000 = vmatpush.msra.mxu0 %v976
      %1001 = vmatpush.msra.mxu0 %v975
      %1002 = vmatpush.msra.mxu0 %v974
      %1003 = vmatpush.msra.mxu0 %v973
      %1004 = vmatpush.msra.mxu0 %v972
      %1005 = vmatpush.msra.mxu0 %v971
      %1006 = vmatpush.msra.mxu0 %v970
      %1007 = vmatpush.msra.mxu0 %v969
      %1008 = vmatpush.msra.mxu0 %v968
      %1009 = vmatpush.msra.mxu0 %v967
      %1010 = vmatmul.f32.gmra.mxu0 %v993
      %v1011 = vpop.f32.mrf.mxu0
      %v1012 = vadd.f32 %v983, %v1011
      %1013 = vdwg.mxu0
      %vm1014 = vcmask 261120
      %v1015 = vsel %vm1014, %v1012, 0.0
      %1016 = vadd.xlane.f32.xlu0 %v1015
      %v1017 = vpop.xlane.xlu0 %1016
      %v1018 = vrcp.pop 32.0
      %v1019 = vmul.f32 32.0, %v1018
      %v1020 = vsub.f32 1.0, %v1019
      %v1021 = vmul.f32 %v1018, %v1020
      %v1022 = vadd.f32 %v1018, %v1021
      %vm1023 = vweird.f32 %v1018
      %v1024 = vsel %vm1023, %v1018, %v1022
      %v1025 = vmul.f32 %v1017, %v1024
      %v1026 = vsub.f32 %v1012, %v1025
      %v1027 = vmul.f32 %v1026, %v1026
      %v1028 = vsel %vm1014, %v1027, 0.0
      %1029 = vadd.xlane.f32.xlu0 %v1028
      %v1030 = vpop.xlane.xlu0 %1029
      %v1031 = vmul.f32 %v1030, %v1024
      %v1032 = vadd.f32 %v1031, 1e-12
      %v1033 = vrsqrt.pop %v1032
      %v1034 = vmul.f32 %v1033, %v1032
      %v1035 = vmul.f32 %v1034, %v1033
      %v1036 = vmul.f32 0.5, %v1035
      %v1037 = vsub.f32 1.5, %v1036
      %v1038 = vmul.f32 %v1033, %v1037
      %vm1039 = vweird.f32 %v1032
      %vm1040 = vweird.f32 %v1033
      %vm1041 = vmor %vm1039, %vm1040
      %v1042 = vsel %vm1041, %v1033, %v1038
      %v1043 = vmul.f32 %v1026, %v1042
      %v1045 = vperm.slane %v984, 0
      %v1047 = vmul.f32 %v1043, %v1045
      %v1049 = vperm.slane %v985, 0
      %v1051 = vadd.f32 %v1047, %v1049
      %v1052 = vld [vmem:[%s958] sm:$0x1]
      %v1053 = vld [vmem:[%s29] sm:$0x1]
      %v1054 = vld [vmem:[%s15] sm:$0xff]
      %v1055 = vld [vmem:[%s15 + $0x8] sm:$0xff]
      %v1056 = vld [vmem:[%s15 + $0x10] sm:$0xff]
      %v1057 = vld [vmem:[%s15 + $0x18] sm:$0xff]
      %v1058 = vld [vmem:[%s23] sm:$0x1]
      %v1060 = vperm.slane %v1058, 0
      %v1063 = vsel %vm1014, %v1051, 0
      %1065 = vmatpush.msra.mxu0 0.0
      %1066 = vmatpush.msra.mxu0 0.0
      %1067 = vmatpush.msra.mxu0 0.0
      %1068 = vmatpush.msra.mxu0 0.0
      %1069 = vmatpush.msra.mxu0 0.0
      %1070 = vmatpush.msra.mxu0 0.0
      %1071 = vmatpush.msra.mxu0 0.0
      %1072 = vmatpush.msra.mxu0 0.0
      %1073 = vmatpush.msra.mxu0 0.0
      %1074 = vmatpush.msra.mxu0 0.0
      %1075 = vmatpush.msra.mxu0 0.0
      %1076 = vmatpush.msra.mxu0 0.0
      %1077 = vmatpush.msra.mxu0 %v1057
      %1078 = vmatpush.msra.mxu0 %v1056
      %1079 = vmatpush.msra.mxu0 %v1055
      %1080 = vmatpush.msra.mxu0 %v1054
      %1081 = vmatmul.f32.gmra.mxu0 %v1063
      %v1082 = vpop.f32.mrf.mxu0
      %v1083 = vadd.f32 %v1060, %v1082
      %1084 = vdwg.mxu0
      %v1085 = vld [vmem:[%s17] sm:$0xff]
      %v1086 = vld [vmem:[%s17 + $0x8] sm:$0xff]
      %v1087 = vld [vmem:[%s17 + $0x10] sm:$0xff]
      %v1088 = vld [vmem:[%s17 + $0x18] sm:$0xff]
      %v1089 = vld [vmem:[%s25] sm:$0x1]
      %v1091 = vperm.slane %v1089, 0
      %1093 = vmatpush.msra.mxu0 0.0
      %1094 = vmatpush.msra.mxu0 0.0
      %1095 = vmatpush.msra.mxu0 0.0
      %1096 = vmatpush.msra.mxu0 0.0
      %1097 = vmatpush.msra.mxu0 0.0
      %1098 = vmatpush.msra.mxu0 0.0
      %1099 = vmatpush.msra.mxu0 0.0
      %1100 = vmatpush.msra.mxu0 0.0
      %1101 = vmatpush.msra.mxu0 0.0
      %1102 = vmatpush.msra.mxu0 0.0
      %1103 = vmatpush.msra.mxu0 0.0
      %1104 = vmatpush.msra.mxu0 0.0
      %1105 = vmatpush.msra.mxu0 %v1088
      %1106 = vmatpush.msra.mxu0 %v1087
      %1107 = vmatpush.msra.mxu0 %v1086
      %1108 = vmatpush.msra.mxu0 %v1085
      %1109 = vmatmul.f32.gmra.mxu0 %v1063
      %v1110 = vpop.f32.mrf.mxu0
      %v1111 = vadd.f32 %v1091, %v1110
      %1112 = vdwg.mxu0
      %v1113 = vld [vmem:[%s19] sm:$0xff]
      %v1114 = vld [vmem:[%s19 + $0x8] sm:$0xff]
      %v1115 = vld [vmem:[%s19 + $0x10] sm:$0xff]
      %v1116 = vld [vmem:[%s19 + $0x18] sm:$0xff]
      %v1117 = vld [vmem:[%s27] sm:$0x1]
      %v1119 = vperm.slane %v1117, 0
      %1121 = vmatpush.msra.mxu0 0.0
      %1122 = vmatpush.msra.mxu0 0.0
      %1123 = vmatpush.msra.mxu0 0.0
      %1124 = vmatpush.msra.mxu0 0.0
      %1125 = vmatpush.msra.mxu0 0.0
      %1126 = vmatpush.msra.mxu0 0.0
      %1127 = vmatpush.msra.mxu0 0.0
      %1128 = vmatpush.msra.mxu0 0.0
      %1129 = vmatpush.msra.mxu0 0.0
      %1130 = vmatpush.msra.mxu0 0.0
      %1131 = vmatpush.msra.mxu0 0.0
      %1132 = vmatpush.msra.mxu0 0.0
      %1133 = vmatpush.msra.mxu0 %v1116
      %1134 = vmatpush.msra.mxu0 %v1115
      %1135 = vmatpush.msra.mxu0 %v1114
      %1136 = vmatpush.msra.mxu0 %v1113
      %1137 = vmatmul.f32.gmra.mxu0 %v1063
      %v1138 = vpop.f32.mrf.mxu0
      %v1139 = vadd.f32 %v1119, %v1138
      %1140 = vdwg.mxu0
      %vm1141 = vcmask 130048
      %v1143 = vsel %vm1141, %v1083, 0
      %v1146 = vsel %vm1141, %v1111, 0
      %1148 = vmatpush.xpose.msra.mxu0 0.0
      %1149 = vmatpush.xpose.msra.mxu0 0.0
      %1150 = vmatpush.xpose.msra.mxu0 0.0
      %1151 = vmatpush.xpose.msra.mxu0 0.0
      %1152 = vmatpush.xpose.msra.mxu0 0.0
      %1153 = vmatpush.xpose.msra.mxu0 0.0
      %1154 = vmatpush.xpose.msra.mxu0 0.0
      %1155 = vmatpush.xpose.msra.mxu0 0.0
      %1156 = vmatpush.xpose.msra.mxu0 0.0
      %1157 = vmatpush.xpose.msra.mxu0 0.0
      %1158 = vmatpush.xpose.msra.mxu0 0.0
      %1159 = vmatpush.xpose.msra.mxu0 0.0
      %1160 = vmatpush.xpose.msra.mxu0 0.0
      %1161 = vmatpush.xpose.msra.mxu0 0.0
      %1162 = vmatpush.xpose.msra.mxu0 0.0
      %1163 = vmatpush.xpose.msra.mxu0 %v1146
      %1164 = vmatmul.f32.gmra.mxu0 %v1143
      %v1165 = vpop.f32.mrf.mxu0
      %v1166 = vadd.f32 0.0, %v1165
      %1167 = vdwg.mxu0
      %v1168 = vmul.f32 %v1166, 0.25
      %v1170 = vperm.slane %v1052, 0
      %v1172 = vadd.f32 %v1168, %v1170
      %vm1173 = vcmask 64512
      %v1174 = vsel %vm1173, %v1172, -inf
      %1175 = vmax.xlane.f32.xlu0 %v1174
      %v1176 = vpop.xlane.xlu0 %1175
      %v1177 = vsub.f32 %v1172, %v1176
      %v1178 = vmul.f32 %v1177, 1.442695
      %v1179 = vpow.pop %v1178
      %v1180 = vsel %vm1173, %v1179, 0.0
      %1181 = vadd.xlane.f32.xlu0 %v1180
      %v1182 = vpop.xlane.xlu0 %1181
      %v1183 = vrcp.pop %v1182
      %v1184 = vmul.f32 %v1179, %v1183
      %v1186 = vsel %vm1173, %v1184, 0
      %1188 = vmatpush.msra.mxu0 0.0
      %1189 = vmatpush.msra.mxu0 0.0
      %1190 = vmatpush.msra.mxu0 0.0
      %1191 = vmatpush.msra.mxu0 0.0
      %1192 = vmatpush.msra.mxu0 0.0
      %1193 = vmatpush.msra.mxu0 0.0
      %1194 = vmatpush.msra.mxu0 0.0
      %1195 = vmatpush.msra.mxu0 0.0
      %1196 = vmatpush.msra.mxu0 0.0
      %1197 = vmatpush.msra.mxu0 0.0
      %1198 = vmatpush.msra.mxu0 0.0
      %1199 = vmatpush.msra.mxu0 0.0
      %1200 = vmatpush.msra.mxu0 0.0
      %1201 = vmatpush.msra.mxu0 0.0
      %1202 = vmatpush.msra.mxu0 0.0
      %1203 = vmatpush.msra.mxu0 %v1139
      %1204 = vmatmul.f32.gmra.mxu0 %v1186
      %v1205 = vpop.f32.mrf.mxu0
      %v1206 = vadd.f32 0.0, %v1205
      %1207 = vdwg.mxu0
      %v1208 = vld [vmem:[%s21] sm:$0xff]
      %v1209 = vld [vmem:[%s21 + $0x8] sm:$0xff]
      %v1211 = vsel %vm1141, %v1206, 0
      %1213 = vmatpush.msra.mxu0 0.0
      %1214 = vmatpush.msra.mxu0 0.0
      %1215 = vmatpush.msra.mxu0 0.0
      %1216 = vmatpush.msra.mxu0 0.0
      %1217 = vmatpush.msra.mxu0 0.0
      %1218 = vmatpush.msra.mxu0 0.0
      %1219 = vmatpush.msra.mxu0 0.0
      %1220 = vmatpush.msra.mxu0 0.0
      %1221 = vmatpush.msra.mxu0 0.0
      %1222 = vmatpush.msra.mxu0 0.0
      %1223 = vmatpush.msra.mxu0 0.0
      %1224 = vmatpush.msra.mxu0 0.0
      %1225 = vmatpush.msra.mxu0 0.0
      %1226 = vmatpush.msra.mxu0 0.0
      %1227 = vmatpush.msra.mxu0 %v1209
      %1228 = vmatpush.msra.mxu0 %v1208
      %1229 = vmatmul.f32.gmra.mxu0 %v1211
      %v1230 = vpop.f32.mrf.mxu0
      %v1231 = vadd.f32 0.0, %v1230
      %1232 = vdwg.mxu0
      %v1234 = vperm.slane %v1053, 0
      %v1236 = vadd.f32 %v1234, %v1231
      %s1237 = scalar_lea.vmem %s15, 32
      %v1238 = vld [vmem:[%s1237] sm:$0xff]
      %v1239 = vld [vmem:[%s1237 + $0x8] sm:$0xff]
      %v1240 = vld [vmem:[%s1237 + $0x10] sm:$0xff]
      %v1241 = vld [vmem:[%s1237 + $0x18] sm:$0xff]
      %s1242 = scalar_lea.vmem %s23, 1
      %v1243 = vld [vmem:[%s1242] sm:$0x1]
      %v1245 = vperm.slane %v1243, 0
      %1247 = vmatpush.msra.mxu0 0.0
      %1248 = vmatpush.msra.mxu0 0.0
      %1249 = vmatpush.msra.mxu0 0.0
      %1250 = vmatpush.msra.mxu0 0.0
      %1251 = vmatpush.msra.mxu0 0.0
      %1252 = vmatpush.msra.mxu0 0.0
      %1253 = vmatpush.msra.mxu0 0.0
      %1254 = vmatpush.msra.mxu0 0.0
      %1255 = vmatpush.msra.mxu0 0.0
      %1256 = vmatpush.msra.mxu0 0.0
      %1257 = vmatpush.msra.mxu0 0.0
      %1258 = vmatpush.msra.mxu0 0.0
      %1259 = vmatpush.msra.mxu0 %v1241
      %1260 = vmatpush.msra.mxu0 %v1240
      %1261 = vmatpush.msra.mxu0 %v1239
      %1262 = vmatpush.msra.mxu0 %v1238
      %1263 = vmatmul.f32.gmra.mxu0 %v1063
      %v1264 = vpop.f32.mrf.mxu0
      %v1265 = vadd.f32 %v1245, %v1264
      %1266 = vdwg.mxu0
      %s1267 = scalar_lea.vmem %s17, 32
      %v1268 = vld [vmem:[%s1267] sm:$0xff]
      %v1269 = vld [vmem:[%s1267 + $0x8] sm:$0xff]
      %v1270 = vld [vmem:[%s1267 + $0x10] sm:$0xff]
      %v1271 = vld [vmem:[%s1267 + $0x18] sm:$0xff]
      %s1272 = scalar_lea.vmem %s25, 1
      %v1273 = vld [vmem:[%s1272] sm:$0x1]
      %v1275 = vperm.slane %v1273, 0
      %1277 = vmatpush.msra.mxu0 0.0
      %1278 = vmatpush.msra.mxu0 0.0
      %1279 = vmatpush.msra.mxu0 0.0
      %1280 = vmatpush.msra.mxu0 0.0
      %1281 = vmatpush.msra.mxu0 0.0
      %1282 = vmatpush.msra.mxu0 0.0
      %1283 = vmatpush.msra.mxu0 0.0
      %1284 = vmatpush.msra.mxu0 0.0
      %1285 = vmatpush.msra.mxu0 0.0
      %1286 = vmatpush.msra.mxu0 0.0
      %1287 = vmatpush.msra.mxu0 0.0
      %1288 = vmatpush.msra.mxu0 0.0
      %1289 = vmatpush.msra.mxu0 %v1271
      %1290 = vmatpush.msra.mxu0 %v1270
      %1291 = vmatpush.msra.mxu0 %v1269
      %1292 = vmatpush.msra.mxu0 %v1268
      %1293 = vmatmul.f32.gmra.mxu0 %v1063
      %v1294 = vpop.f32.mrf.mxu0
      %v1295 = vadd.f32 %v1275, %v1294
      %1296 = vdwg.mxu0
      %s1297 = scalar_lea.vmem %s19, 32
      %v1298 = vld [vmem:[%s1297] sm:$0xff]
      %v1299 = vld [vmem:[%s1297 + $0x8] sm:$0xff]
      %v1300 = vld [vmem:[%s1297 + $0x10] sm:$0xff]
      %v1301 = vld [vmem:[%s1297 + $0x18] sm:$0xff]
      %s1302 = scalar_lea.vmem %s27, 1
      %v1303 = vld [vmem:[%s1302] sm:$0x1]
      %v1305 = vperm.slane %v1303, 0
      %1307 = vmatpush.msra.mxu0 0.0
      %1308 = vmatpush.msra.mxu0 0.0
      %1309 = vmatpush.msra.mxu0 0.0
      %1310 = vmatpush.msra.mxu0 0.0
      %1311 = vmatpush.msra.mxu0 0.0
      %1312 = vmatpush.msra.mxu0 0.0
      %1313 = vmatpush.msra.mxu0 0.0
      %1314 = vmatpush.msra.mxu0 0.0
      %1315 = vmatpush.msra.mxu0 0.0
      %1316 = vmatpush.msra.mxu0 0.0
      %1317 = vmatpush.msra.mxu0 0.0
      %1318 = vmatpush.msra.mxu0 0.0
      %1319 = vmatpush.msra.mxu0 %v1301
      %1320 = vmatpush.msra.mxu0 %v1300
      %1321 = vmatpush.msra.mxu0 %v1299
      %1322 = vmatpush.msra.mxu0 %v1298
      %1323 = vmatmul.f32.gmra.mxu0 %v1063
      %v1324 = vpop.f32.mrf.mxu0
      %v1325 = vadd.f32 %v1305, %v1324
      %1326 = vdwg.mxu0
      %v1328 = vsel %vm1141, %v1265, 0
      %v1331 = vsel %vm1141, %v1295, 0
      %1333 = vmatpush.xpose.msra.mxu0 0.0
      %1334 = vmatpush.xpose.msra.mxu0 0.0
      %1335 = vmatpush.xpose.msra.mxu0 0.0
      %1336 = vmatpush.xpose.msra.mxu0 0.0
      %1337 = vmatpush.xpose.msra.mxu0 0.0
      %1338 = vmatpush.xpose.msra.mxu0 0.0
      %1339 = vmatpush.xpose.msra.mxu0 0.0
      %1340 = vmatpush.xpose.msra.mxu0 0.0
      %1341 = vmatpush.xpose.msra.mxu0 0.0
      %1342 = vmatpush.xpose.msra.mxu0 0.0
      %1343 = vmatpush.xpose.msra.mxu0 0.0
      %1344 = vmatpush.xpose.msra.mxu0 0.0
      %1345 = vmatpush.xpose.msra.mxu0 0.0
      %1346 = vmatpush.xpose.msra.mxu0 0.0
      %1347 = vmatpush.xpose.msra.mxu0 0.0
      %1348 = vmatpush.xpose.msra.mxu0 %v1331
      %1349 = vmatmul.f32.gmra.mxu0 %v1328
      %v1350 = vpop.f32.mrf.mxu0
      %v1351 = vadd.f32 0.0, %v1350
      %1352 = vdwg.mxu0
      %v1353 = vmul.f32 %v1351, 0.25
      %v1354 = vadd.f32 %v1353, %v1170
      %v1355 = vsel %vm1173, %v1354, -inf
      %1356 = vmax.xlane.f32.xlu0 %v1355
      %v1357 = vpop.xlane.xlu0 %1356
      %v1358 = vsub.f32 %v1354, %v1357
      %v1359 = vmul.f32 %v1358, 1.442695
      %v1360 = vpow.pop %v1359
      %v1361 = vsel %vm1173, %v1360, 0.0
      %1362 = vadd.xlane.f32.xlu0 %v1361
      %v1363 = vpop.xlane.xlu0 %1362
      %v1364 = vrcp.pop %v1363
      %v1365 = vmul.f32 %v1360, %v1364
      %v1367 = vsel %vm1173, %v1365, 0
      %1369 = vmatpush.msra.mxu0 0.0
      %1370 = vmatpush.msra.mxu0 0.0
      %1371 = vmatpush.msra.mxu0 0.0
      %1372 = vmatpush.msra.mxu0 0.0
      %1373 = vmatpush.msra.mxu0 0.0
      %1374 = vmatpush.msra.mxu0 0.0
      %1375 = vmatpush.msra.mxu0 0.0
      %1376 = vmatpush.msra.mxu0 0.0
      %1377 = vmatpush.msra.mxu0 0.0
      %1378 = vmatpush.msra.mxu0 0.0
      %1379 = vmatpush.msra.mxu0 0.0
      %1380 = vmatpush.msra.mxu0 0.0
      %1381 = vmatpush.msra.mxu0 0.0
      %1382 = vmatpush.msra.mxu0 0.0
      %1383 = vmatpush.msra.mxu0 0.0
      %1384 = vmatpush.msra.mxu0 %v1325
      %1385 = vmatmul.f32.gmra.mxu0 %v1367
      %v1386 = vpop.f32.mrf.mxu0
      %v1387 = vadd.f32 0.0, %v1386
      %1388 = vdwg.mxu0
      %s1389 = scalar_lea.vmem %s21, 16
      %v1390 = vld [vmem:[%s1389] sm:$0xff]
      %v1391 = vld [vmem:[%s1389 + $0x8] sm:$0xff]
      %v1393 = vsel %vm1141, %v1387, 0
      %1395 = vmatpush.msra.mxu0 0.0
      %1396 = vmatpush.msra.mxu0 0.0
      %1397 = vmatpush.msra.mxu0 0.0
      %1398 = vmatpush.msra.mxu0 0.0
      %1399 = vmatpush.msra.mxu0 0.0
      %1400 = vmatpush.msra.mxu0 0.0
      %1401 = vmatpush.msra.mxu0 0.0
      %1402 = vmatpush.msra.mxu0 0.0
      %1403 = vmatpush.msra.mxu0 0.0
      %1404 = vmatpush.msra.mxu0 0.0
      %1405 = vmatpush.msra.mxu0 0.0
      %1406 = vmatpush.msra.mxu0 0.0
      %1407 = vmatpush.msra.mxu0 0.0
      %1408 = vmatpush.msra.mxu0 0.0
      %1409 = vmatpush.msra.mxu0 %v1391
      %1410 = vmatpush.msra.mxu0 %v1390
      %1411 = vmatmul.f32.gmra.mxu0 %v1393
      %v1412 = vpop.f32.mrf.mxu0
      %v1413 = vadd.f32 0.0, %v1412
      %1414 = vdwg.mxu0
      %v1415 = vadd.f32 %v1236, %v1413
      %v1416 = vadd.f32 %v1051, %v1415
      %v1417 = vld [vmem:[%s31] sm:$0x1]
      %v1418 = vld [vmem:[%s33] sm:$0x1]
      %v1419 = vsel %vm1014, %v1416, 0.0
      %1420 = vadd.xlane.f32.xlu0 %v1419
      %v1421 = vpop.xlane.xlu0 %1420
      %v1422 = vmul.f32 %v1421, %v1024
      %v1423 = vsub.f32 %v1416, %v1422
      %v1424 = vmul.f32 %v1423, %v1423
      %v1425 = vsel %vm1014, %v1424, 0.0
      %1426 = vadd.xlane.f32.xlu0 %v1425
      %v1427 = vpop.xlane.xlu0 %1426
      %v1428 = vmul.f32 %v1427, %v1024
      %v1429 = vadd.f32 %v1428, 1e-12
      %v1430 = vrsqrt.pop %v1429
      %v1431 = vmul.f32 %v1430, %v1429
      %v1432 = vmul.f32 %v1431, %v1430
      %v1433 = vmul.f32 0.5, %v1432
      %v1434 = vsub.f32 1.5, %v1433
      %v1435 = vmul.f32 %v1430, %v1434
      %vm1436 = vweird.f32 %v1429
      %vm1437 = vweird.f32 %v1430
      %vm1438 = vmor %vm1436, %vm1437
      %v1439 = vsel %vm1438, %v1430, %v1435
      %v1440 = vmul.f32 %v1423, %v1439
      %v1442 = vperm.slane %v1417, 0
      %v1444 = vmul.f32 %v1440, %v1442
      %v1446 = vperm.slane %v1418, 0
      %v1448 = vadd.f32 %v1444, %v1446
      %v1449 = vld [vmem:[%s35] sm:$0xff]
      %v1450 = vld [vmem:[%s35 + $0x8] sm:$0xff]
      %v1451 = vld [vmem:[%s35 + $0x10] sm:$0xff]
      %v1452 = vld [vmem:[%s35 + $0x18] sm:$0xff]
      %v1453 = vld [vmem:[%s37] sm:$0x1]
      %v1455 = vperm.slane %v1453, 0
      %v1458 = vsel %vm1014, %v1448, 0
      %1460 = vmatpush.msra.mxu0 0.0
      %1461 = vmatpush.msra.mxu0 0.0
      %1462 = vmatpush.msra.mxu0 0.0
      %1463 = vmatpush.msra.mxu0 0.0
      %1464 = vmatpush.msra.mxu0 0.0
      %1465 = vmatpush.msra.mxu0 0.0
      %1466 = vmatpush.msra.mxu0 0.0
      %1467 = vmatpush.msra.mxu0 0.0
      %1468 = vmatpush.msra.mxu0 0.0
      %1469 = vmatpush.msra.mxu0 0.0
      %1470 = vmatpush.msra.mxu0 0.0
      %1471 = vmatpush.msra.mxu0 0.0
      %1472 = vmatpush.msra.mxu0 %v1452
      %1473 = vmatpush.msra.mxu0 %v1451
      %1474 = vmatpush.msra.mxu0 %v1450
      %1475 = vmatpush.msra.mxu0 %v1449
      %1476 = vmatmul.f32.gmra.mxu0 %v1458
      %v1477 = vpop.f32.mrf.mxu0
      %v1478 = vadd.f32 %v1455, %v1477
      %1479 = vdwg.mxu0
      %v1480 = vmul.f32 %v1478, 0.5
      %v1481 = vmul.f32 %v1478, 0.044715
      %v1482 = vmul.f32 %v1481, %v1478
      %v1483 = vmul.f32 %v1482, %v1478
      %v1484 = vadd.f32 %v1478, %v1483
      %v1485 = vmul.f32 %v1484, 0.7978846
      %v1486 = vtanh.pop %v1485
      %v1487 = vadd.f32 %v1486, 1.0
      %v1488 = vmul.f32 %v1480, %v1487
      %v1489 = vld [vmem:[%s39] sm:$0xff]
      %v1490 = vld [vmem:[%s39 + $0x8] sm:$0xff]
      %v1491 = vld [vmem:[%s39 + $0x10] sm:$0xff]
      %v1492 = vld [vmem:[%s39 + $0x18] sm:$0xff]
      %v1493 = vld [vmem:[%s39 + $0x20] sm:$0xff]
      %v1494 = vld [vmem:[%s39 + $0x28] sm:$0xff]
      %v1495 = vld [vmem:[%s39 + $0x30] sm:$0xff]
      %v1496 = vld [vmem:[%s39 + $0x38] sm:$0xff]
      %v1497 = vld [vmem:[%s41] sm:$0x1]
      %v1499 = vperm.slane %v1497, 0
      %vm1501 = vcmask 523264
      %v1503 = vsel %vm1501, %v1488, 0
      %1505 = vmatpush.msra.mxu0 0.0
      %1506 = vmatpush.msra.mxu0 0.0
      %1507 = vmatpush.msra.mxu0 0.0
      %1508 = vmatpush.msra.mxu0 0.0
      %1509 = vmatpush.msra.mxu0 0.0
      %1510 = vmatpush.msra.mxu0 0.0
      %1511 = vmatpush.msra.mxu0 0.0
      %1512 = vmatpush.msra.mxu0 0.0
      %1513 = vmatpush.msra.mxu0 %v1496
      %1514 = vmatpush.msra.mxu0 %v1495
      %1515 = vmatpush.msra.mxu0 %v1494
      %1516 = vmatpush.msra.mxu0 %v1493
      %1517 = vmatpush.msra.mxu0 %v1492
      %1518 = vmatpush.msra.mxu0 %v1491
      %1519 = vmatpush.msra.mxu0 %v1490
      %1520 = vmatpush.msra.mxu0 %v1489
      %1521 = vmatmul.f32.gmra.mxu0 %v1503
      %v1522 = vpop.f32.mrf.mxu0
      %v1523 = vadd.f32 %v1499, %v1522
      %1524 = vdwg.mxu0
      %v1525 = vadd.f32 %v1448, %v1523
      %v1526 = vld [vmem:[%s43] sm:$0x1]
      %v1527 = vld [vmem:[%s45] sm:$0x1]
      %v1528 = vsel %vm1014, %v1525, 0.0
      %1529 = vadd.xlane.f32.xlu0 %v1528
      %v1530 = vpop.xlane.xlu0 %1529
      %v1531 = vmul.f32 %v1530, %v1024
      %v1532 = vsub.f32 %v1525, %v1531
      %v1533 = vmul.f32 %v1532, %v1532
      %v1534 = vsel %vm1014, %v1533, 0.0
      %1535 = vadd.xlane.f32.xlu0 %v1534
      %v1536 = vpop.xlane.xlu0 %1535
      %v1537 = vmul.f32 %v1536, %v1024
      %v1538 = vadd.f32 %v1537, 1e-12
      %v1539 = vrsqrt.pop %v1538
      %v1540 = vmul.f32 %v1539, %v1538
      %v1541 = vmul.f32 %v1540, %v1539
      %v1542 = vmul.f32 0.5, %v1541
      %v1543 = vsub.f32 1.5, %v1542
      %v1544 = vmul.f32 %v1539, %v1543
      %vm1545 = vweird.f32 %v1538
      %vm1546 = vweird.f32 %v1539
      %vm1547 = vmor %vm1545, %vm1546
      %v1548 = vsel %vm1547, %v1539, %v1544
      %v1549 = vmul.f32 %v1532, %v1548
      %v1551 = vperm.slane %v1526, 0
      %v1553 = vmul.f32 %v1549, %v1551
      %v1555 = vperm.slane %v1527, 0
      %v1557 = vadd.f32 %v1553, %v1555
      %v1558 = vld [vmem:[%s47] sm:$0xff]
      %v1559 = vld [vmem:[%s47 + $0x8] sm:$0xff]
      %v1560 = vld [vmem:[%s47 + $0x10] sm:$0xff]
      %v1561 = vld [vmem:[%s47 + $0x18] sm:$0xff]
      %v1562 = vld [vmem:[%s49] sm:$0x1]
      %v1564 = vperm.slane %v1562, 0
      %v1567 = vsel %vm1014, %v1557, 0
      %1569 = vmatpush.msra.mxu0 0.0
      %1570 = vmatpush.msra.mxu0 0.0
      %1571 = vmatpush.msra.mxu0 0.0
      %1572 = vmatpush.msra.mxu0 0.0
      %1573 = vmatpush.msra.mxu0 0.0
      %1574 = vmatpush.msra.mxu0 0.0
      %1575 = vmatpush.msra.mxu0 0.0
      %1576 = vmatpush.msra.mxu0 0.0
      %1577 = vmatpush.msra.mxu0 0.0
      %1578 = vmatpush.msra.mxu0 0.0
      %1579 = vmatpush.msra.mxu0 0.0
      %1580 = vmatpush.msra.mxu0 0.0
      %1581 = vmatpush.msra.mxu0 %v1561
      %1582 = vmatpush.msra.mxu0 %v1560
      %1583 = vmatpush.msra.mxu0 %v1559
      %1584 = vmatpush.msra.mxu0 %v1558
      %1585 = vmatmul.f32.gmra.mxu0 %v1567
      %v1586 = vpop.f32.mrf.mxu0
      %v1587 = vadd.f32 %v1564, %v1586
      %1588 = vdwg.mxu0
      %v1589 = vmul.f32 %v1587, 0.5
      %v1590 = vmul.f32 %v1587, 0.044715
      %v1591 = vmul.f32 %v1590, %v1587
      %v1592 = vmul.f32 %v1591, %v1587
      %v1593 = vadd.f32 %v1587, %v1592
      %v1594 = vmul.f32 %v1593, 0.7978846
      %v1595 = vtanh.pop %v1594
      %v1596 = vadd.f32 %v1595, 1.0
      %v1597 = vmul.f32 %v1589, %v1596
      %v1598 = vld [vmem:[%s51] sm:$0x1]
      %v1599 = vld [vmem:[%s53] sm:$0x1]
      %v1600 = vsel %vm1014, %v1597, 0.0
      %1601 = vadd.xlane.f32.xlu0 %v1600
      %v1602 = vpop.xlane.xlu0 %1601
      %v1603 = vmul.f32 %v1602, %v1024
      %v1604 = vsub.f32 %v1597, %v1603
      %v1605 = vmul.f32 %v1604, %v1604
      %v1606 = vsel %vm1014, %v1605, 0.0
      %1607 = vadd.xlane.f32.xlu0 %v1606
      %v1608 = vpop.xlane.xlu0 %1607
      %v1609 = vmul.f32 %v1608, %v1024
      %v1610 = vadd.f32 %v1609, 1e-12
      %v1611 = vrsqrt.pop %v1610
      %v1612 = vmul.f32 %v1611, %v1610
      %v1613 = vmul.f32 %v1612, %v1611
      %v1614 = vmul.f32 0.5, %v1613
      %v1615 = vsub.f32 1.5, %v1614
      %v1616 = vmul.f32 %v1611, %v1615
      %vm1617 = vweird.f32 %v1610
      %vm1618 = vweird.f32 %v1611
      %vm1619 = vmor %vm1617, %vm1618
      %v1620 = vsel %vm1619, %v1611, %v1616
      %v1621 = vmul.f32 %v1604, %v1620
      %v1623 = vperm.slane %v1598, 0
      %v1625 = vmul.f32 %v1621, %v1623
      %v1627 = vperm.slane %v1599, 0
      %v1629 = vadd.f32 %v1625, %v1627
      %v1630 = vld [vmem:[%s55] sm:$0xff]
      %v1631 = vld [vmem:[%s55 + $0x8] sm:$0xff]
      %v1632 = vld [vmem:[%s55 + $0x10] sm:$0xff]
      %v1633 = vld [vmem:[%s55 + $0x18] sm:$0xff]
      %v1634 = vld [vmem:[%s57] sm:$0x1]
      %v1636 = vperm.slane %v1634, 0
      %v1639 = vsel %vm1014, %v1629, 0
      %1641 = vmatpush.msra.mxu0 0.0
      %1642 = vmatpush.msra.mxu0 0.0
      %1643 = vmatpush.msra.mxu0 0.0
      %1644 = vmatpush.msra.mxu0 0.0
      %1645 = vmatpush.msra.mxu0 0.0
      %1646 = vmatpush.msra.mxu0 0.0
      %1647 = vmatpush.msra.mxu0 0.0
      %1648 = vmatpush.msra.mxu0 0.0
      %1649 = vmatpush.msra.mxu0 0.0
      %1650 = vmatpush.msra.mxu0 0.0
      %1651 = vmatpush.msra.mxu0 0.0
      %1652 = vmatpush.msra.mxu0 0.0
      %1653 = vmatpush.msra.mxu0 %v1633
      %1654 = vmatpush.msra.mxu0 %v1632
      %1655 = vmatpush.msra.mxu0 %v1631
      %1656 = vmatpush.msra.mxu0 %v1630
      %1657 = vmatmul.f32.gmra.mxu0 %v1639
      %v1658 = vpop.f32.mrf.mxu0
      %v1659 = vadd.f32 %v1636, %v1658
      %1660 = vdwg.mxu0
      %1661 = vst [vmem:[%s962] sm:$0xff] %v1659
      %v1662 = vld [vmem:[%s955] sm:$0xff]
      %1663 = vmax.xlane.f32.xlu0 %v1659
      %v1664 = vpop.xlane.xlu0 %1663
      %v1665 = vsub.f32 %v1659, %v1664
      %v1666 = vmul.f32 %v1665, 1.442695
      %v1667 = vpow.pop %v1666
      %1668 = vadd.xlane.f32.xlu0 %v1667
      %v1669 = vpop.xlane.xlu0 %1668
      %v1670 = vlog2.pop %v1669
      %v1671 = vmul.f32 %v1670, 0.6931472
      %v1672 = vadd.f32 %v1671, %v1664
      %1673 = vset.pattern.permute.xlu0 0
      %1674 = vperm.xlu0 %1673, %v1662
      %v1675 = vpop.permute.xlu0 %1674
      %vm1676 = vcmp.eq.s32.totalorder %v987, %v1675
      %v1677 = vsel %vm1676, 1, 0
      %v1678 = vcvt.s32.f32 %v1677
      %v1679 = vmul.f32 %v1659, %v1678
      %1680 = vadd.xlane.f32.xlu0 %v1679
      %v1681 = vpop.xlane.xlu0 %1680
      %vm1682 = vcmp.ne.s32.totalorder %v1662, 4294967196
      %v1683 = vsel %vm1682, 1, 0
      %v1684 = vcvt.s32.f32 %v1683
      %v1685 = vsub.f32 %v1672, %v1681
      %v1686 = vmul.f32 %v1685, %v1684
      %vm1687 = vcmask 7168
      %v1688 = vsel %vm1687, %v1686, 0.0
      %v1689 = vrot.slane %v1688, 4
      %v1690 = vadd.f32 %v1688, %v1689
      %v1691 = vrot.slane %v1690, 2
      %v1692 = vadd.f32 %v1690, %v1691
      %v1693 = vrot.slane %v1692, 1
      %v1694 = vadd.f32 %v1692, %v1693
      %v1695 = vsel %vm1687, %v1684, 0.0
      %v1696 = vrot.slane %v1695, 4
      %v1697 = vadd.f32 %v1695, %v1696
      %v1698 = vrot.slane %v1697, 2
      %v1699 = vadd.f32 %v1697, %v1698
      %v1700 = vrot.slane %v1699, 1
      %v1701 = vadd.f32 %v1699, %v1700
      %vm1702 = vcmp.eq.s32.totalorder %v987, 0
      %vm1703 = vcmp.eq.s32.totalorder %v987, 1
      %1705 = vset.pattern.permute.xlu0 0
      %1706 = vperm.xlu0 %1705, %v1701
      %v1707 = vpop.permute.xlu0 %1706
      %v1709 = vsel %vm1703, %v1707, 0.0
      %1711 = vset.pattern.permute.xlu0 0
      %1712 = vperm.xlu0 %1711, %v1694
      %v1713 = vpop.permute.xlu0 %1712
      %v1715 = vsel %vm1702, %v1713, %v1709
      %1716 = vst [vmem:[%s965] sm:$0x1] %v1715
      %p1717 = scmp.lt.s32.totalorder %s73, 1
      %s1718 = scalar_select %p1717, %s73, 1
      %s1719 = smul.addr %s1718, 8
      %s1720 = scalar_lea.vmem %s59, %s1719
      %p1721 = scmp.lt.s32.totalorder %s73, 1
      %s1722 = scalar_select %p1721, %s73, 1
      %s1723 = scalar_lea.vmem %s61, %s1722
      // Predicated region
      $region137: #{combined_forward.4} parent=135 // pred_check
        %p1724 = pneg %p715
      $region138: #{combined_forward.4} parent=135 // pred_check_branch
        %1726 = sbr.rel (%p1724) target = $region140
      $region139: #{combined_forward.4} parent=135 // pred_region
        _
      $region140: #{combined_forward.4} parent=135 // pred_fallthru
        _
      // Predicated region
      $region141: #{combined_forward.4} parent=135 // pred_check
        %p1727 = pneg %p741
      $region142: #{combined_forward.4} parent=135 // pred_check_branch
        %1729 = sbr.rel (%p1727) target = $region144
      $region143: #{combined_forward.4} parent=135 // pred_region
        _
      $region144: #{combined_forward.4} parent=135 // pred_fallthru
        _
    $region136: #{combined_forward.4} parent=5 // pred_fallthru
      _
    %p1730 = scmp.le.s32.totalorder 2, %s68
    // Predicated region
    $region145: #{combined_forward.4} parent=5 // pred_check
      %p1731 = pneg %p1730
    $region146: #{combined_forward.4} parent=5 // pred_check_branch
      %1733 = sbr.rel (%p1731) target = $region148
    $region147: #{combined_forward.4} parent=5 // pred_region
      %s1734 = ssub.s32 %s68, 2
      // Predicated region
      $region149: #{combined_forward.4} parent=147 // pred_check
        %p1735 = pneg %p721
      $region150: #{combined_forward.4} parent=147 // pred_check_branch
        %1737 = sbr.rel (%p1735) target = $region152
      $region151: #{combined_forward.4} parent=147 // pred_region
        %p1738 = scmp.lt.s32.totalorder %s74, 1
        %s1739 = scalar_select %p1738, %s74, 1
        %s1740 = smul.addr %s1739, 8
        %s1741 = scalar_lea.vmem %s59, %s1740
      $region152: #{combined_forward.4} parent=147 // pred_fallthru
        _
      // Predicated region
      $region153: #{combined_forward.4} parent=147 // pred_check
        %p1742 = pneg %p747
      $region154: #{combined_forward.4} parent=147 // pred_check_branch
        %1744 = sbr.rel (%p1742) target = $region156
      $region155: #{combined_forward.4} parent=147 // pred_region
        %p1745 = scmp.lt.s32.totalorder %s74, 1
        %s1746 = scalar_select %p1745, %s74, 1
        %s1747 = scalar_lea.vmem %s61, %s1746
      $region156: #{combined_forward.4} parent=147 // pred_fallthru
        _
    $region148: #{combined_forward.4} parent=5 // pred_fallthru
      _
  $region6: #{combined_forward.4} parent=0 // loop_footer
    %s72 = sadd.s32 1, %s68
  $region7: #{combined_forward.4} parent=0 // loop_footer_branch
    %67 = sbr.rel target = $region3
  $region8: #{combined_forward.4} parent=0 // loop_exit
    _

// kernel: combined_forward.5
$region0: #{combined_forward.5}
  #allocation0 [shape = 'u32[]', space=smem, size = 0x4, offset = 0x4, fixed_abs, tag = 'smem constant byte address 0x4 - core index']
  #allocation1 [shape = 'u32[72,128]{1,0:T(1,128)}', space=vmem, size = 0x9000, scoped, tag = 'internal scratch']
  #allocation2 [shape = 'f32[1,1]{1,0:T(1,128)S(1)}', space=vmem, size = 0x200, scoped, tag = 'scoped memory for combined_forward.5']
  %s0 = inlined_call_operand.smem [shape: u32[30], index: -1, kind: input, shape index: {}]
  %s1 = sld [smem:[%s0]]
  %s2 = scalar_lea.smem %s0, 1
  %s3 = sld [smem:[%s2]]
  %s4 = scalar_lea.smem %s0, 2
  %s5 = sld [smem:[%s4]]
  %s6 = scalar_lea.smem %s0, 3
  %s7 = sld [smem:[%s6]]
  %s8 = scalar_lea.smem %s0, 4
  %s9 = sld [smem:[%s8]]
  %s10 = scalar_lea.smem %s0, 5
  %s11 = sld [smem:[%s10]]
  %s12 = scalar_lea.smem %s0, 6
  %s13 = sld [smem:[%s12]]
  %s14 = scalar_lea.smem %s0, 7
  %s15 = sld [smem:[%s14]]
  %s16 = scalar_lea.smem %s0, 8
  %s17 = sld [smem:[%s16]]
  %s18 = scalar_lea.smem %s0, 9
  %s19 = sld [smem:[%s18]]
  %s20 = scalar_lea.smem %s0, 10
  %s21 = sld [smem:[%s20]]
  %s22 = scalar_lea.smem %s0, 11
  %s23 = sld [smem:[%s22]]
  %s24 = scalar_lea.smem %s0, 12
  %s25 = sld [smem:[%s24]]
  %s26 = scalar_lea.smem %s0, 13
  %s27 = sld [smem:[%s26]]
  %s28 = scalar_lea.smem %s0, 14
  %s29 = sld [smem:[%s28]]
  %s30 = scalar_lea.smem %s0, 15
  %s31 = sld [smem:[%s30]]
  %s32 = scalar_lea.smem %s0, 16
  %s33 = sld [smem:[%s32]]
  %s34 = scalar_lea.smem %s0, 17
  %s35 = sld [smem:[%s34]]
  %s36 = scalar_lea.smem %s0, 18
  %s37 = sld [smem:[%s36]]
  %s38 = scalar_lea.smem %s0, 19
  %s39 = sld [smem:[%s38]]
  %s40 = scalar_lea.smem %s0, 20
  %s41 = sld [smem:[%s40]]
  %s42 = scalar_lea.smem %s0, 21
  %s43 = sld [smem:[%s42]]
  %s44 = scalar_lea.smem %s0, 22
  %s45 = sld [smem:[%s44]]
  %s46 = scalar_lea.smem %s0, 23
  %s47 = sld [smem:[%s46]]
  %s48 = scalar_lea.smem %s0, 24
  %s49 = sld [smem:[%s48]]
  %s50 = scalar_lea.smem %s0, 25
  %s51 = sld [smem:[%s50]]
  %s52 = scalar_lea.smem %s0, 26
  %s53 = sld [smem:[%s52]]
  %s54 = scalar_lea.smem %s0, 27
  %s55 = sld [smem:[%s54]]
  %s56 = scalar_lea.smem %s0, 28
  %s57 = sld [smem:[%s56]]
  %s58 = scalar_lea.smem %s0, 29
  %s59 = sld [smem:[%s58]]
  %60 = xla_tuple %s57, %s59
  %s61 = sld [smem:[#allocation0]]
  $region153: #{combined_forward.5} parent=0
    _
  %s63 = ssub.s32 1, %s61
  %s64 = scalar_select 0, %s63, %s61
  %v65 = vstv %s55
  %66 = vst [vmem:[#allocation2] sm:$0x1] %v65
  loop: start=0, step=1, limit=4
  $region2: #{combined_forward.5} parent=0 // loop_pre_header
    _
  $region3: #{combined_forward.5} parent=0 // loop_header
    %s68 = sphi 0, %s72
    %p69 = scmp.ge.s32.totalorder %s68, 4
    %s78 = sphi 0, %s80
    %s81 = sphi 0, %s78
    %s82 = sphi 0, %s81
    %s98 = sphi 0, %s82
    %s104 = sphi 0, %s106
    %s107 = sphi 0, %s104
    %s108 = sphi 0, %s107
    %s124 = sphi 0, %s108
    %s130 = sphi 0, %s132
    %s133 = sphi 0, %s130
    %s134 = sphi 0, %s133
    %s150 = sphi 0, %s134
    %s156 = sphi 0, %s158
    %s159 = sphi 0, %s156
    %s160 = sphi 0, %s159
    %s176 = sphi 0, %s160
    %s180 = sphi 0, %s180
    %s182 = sphi 0, %s180
    %s183 = sphi 0, %s182
    %s197 = sphi 0, %s183
    %s201 = sphi 0, %s201
    %s203 = sphi 0, %s201
    %s204 = sphi 0, %s203
    %s218 = sphi 0, %s204
    %s222 = sphi 0, %s222
    %s224 = sphi 0, %s222
    %s225 = sphi 0, %s224
    %s239 = sphi 0, %s225
    %s243 = sphi 0, %s243
    %s245 = sphi 0, %s243
    %s246 = sphi 0, %s245
    %s260 = sphi 0, %s246
    %s264 = sphi 0, %s264
    %s266 = sphi 0, %s264
    %s267 = sphi 0, %s266
    %s281 = sphi 0, %s267
    %s285 = sphi 0, %s285
    %s287 = sphi 0, %s285
    %s288 = sphi 0, %s287
    %s302 = sphi 0, %s288
    %s306 = sphi 0, %s306
    %s308 = sphi 0, %s306
    %s309 = sphi 0, %s308
    %s323 = sphi 0, %s309
    %s327 = sphi 0, %s327
    %s329 = sphi 0, %s327
    %s330 = sphi 0, %s329
    %s344 = sphi 0, %s330
    %s348 = sphi 0, %s348
    %s350 = sphi 0, %s348
    %s351 = sphi 0, %s350
    %s365 = sphi 0, %s351
    %s369 = sphi 0, %s369
    %s371 = sphi 0, %s369
    %s372 = sphi 0, %s371
    %s386 = sphi 0, %s372
    %s390 = sphi 0, %s390
    %s392 = sphi 0, %s390
    %s393 = sphi 0, %s392
    %s407 = sphi 0, %s393
    %s411 = sphi 0, %s411
    %s413 = sphi 0, %s411
    %s414 = sphi 0, %s413
    %s428 = sphi 0, %s414
    %s432 = sphi 0, %s432
    %s434 = sphi 0, %s432
    %s435 = sphi 0, %s434
    %s449 = sphi 0, %s435
    %s453 = sphi 0, %s453
    %s455 = sphi 0, %s453
    %s456 = sphi 0, %s455
    %s470 = sphi 0, %s456
    %s474 = sphi 0, %s474
    %s476 = sphi 0, %s474
    %s477 = sphi 0, %s476
    %s491 = sphi 0, %s477
    %s495 = sphi 0, %s495
    %s497 = sphi 0, %s495
    %s498 = sphi 0, %s497
    %s512 = sphi 0, %s498
    %s516 = sphi 0, %s516
    %s518 = sphi 0, %s516
    %s519 = sphi 0, %s518
    %s533 = sphi 0, %s519
    %s537 = sphi 0, %s537
    %s539 = sphi 0, %s537
    %s540 = sphi 0, %s539
    %s554 = sphi 0, %s540
    %s558 = sphi 0, %s558
    %s560 = sphi 0, %s558
    %s561 = sphi 0, %s560
    %s575 = sphi 0, %s561
    %s579 = sphi 0, %s579
    %s581 = sphi 0, %s579
    %s582 = sphi 0, %s581
    %s596 = sphi 0, %s582
    %s600 = sphi 0, %s600
    %s602 = sphi 0, %s600
    %s603 = sphi 0, %s602
    %s617 = sphi 0, %s603
    %s621 = sphi 0, %s621
    %s623 = sphi 0, %s621
    %s624 = sphi 0, %s623
    %s638 = sphi 0, %s624
    %s642 = sphi 0, %s642
    %s644 = sphi 0, %s642
    %s645 = sphi 0, %s644
    %s659 = sphi 0, %s645
    %s663 = sphi 0, %s663
    %s665 = sphi 0, %s663
    %s666 = sphi 0, %s665
    %s680 = sphi 0, %s666
    %s686 = sphi 0, %s688
    %s689 = sphi 0, %s686
    %s690 = sphi 0, %s689
    %s706 = sphi 0, %s690
    %s712 = sphi 0, %s714
    %s715 = sphi 0, %s712
    %s716 = sphi 0, %s715
    %s732 = sphi 0, %s716
  $region4: #{combined_forward.5} parent=0 // loop_header_branch
    %71 = sbr.rel (%p69) target = $region8
  $region5: #{combined_forward.5} parent=0 // loop_body
    %s73 = ssub.s32 %s68, 1
    %s74 = ssub.s32 %s68, 2
    %s75 = sadd.s32 %s68, 1
    %s76 = ssub.s32 %s68, %s75
    %p77 = scmp.eq.s32.totalorder %s76, 0
    %s79 = sadd.s32 %s78, 1
    %s80 = scalar_select %p77, %s78, %s79
    %p83 = pneg %p77
    %p84 = scmp.eq.s32.totalorder %s68, 1
    %p85 = por %p83, %p84
    %p86 = scmp.ne.s32.totalorder %s78, %s81
    %p87 = scmp.eq.s32.totalorder %s68, 0
    %p88 = por %p86, %p87
    %p89 = scmp.ne.s32.totalorder %s78, %s81
    %p90 = scmp.eq.s32.totalorder %s73, 1
    %p91 = por %p89, %p90
    %p92 = scmp.ne.s32.totalorder %s81, %s82
    %p93 = scmp.eq.s32.totalorder %s73, 0
    %p94 = por %p92, %p93
    %p95 = scmp.ne.s32.totalorder %s81, %s82
    %p96 = scmp.eq.s32.totalorder %s74, 1
    %p97 = por %p95, %p96
    %p99 = scmp.ne.s32.totalorder %s82, %s98
    %p100 = scmp.eq.s32.totalorder %s74, 0
    %p101 = por %p99, %p100
    %s102 = ssub.s32 %s68, %s75
    %p103 = scmp.eq.s32.totalorder %s102, 0
    %s105 = sadd.s32 %s104, 1
    %s106 = scalar_select %p103, %s104, %s105
    %p109 = pneg %p103
    %p110 = scmp.eq.s32.totalorder %s68, 1
    %p111 = por %p109, %p110
    %p112 = scmp.ne.s32.totalorder %s104, %s107
    %p113 = scmp.eq.s32.totalorder %s68, 0
    %p114 = por %p112, %p113
    %p115 = scmp.ne.s32.totalorder %s104, %s107
    %p116 = scmp.eq.s32.totalorder %s73, 1
    %p117 = por %p115, %p116
    %p118 = scmp.ne.s32.totalorder %s107, %s108
    %p119 = scmp.eq.s32.totalorder %s73, 0
    %p120 = por %p118, %p119
    %p121 = scmp.ne.s32.totalorder %s107, %s108
    %p122 = scmp.eq.s32.totalorder %s74, 1
    %p123 = por %p121, %p122
    %p125 = scmp.ne.s32.totalorder %s108, %s124
    %p126 = scmp.eq.s32.totalorder %s74, 0
    %p127 = por %p125, %p126
    %s128 = ssub.s32 %s68, %s75
    %p129 = scmp.eq.s32.totalorder %s128, 0
    %s131 = sadd.s32 %s130, 1
    %s132 = scalar_select %p129, %s130, %s131
    %p135 = pneg %p129
    %p136 = scmp.eq.s32.totalorder %s68, 1
    %p137 = por %p135, %p136
    %p138 = scmp.ne.s32.totalorder %s130, %s133
    %p139 = scmp.eq.s32.totalorder %s68, 0
    %p140 = por %p138, %p139
    %p141 = scmp.ne.s32.totalorder %s130, %s133
    %p142 = scmp.eq.s32.totalorder %s73, 1
    %p143 = por %p141, %p142
    %p144 = scmp.ne.s32.totalorder %s133, %s134
    %p145 = scmp.eq.s32.totalorder %s73, 0
    %p146 = por %p144, %p145
    %p147 = scmp.ne.s32.totalorder %s133, %s134
    %p148 = scmp.eq.s32.totalorder %s74, 1
    %p149 = por %p147, %p148
    %p151 = scmp.ne.s32.totalorder %s134, %s150
    %p152 = scmp.eq.s32.totalorder %s74, 0
    %p153 = por %p151, %p152
    %s154 = ssub.s32 %s68, %s75
    %p155 = scmp.eq.s32.totalorder %s154, 0
    %s157 = sadd.s32 %s156, 1
    %s158 = scalar_select %p155, %s156, %s157
    %p161 = pneg %p155
    %p162 = scmp.eq.s32.totalorder %s68, 1
    %p163 = por %p161, %p162
    %p164 = scmp.ne.s32.totalorder %s156, %s159
    %p165 = scmp.eq.s32.totalorder %s68, 0
    %p166 = por %p164, %p165
    %p167 = scmp.ne.s32.totalorder %s156, %s159
    %p168 = scmp.eq.s32.totalorder %s73, 1
    %p169 = por %p167, %p168
    %p170 = scmp.ne.s32.totalorder %s159, %s160
    %p171 = scmp.eq.s32.totalorder %s73, 0
    %p172 = por %p170, %p171
    %p173 = scmp.ne.s32.totalorder %s159, %s160
    %p174 = scmp.eq.s32.totalorder %s74, 1
    %p175 = por %p173, %p174
    %p177 = scmp.ne.s32.totalorder %s160, %s176
    %p178 = scmp.eq.s32.totalorder %s74, 0
    %p179 = por %p177, %p178
    %s181 = sadd.s32 %s180, 1
    %p184 = scmp.eq.s32.totalorder %s68, 1
    %p185 = scmp.ne.s32.totalorder %s180, %s182
    %p186 = scmp.eq.s32.totalorder %s68, 0
    %p187 = por %p185, %p186
    %p188 = scmp.ne.s32.totalorder %s180, %s182
    %p189 = scmp.eq.s32.totalorder %s73, 1
    %p190 = por %p188, %p189
    %p191 = scmp.ne.s32.totalorder %s182, %s183
    %p192 = scmp.eq.s32.totalorder %s73, 0
    %p193 = por %p191, %p192
    %p194 = scmp.ne.s32.totalorder %s182, %s183
    %p195 = scmp.eq.s32.totalorder %s74, 1
    %p196 = por %p194, %p195
    %p198 = scmp.ne.s32.totalorder %s183, %s197
    %p199 = scmp.eq.s32.totalorder %s74, 0
    %p200 = por %p198, %p199
    %s202 = sadd.s32 %s201, 1
    %p205 = scmp.eq.s32.totalorder %s68, 1
    %p206 = scmp.ne.s32.totalorder %s201, %s203
    %p207 = scmp.eq.s32.totalorder %s68, 0
    %p208 = por %p206, %p207
    %p209 = scmp.ne.s32.totalorder %s201, %s203
    %p210 = scmp.eq.s32.totalorder %s73, 1
    %p211 = por %p209, %p210
    %p212 = scmp.ne.s32.totalorder %s203, %s204
    %p213 = scmp.eq.s32.totalorder %s73, 0
    %p214 = por %p212, %p213
    %p215 = scmp.ne.s32.totalorder %s203, %s204
    %p216 = scmp.eq.s32.totalorder %s74, 1
    %p217 = por %p215, %p216
    %p219 = scmp.ne.s32.totalorder %s204, %s218
    %p220 = scmp.eq.s32.totalorder %s74, 0
    %p221 = por %p219, %p220
    %s223 = sadd.s32 %s222, 1
    %p226 = scmp.eq.s32.totalorder %s68, 1
    %p227 = scmp.ne.s32.totalorder %s222, %s224
    %p228 = scmp.eq.s32.totalorder %s68, 0
    %p229 = por %p227, %p228
    %p230 = scmp.ne.s32.totalorder %s222, %s224
    %p231 = scmp.eq.s32.totalorder %s73, 1
    %p232 = por %p230, %p231
    %p233 = scmp.ne.s32.totalorder %s224, %s225
    %p234 = scmp.eq.s32.totalorder %s73, 0
    %p235 = por %p233, %p234
    %p236 = scmp.ne.s32.totalorder %s224, %s225
    %p237 = scmp.eq.s32.totalorder %s74, 1
    %p238 = por %p236, %p237
    %p240 = scmp.ne.s32.totalorder %s225, %s239
    %p241 = scmp.eq.s32.totalorder %s74, 0
    %p242 = por %p240, %p241
    %s244 = sadd.s32 %s243, 1
    %p247 = scmp.eq.s32.totalorder %s68, 1
    %p248 = scmp.ne.s32.totalorder %s243, %s245
    %p249 = scmp.eq.s32.totalorder %s68, 0
    %p250 = por %p248, %p249
    %p251 = scmp.ne.s32.totalorder %s243, %s245
    %p252 = scmp.eq.s32.totalorder %s73, 1
    %p253 = por %p251, %p252
    %p254 = scmp.ne.s32.totalorder %s245, %s246
    %p255 = scmp.eq.s32.totalorder %s73, 0
    %p256 = por %p254, %p255
    %p257 = scmp.ne.s32.totalorder %s245, %s246
    %p258 = scmp.eq.s32.totalorder %s74, 1
    %p259 = por %p257, %p258
    %p261 = scmp.ne.s32.totalorder %s246, %s260
    %p262 = scmp.eq.s32.totalorder %s74, 0
    %p263 = por %p261, %p262
    %s265 = sadd.s32 %s264, 1
    %p268 = scmp.eq.s32.totalorder %s68, 1
    %p269 = scmp.ne.s32.totalorder %s264, %s266
    %p270 = scmp.eq.s32.totalorder %s68, 0
    %p271 = por %p269, %p270
    %p272 = scmp.ne.s32.totalorder %s264, %s266
    %p273 = scmp.eq.s32.totalorder %s73, 1
    %p274 = por %p272, %p273
    %p275 = scmp.ne.s32.totalorder %s266, %s267
    %p276 = scmp.eq.s32.totalorder %s73, 0
    %p277 = por %p275, %p276
    %p278 = scmp.ne.s32.totalorder %s266, %s267
    %p279 = scmp.eq.s32.totalorder %s74, 1
    %p280 = por %p278, %p279
    %p282 = scmp.ne.s32.totalorder %s267, %s281
    %p283 = scmp.eq.s32.totalorder %s74, 0
    %p284 = por %p282, %p283
    %s286 = sadd.s32 %s285, 1
    %p289 = scmp.eq.s32.totalorder %s68, 1
    %p290 = scmp.ne.s32.totalorder %s285, %s287
    %p291 = scmp.eq.s32.totalorder %s68, 0
    %p292 = por %p290, %p291
    %p293 = scmp.ne.s32.totalorder %s285, %s287
    %p294 = scmp.eq.s32.totalorder %s73, 1
    %p295 = por %p293, %p294
    %p296 = scmp.ne.s32.totalorder %s287, %s288
    %p297 = scmp.eq.s32.totalorder %s73, 0
    %p298 = por %p296, %p297
    %p299 = scmp.ne.s32.totalorder %s287, %s288
    %p300 = scmp.eq.s32.totalorder %s74, 1
    %p301 = por %p299, %p300
    %p303 = scmp.ne.s32.totalorder %s288, %s302
    %p304 = scmp.eq.s32.totalorder %s74, 0
    %p305 = por %p303, %p304
    %s307 = sadd.s32 %s306, 1
    %p310 = scmp.eq.s32.totalorder %s68, 1
    %p311 = scmp.ne.s32.totalorder %s306, %s308
    %p312 = scmp.eq.s32.totalorder %s68, 0
    %p313 = por %p311, %p312
    %p314 = scmp.ne.s32.totalorder %s306, %s308
    %p315 = scmp.eq.s32.totalorder %s73, 1
    %p316 = por %p314, %p315
    %p317 = scmp.ne.s32.totalorder %s308, %s309
    %p318 = scmp.eq.s32.totalorder %s73, 0
    %p319 = por %p317, %p318
    %p320 = scmp.ne.s32.totalorder %s308, %s309
    %p321 = scmp.eq.s32.totalorder %s74, 1
    %p322 = por %p320, %p321
    %p324 = scmp.ne.s32.totalorder %s309, %s323
    %p325 = scmp.eq.s32.totalorder %s74, 0
    %p326 = por %p324, %p325
    %s328 = sadd.s32 %s327, 1
    %p331 = scmp.eq.s32.totalorder %s68, 1
    %p332 = scmp.ne.s32.totalorder %s327, %s329
    %p333 = scmp.eq.s32.totalorder %s68, 0
    %p334 = por %p332, %p333
    %p335 = scmp.ne.s32.totalorder %s327, %s329
    %p336 = scmp.eq.s32.totalorder %s73, 1
    %p337 = por %p335, %p336
    %p338 = scmp.ne.s32.totalorder %s329, %s330
    %p339 = scmp.eq.s32.totalorder %s73, 0
    %p340 = por %p338, %p339
    %p341 = scmp.ne.s32.totalorder %s329, %s330
    %p342 = scmp.eq.s32.totalorder %s74, 1
    %p343 = por %p341, %p342
    %p345 = scmp.ne.s32.totalorder %s330, %s344
    %p346 = scmp.eq.s32.totalorder %s74, 0
    %p347 = por %p345, %p346
    %s349 = sadd.s32 %s348, 1
    %p352 = scmp.eq.s32.totalorder %s68, 1
    %p353 = scmp.ne.s32.totalorder %s348, %s350
    %p354 = scmp.eq.s32.totalorder %s68, 0
    %p355 = por %p353, %p354
    %p356 = scmp.ne.s32.totalorder %s348, %s350
    %p357 = scmp.eq.s32.totalorder %s73, 1
    %p358 = por %p356, %p357
    %p359 = scmp.ne.s32.totalorder %s350, %s351
    %p360 = scmp.eq.s32.totalorder %s73, 0
    %p361 = por %p359, %p360
    %p362 = scmp.ne.s32.totalorder %s350, %s351
    %p363 = scmp.eq.s32.totalorder %s74, 1
    %p364 = por %p362, %p363
    %p366 = scmp.ne.s32.totalorder %s351, %s365
    %p367 = scmp.eq.s32.totalorder %s74, 0
    %p368 = por %p366, %p367
    %s370 = sadd.s32 %s369, 1
    %p373 = scmp.eq.s32.totalorder %s68, 1
    %p374 = scmp.ne.s32.totalorder %s369, %s371
    %p375 = scmp.eq.s32.totalorder %s68, 0
    %p376 = por %p374, %p375
    %p377 = scmp.ne.s32.totalorder %s369, %s371
    %p378 = scmp.eq.s32.totalorder %s73, 1
    %p379 = por %p377, %p378
    %p380 = scmp.ne.s32.totalorder %s371, %s372
    %p381 = scmp.eq.s32.totalorder %s73, 0
    %p382 = por %p380, %p381
    %p383 = scmp.ne.s32.totalorder %s371, %s372
    %p384 = scmp.eq.s32.totalorder %s74, 1
    %p385 = por %p383, %p384
    %p387 = scmp.ne.s32.totalorder %s372, %s386
    %p388 = scmp.eq.s32.totalorder %s74, 0
    %p389 = por %p387, %p388
    %s391 = sadd.s32 %s390, 1
    %p394 = scmp.eq.s32.totalorder %s68, 1
    %p395 = scmp.ne.s32.totalorder %s390, %s392
    %p396 = scmp.eq.s32.totalorder %s68, 0
    %p397 = por %p395, %p396
    %p398 = scmp.ne.s32.totalorder %s390, %s392
    %p399 = scmp.eq.s32.totalorder %s73, 1
    %p400 = por %p398, %p399
    %p401 = scmp.ne.s32.totalorder %s392, %s393
    %p402 = scmp.eq.s32.totalorder %s73, 0
    %p403 = por %p401, %p402
    %p404 = scmp.ne.s32.totalorder %s392, %s393
    %p405 = scmp.eq.s32.totalorder %s74, 1
    %p406 = por %p404, %p405
    %p408 = scmp.ne.s32.totalorder %s393, %s407
    %p409 = scmp.eq.s32.totalorder %s74, 0
    %p410 = por %p408, %p409
    %s412 = sadd.s32 %s411, 1
    %p415 = scmp.eq.s32.totalorder %s68, 1
    %p416 = scmp.ne.s32.totalorder %s411, %s413
    %p417 = scmp.eq.s32.totalorder %s68, 0
    %p418 = por %p416, %p417
    %p419 = scmp.ne.s32.totalorder %s411, %s413
    %p420 = scmp.eq.s32.totalorder %s73, 1
    %p421 = por %p419, %p420
    %p422 = scmp.ne.s32.totalorder %s413, %s414
    %p423 = scmp.eq.s32.totalorder %s73, 0
    %p424 = por %p422, %p423
    %p425 = scmp.ne.s32.totalorder %s413, %s414
    %p426 = scmp.eq.s32.totalorder %s74, 1
    %p427 = por %p425, %p426
    %p429 = scmp.ne.s32.totalorder %s414, %s428
    %p430 = scmp.eq.s32.totalorder %s74, 0
    %p431 = por %p429, %p430
    %s433 = sadd.s32 %s432, 1
    %p436 = scmp.eq.s32.totalorder %s68, 1
    %p437 = scmp.ne.s32.totalorder %s432, %s434
    %p438 = scmp.eq.s32.totalorder %s68, 0
    %p439 = por %p437, %p438
    %p440 = scmp.ne.s32.totalorder %s432, %s434
    %p441 = scmp.eq.s32.totalorder %s73, 1
    %p442 = por %p440, %p441
    %p443 = scmp.ne.s32.totalorder %s434, %s435
    %p444 = scmp.eq.s32.totalorder %s73, 0
    %p445 = por %p443, %p444
    %p446 = scmp.ne.s32.totalorder %s434, %s435
    %p447 = scmp.eq.s32.totalorder %s74, 1
    %p448 = por %p446, %p447
    %p450 = scmp.ne.s32.totalorder %s435, %s449
    %p451 = scmp.eq.s32.totalorder %s74, 0
    %p452 = por %p450, %p451
    %s454 = sadd.s32 %s453, 1
    %p457 = scmp.eq.s32.totalorder %s68, 1
    %p458 = scmp.ne.s32.totalorder %s453, %s455
    %p459 = scmp.eq.s32.totalorder %s68, 0
    %p460 = por %p458, %p459
    %p461 = scmp.ne.s32.totalorder %s453, %s455
    %p462 = scmp.eq.s32.totalorder %s73, 1
    %p463 = por %p461, %p462
    %p464 = scmp.ne.s32.totalorder %s455, %s456
    %p465 = scmp.eq.s32.totalorder %s73, 0
    %p466 = por %p464, %p465
    %p467 = scmp.ne.s32.totalorder %s455, %s456
    %p468 = scmp.eq.s32.totalorder %s74, 1
    %p469 = por %p467, %p468
    %p471 = scmp.ne.s32.totalorder %s456, %s470
    %p472 = scmp.eq.s32.totalorder %s74, 0
    %p473 = por %p471, %p472
    %s475 = sadd.s32 %s474, 1
    %p478 = scmp.eq.s32.totalorder %s68, 1
    %p479 = scmp.ne.s32.totalorder %s474, %s476
    %p480 = scmp.eq.s32.totalorder %s68, 0
    %p481 = por %p479, %p480
    %p482 = scmp.ne.s32.totalorder %s474, %s476
    %p483 = scmp.eq.s32.totalorder %s73, 1
    %p484 = por %p482, %p483
    %p485 = scmp.ne.s32.totalorder %s476, %s477
    %p486 = scmp.eq.s32.totalorder %s73, 0
    %p487 = por %p485, %p486
    %p488 = scmp.ne.s32.totalorder %s476, %s477
    %p489 = scmp.eq.s32.totalorder %s74, 1
    %p490 = por %p488, %p489
    %p492 = scmp.ne.s32.totalorder %s477, %s491
    %p493 = scmp.eq.s32.totalorder %s74, 0
    %p494 = por %p492, %p493
    %s496 = sadd.s32 %s495, 1
    %p499 = scmp.eq.s32.totalorder %s68, 1
    %p500 = scmp.ne.s32.totalorder %s495, %s497
    %p501 = scmp.eq.s32.totalorder %s68, 0
    %p502 = por %p500, %p501
    %p503 = scmp.ne.s32.totalorder %s495, %s497
    %p504 = scmp.eq.s32.totalorder %s73, 1
    %p505 = por %p503, %p504
    %p506 = scmp.ne.s32.totalorder %s497, %s498
    %p507 = scmp.eq.s32.totalorder %s73, 0
    %p508 = por %p506, %p507
    %p509 = scmp.ne.s32.totalorder %s497, %s498
    %p510 = scmp.eq.s32.totalorder %s74, 1
    %p511 = por %p509, %p510
    %p513 = scmp.ne.s32.totalorder %s498, %s512
    %p514 = scmp.eq.s32.totalorder %s74, 0
    %p515 = por %p513, %p514
    %s517 = sadd.s32 %s516, 1
    %p520 = scmp.eq.s32.totalorder %s68, 1
    %p521 = scmp.ne.s32.totalorder %s516, %s518
    %p522 = scmp.eq.s32.totalorder %s68, 0
    %p523 = por %p521, %p522
    %p524 = scmp.ne.s32.totalorder %s516, %s518
    %p525 = scmp.eq.s32.totalorder %s73, 1
    %p526 = por %p524, %p525
    %p527 = scmp.ne.s32.totalorder %s518, %s519
    %p528 = scmp.eq.s32.totalorder %s73, 0
    %p529 = por %p527, %p528
    %p530 = scmp.ne.s32.totalorder %s518, %s519
    %p531 = scmp.eq.s32.totalorder %s74, 1
    %p532 = por %p530, %p531
    %p534 = scmp.ne.s32.totalorder %s519, %s533
    %p535 = scmp.eq.s32.totalorder %s74, 0
    %p536 = por %p534, %p535
    %s538 = sadd.s32 %s537, 1
    %p541 = scmp.eq.s32.totalorder %s68, 1
    %p542 = scmp.ne.s32.totalorder %s537, %s539
    %p543 = scmp.eq.s32.totalorder %s68, 0
    %p544 = por %p542, %p543
    %p545 = scmp.ne.s32.totalorder %s537, %s539
    %p546 = scmp.eq.s32.totalorder %s73, 1
    %p547 = por %p545, %p546
    %p548 = scmp.ne.s32.totalorder %s539, %s540
    %p549 = scmp.eq.s32.totalorder %s73, 0
    %p550 = por %p548, %p549
    %p551 = scmp.ne.s32.totalorder %s539, %s540
    %p552 = scmp.eq.s32.totalorder %s74, 1
    %p553 = por %p551, %p552
    %p555 = scmp.ne.s32.totalorder %s540, %s554
    %p556 = scmp.eq.s32.totalorder %s74, 0
    %p557 = por %p555, %p556
    %s559 = sadd.s32 %s558, 1
    %p562 = scmp.eq.s32.totalorder %s68, 1
    %p563 = scmp.ne.s32.totalorder %s558, %s560
    %p564 = scmp.eq.s32.totalorder %s68, 0
    %p565 = por %p563, %p564
    %p566 = scmp.ne.s32.totalorder %s558, %s560
    %p567 = scmp.eq.s32.totalorder %s73, 1
    %p568 = por %p566, %p567
    %p569 = scmp.ne.s32.totalorder %s560, %s561
    %p570 = scmp.eq.s32.totalorder %s73, 0
    %p571 = por %p569, %p570
    %p572 = scmp.ne.s32.totalorder %s560, %s561
    %p573 = scmp.eq.s32.totalorder %s74, 1
    %p574 = por %p572, %p573
    %p576 = scmp.ne.s32.totalorder %s561, %s575
    %p577 = scmp.eq.s32.totalorder %s74, 0
    %p578 = por %p576, %p577
    %s580 = sadd.s32 %s579, 1
    %p583 = scmp.eq.s32.totalorder %s68, 1
    %p584 = scmp.ne.s32.totalorder %s579, %s581
    %p585 = scmp.eq.s32.totalorder %s68, 0
    %p586 = por %p584, %p585
    %p587 = scmp.ne.s32.totalorder %s579, %s581
    %p588 = scmp.eq.s32.totalorder %s73, 1
    %p589 = por %p587, %p588
    %p590 = scmp.ne.s32.totalorder %s581, %s582
    %p591 = scmp.eq.s32.totalorder %s73, 0
    %p592 = por %p590, %p591
    %p593 = scmp.ne.s32.totalorder %s581, %s582
    %p594 = scmp.eq.s32.totalorder %s74, 1
    %p595 = por %p593, %p594
    %p597 = scmp.ne.s32.totalorder %s582, %s596
    %p598 = scmp.eq.s32.totalorder %s74, 0
    %p599 = por %p597, %p598
    %s601 = sadd.s32 %s600, 1
    %p604 = scmp.eq.s32.totalorder %s68, 1
    %p605 = scmp.ne.s32.totalorder %s600, %s602
    %p606 = scmp.eq.s32.totalorder %s68, 0
    %p607 = por %p605, %p606
    %p608 = scmp.ne.s32.totalorder %s600, %s602
    %p609 = scmp.eq.s32.totalorder %s73, 1
    %p610 = por %p608, %p609
    %p611 = scmp.ne.s32.totalorder %s602, %s603
    %p612 = scmp.eq.s32.totalorder %s73, 0
    %p613 = por %p611, %p612
    %p614 = scmp.ne.s32.totalorder %s602, %s603
    %p615 = scmp.eq.s32.totalorder %s74, 1
    %p616 = por %p614, %p615
    %p618 = scmp.ne.s32.totalorder %s603, %s617
    %p619 = scmp.eq.s32.totalorder %s74, 0
    %p620 = por %p618, %p619
    %s622 = sadd.s32 %s621, 1
    %p625 = scmp.eq.s32.totalorder %s68, 1
    %p626 = scmp.ne.s32.totalorder %s621, %s623
    %p627 = scmp.eq.s32.totalorder %s68, 0
    %p628 = por %p626, %p627
    %p629 = scmp.ne.s32.totalorder %s621, %s623
    %p630 = scmp.eq.s32.totalorder %s73, 1
    %p631 = por %p629, %p630
    %p632 = scmp.ne.s32.totalorder %s623, %s624
    %p633 = scmp.eq.s32.totalorder %s73, 0
    %p634 = por %p632, %p633
    %p635 = scmp.ne.s32.totalorder %s623, %s624
    %p636 = scmp.eq.s32.totalorder %s74, 1
    %p637 = por %p635, %p636
    %p639 = scmp.ne.s32.totalorder %s624, %s638
    %p640 = scmp.eq.s32.totalorder %s74, 0
    %p641 = por %p639, %p640
    %s643 = sadd.s32 %s642, 1
    %p646 = scmp.eq.s32.totalorder %s68, 1
    %p647 = scmp.ne.s32.totalorder %s642, %s644
    %p648 = scmp.eq.s32.totalorder %s68, 0
    %p649 = por %p647, %p648
    %p650 = scmp.ne.s32.totalorder %s642, %s644
    %p651 = scmp.eq.s32.totalorder %s73, 1
    %p652 = por %p650, %p651
    %p653 = scmp.ne.s32.totalorder %s644, %s645
    %p654 = scmp.eq.s32.totalorder %s73, 0
    %p655 = por %p653, %p654
    %p656 = scmp.ne.s32.totalorder %s644, %s645
    %p657 = scmp.eq.s32.totalorder %s74, 1
    %p658 = por %p656, %p657
    %p660 = scmp.ne.s32.totalorder %s645, %s659
    %p661 = scmp.eq.s32.totalorder %s74, 0
    %p662 = por %p660, %p661
    %s664 = sadd.s32 %s663, 1
    %p667 = scmp.eq.s32.totalorder %s68, 1
    %p668 = scmp.ne.s32.totalorder %s663, %s665
    %p669 = scmp.eq.s32.totalorder %s68, 0
    %p670 = por %p668, %p669
    %p671 = scmp.ne.s32.totalorder %s663, %s665
    %p672 = scmp.eq.s32.totalorder %s73, 1
    %p673 = por %p671, %p672
    %p674 = scmp.ne.s32.totalorder %s665, %s666
    %p675 = scmp.eq.s32.totalorder %s73, 0
    %p676 = por %p674, %p675
    %p677 = scmp.ne.s32.totalorder %s665, %s666
    %p678 = scmp.eq.s32.totalorder %s74, 1
    %p679 = por %p677, %p678
    %p681 = scmp.ne.s32.totalorder %s666, %s680
    %p682 = scmp.eq.s32.totalorder %s74, 0
    %p683 = por %p681, %p682
    %s684 = ssub.s32 %s68, %s75
    %p685 = scmp.eq.s32.totalorder %s684, 0
    %s687 = sadd.s32 %s686, 1
    %s688 = scalar_select %p685, %s686, %s687
    %p691 = pneg %p685
    %p692 = scmp.eq.s32.totalorder %s68, 1
    %p693 = por %p691, %p692
    %p694 = scmp.ne.s32.totalorder %s686, %s689
    %p695 = scmp.eq.s32.totalorder %s68, 0
    %p696 = por %p694, %p695
    %p697 = scmp.ne.s32.totalorder %s686, %s689
    %p698 = scmp.eq.s32.totalorder %s73, 1
    %p699 = por %p697, %p698
    %p700 = scmp.ne.s32.totalorder %s689, %s690
    %p701 = scmp.eq.s32.totalorder %s73, 0
    %p702 = por %p700, %p701
    %p703 = scmp.ne.s32.totalorder %s689, %s690
    %p704 = scmp.eq.s32.totalorder %s74, 1
    %p705 = por %p703, %p704
    %p707 = scmp.ne.s32.totalorder %s690, %s706
    %p708 = scmp.eq.s32.totalorder %s74, 0
    %p709 = por %p707, %p708
    %s710 = ssub.s32 %s68, %s75
    %p711 = scmp.eq.s32.totalorder %s710, 0
    %s713 = sadd.s32 %s712, 1
    %s714 = scalar_select %p711, %s712, %s713
    %p717 = pneg %p711
    %p718 = scmp.eq.s32.totalorder %s68, 1
    %p719 = por %p717, %p718
    %p720 = scmp.ne.s32.totalorder %s712, %s715
    %p721 = scmp.eq.s32.totalorder %s68, 0
    %p722 = por %p720, %p721
    %p723 = scmp.ne.s32.totalorder %s712, %s715
    %p724 = scmp.eq.s32.totalorder %s73, 1
    %p725 = por %p723, %p724
    %p726 = scmp.ne.s32.totalorder %s715, %s716
    %p727 = scmp.eq.s32.totalorder %s73, 0
    %p728 = por %p726, %p727
    %p729 = scmp.ne.s32.totalorder %s715, %s716
    %p730 = scmp.eq.s32.totalorder %s74, 1
    %p731 = por %p729, %p730
    %p733 = scmp.ne.s32.totalorder %s716, %s732
    %p734 = scmp.eq.s32.totalorder %s74, 0
    %p735 = por %p733, %p734
    %p736 = scmp.le.s32.totalorder 1, %s68
    %p737 = scmp.lt.s32.totalorder %s68, 3
    %p738 = pnand %p736, %p737
    %p739 = pneg %p738
    // Predicated region
    $region9: #{combined_forward.5} parent=5 // pred_check
      _
    $region10: #{combined_forward.5} parent=5 // pred_check_branch
      %741 = sbr.rel (%p738) target = $region12
    $region11: #{combined_forward.5} parent=5 // pred_region
      %s742 = ssub.s32 %s68, 1
      // Predicated region
      $region13: #{combined_forward.5} parent=11 // pred_check
        %p743 = pneg %p193
      $region14: #{combined_forward.5} parent=11 // pred_check_branch
        %745 = sbr.rel (%p743) target = $region16
      $region15: #{combined_forward.5} parent=11 // pred_region
        _
      $region16: #{combined_forward.5} parent=11 // pred_fallthru
        _
      // Predicated region
      $region17: #{combined_forward.5} parent=11 // pred_check
        %p746 = pneg %p214
      $region18: #{combined_forward.5} parent=11 // pred_check_branch
        %748 = sbr.rel (%p746) target = $region20
      $region19: #{combined_forward.5} parent=11 // pred_region
        _
      $region20: #{combined_forward.5} parent=11 // pred_fallthru
        _
      // Predicated region
      $region21: #{combined_forward.5} parent=11 // pred_check
        %p749 = pneg %p235
      $region22: #{combined_forward.5} parent=11 // pred_check_branch
        %751 = sbr.rel (%p749) target = $region24
      $region23: #{combined_forward.5} parent=11 // pred_region
        _
      $region24: #{combined_forward.5} parent=11 // pred_fallthru
        _
      // Predicated region
      $region25: #{combined_forward.5} parent=11 // pred_check
        %p752 = pneg %p256
      $region26: #{combined_forward.5} parent=11 // pred_check_branch
        %754 = sbr.rel (%p752) target = $region28
      $region27: #{combined_forward.5} parent=11 // pred_region
        _
      $region28: #{combined_forward.5} parent=11 // pred_fallthru
        _
      // Predicated region
      $region29: #{combined_forward.5} parent=11 // pred_check
        %p755 = pneg %p277
      $region30: #{combined_forward.5} parent=11 // pred_check_branch
        %757 = sbr.rel (%p755) target = $region32
      $region31: #{combined_forward.5} parent=11 // pred_region
        _
      $region32: #{combined_forward.5} parent=11 // pred_fallthru
        _
      // Predicated region
      $region33: #{combined_forward.5} parent=11 // pred_check
        %p758 = pneg %p298
      $region34: #{combined_forward.5} parent=11 // pred_check_branch
        %760 = sbr.rel (%p758) target = $region36
      $region35: #{combined_forward.5} parent=11 // pred_region
        _
      $region36: #{combined_forward.5} parent=11 // pred_fallthru
        _
      // Predicated region
      $region37: #{combined_forward.5} parent=11 // pred_check
        %p761 = pneg %p319
      $region38: #{combined_forward.5} parent=11 // pred_check_branch
        %763 = sbr.rel (%p761) target = $region40
      $region39: #{combined_forward.5} parent=11 // pred_region
        _
      $region40: #{combined_forward.5} parent=11 // pred_fallthru
        _
      // Predicated region
      $region41: #{combined_forward.5} parent=11 // pred_check
        %p764 = pneg %p340
      $region42: #{combined_forward.5} parent=11 // pred_check_branch
        %766 = sbr.rel (%p764) target = $region44
      $region43: #{combined_forward.5} parent=11 // pred_region
        _
      $region44: #{combined_forward.5} parent=11 // pred_fallthru
        _
      // Predicated region
      $region45: #{combined_forward.5} parent=11 // pred_check
        %p767 = pneg %p361
      $region46: #{combined_forward.5} parent=11 // pred_check_branch
        %769 = sbr.rel (%p767) target = $region48
      $region47: #{combined_forward.5} parent=11 // pred_region
        _
      $region48: #{combined_forward.5} parent=11 // pred_fallthru
        _
      // Predicated region
      $region49: #{combined_forward.5} parent=11 // pred_check
        %p770 = pneg %p382
      $region50: #{combined_forward.5} parent=11 // pred_check_branch
        %772 = sbr.rel (%p770) target = $region52
      $region51: #{combined_forward.5} parent=11 // pred_region
        _
      $region52: #{combined_forward.5} parent=11 // pred_fallthru
        _
      // Predicated region
      $region53: #{combined_forward.5} parent=11 // pred_check
        %p773 = pneg %p403
      $region54: #{combined_forward.5} parent=11 // pred_check_branch
        %775 = sbr.rel (%p773) target = $region56
      $region55: #{combined_forward.5} parent=11 // pred_region
        _
      $region56: #{combined_forward.5} parent=11 // pred_fallthru
        _
      // Predicated region
      $region57: #{combined_forward.5} parent=11 // pred_check
        %p776 = pneg %p424
      $region58: #{combined_forward.5} parent=11 // pred_check_branch
        %778 = sbr.rel (%p776) target = $region60
      $region59: #{combined_forward.5} parent=11 // pred_region
        _
      $region60: #{combined_forward.5} parent=11 // pred_fallthru
        _
      // Predicated region
      $region61: #{combined_forward.5} parent=11 // pred_check
        %p779 = pneg %p445
      $region62: #{combined_forward.5} parent=11 // pred_check_branch
        %781 = sbr.rel (%p779) target = $region64
      $region63: #{combined_forward.5} parent=11 // pred_region
        _
      $region64: #{combined_forward.5} parent=11 // pred_fallthru
        _
      // Predicated region
      $region65: #{combined_forward.5} parent=11 // pred_check
        %p782 = pneg %p466
      $region66: #{combined_forward.5} parent=11 // pred_check_branch
        %784 = sbr.rel (%p782) target = $region68
      $region67: #{combined_forward.5} parent=11 // pred_region
        _
      $region68: #{combined_forward.5} parent=11 // pred_fallthru
        _
      // Predicated region
      $region69: #{combined_forward.5} parent=11 // pred_check
        %p785 = pneg %p487
      $region70: #{combined_forward.5} parent=11 // pred_check_branch
        %787 = sbr.rel (%p785) target = $region72
      $region71: #{combined_forward.5} parent=11 // pred_region
        _
      $region72: #{combined_forward.5} parent=11 // pred_fallthru
        _
      // Predicated region
      $region73: #{combined_forward.5} parent=11 // pred_check
        %p788 = pneg %p508
      $region74: #{combined_forward.5} parent=11 // pred_check_branch
        %790 = sbr.rel (%p788) target = $region76
      $region75: #{combined_forward.5} parent=11 // pred_region
        _
      $region76: #{combined_forward.5} parent=11 // pred_fallthru
        _
      // Predicated region
      $region77: #{combined_forward.5} parent=11 // pred_check
        %p791 = pneg %p529
      $region78: #{combined_forward.5} parent=11 // pred_check_branch
        %793 = sbr.rel (%p791) target = $region80
      $region79: #{combined_forward.5} parent=11 // pred_region
        _
      $region80: #{combined_forward.5} parent=11 // pred_fallthru
        _
      // Predicated region
      $region81: #{combined_forward.5} parent=11 // pred_check
        %p794 = pneg %p550
      $region82: #{combined_forward.5} parent=11 // pred_check_branch
        %796 = sbr.rel (%p794) target = $region84
      $region83: #{combined_forward.5} parent=11 // pred_region
        _
      $region84: #{combined_forward.5} parent=11 // pred_fallthru
        _
      // Predicated region
      $region85: #{combined_forward.5} parent=11 // pred_check
        %p797 = pneg %p571
      $region86: #{combined_forward.5} parent=11 // pred_check_branch
        %799 = sbr.rel (%p797) target = $region88
      $region87: #{combined_forward.5} parent=11 // pred_region
        _
      $region88: #{combined_forward.5} parent=11 // pred_fallthru
        _
      // Predicated region
      $region89: #{combined_forward.5} parent=11 // pred_check
        %p800 = pneg %p592
      $region90: #{combined_forward.5} parent=11 // pred_check_branch
        %802 = sbr.rel (%p800) target = $region92
      $region91: #{combined_forward.5} parent=11 // pred_region
        _
      $region92: #{combined_forward.5} parent=11 // pred_fallthru
        _
      // Predicated region
      $region93: #{combined_forward.5} parent=11 // pred_check
        %p803 = pneg %p613
      $region94: #{combined_forward.5} parent=11 // pred_check_branch
        %805 = sbr.rel (%p803) target = $region96
      $region95: #{combined_forward.5} parent=11 // pred_region
        _
      $region96: #{combined_forward.5} parent=11 // pred_fallthru
        _
      // Predicated region
      $region97: #{combined_forward.5} parent=11 // pred_check
        %p806 = pneg %p634
      $region98: #{combined_forward.5} parent=11 // pred_check_branch
        %808 = sbr.rel (%p806) target = $region100
      $region99: #{combined_forward.5} parent=11 // pred_region
        _
      $region100: #{combined_forward.5} parent=11 // pred_fallthru
        _
      // Predicated region
      $region101: #{combined_forward.5} parent=11 // pred_check
        %p809 = pneg %p655
      $region102: #{combined_forward.5} parent=11 // pred_check_branch
        %811 = sbr.rel (%p809) target = $region104
      $region103: #{combined_forward.5} parent=11 // pred_region
        _
      $region104: #{combined_forward.5} parent=11 // pred_fallthru
        _
      // Predicated region
      $region105: #{combined_forward.5} parent=11 // pred_check
        %p812 = pneg %p676
      $region106: #{combined_forward.5} parent=11 // pred_check_branch
        %814 = sbr.rel (%p812) target = $region108
      $region107: #{combined_forward.5} parent=11 // pred_region
        _
      $region108: #{combined_forward.5} parent=11 // pred_fallthru
        _
    $region12: #{combined_forward.5} parent=5 // pred_fallthru
      _
    %p815 = scmp.lt.s32.totalorder %s68, 2
    // Predicated region
    $region109: #{combined_forward.5} parent=5 // pred_check
      %p816 = pneg %p815
    $region110: #{combined_forward.5} parent=5 // pred_check_branch
      %818 = sbr.rel (%p816) target = $region112
    $region111: #{combined_forward.5} parent=5 // pred_region
      // Predicated region
      $region113: #{combined_forward.5} parent=111 // pred_check
        %p819 = pneg %p88
      $region114: #{combined_forward.5} parent=111 // pred_check_branch
        %821 = sbr.rel (%p819) target = $region116
      $region115: #{combined_forward.5} parent=111 // pred_region
        %p822 = scmp.lt.s32.totalorder %s68, 1
        %s823 = scalar_select %p822, %s68, 1
        %s824 = smul.addr %s823, 8
        %s825 = scalar_lea.vmem %s1, %s824
      $region116: #{combined_forward.5} parent=111 // pred_fallthru
        _
      // Predicated region
      $region117: #{combined_forward.5} parent=111 // pred_check
        %p826 = pneg %p114
      $region118: #{combined_forward.5} parent=111 // pred_check_branch
        %828 = sbr.rel (%p826) target = $region120
      $region119: #{combined_forward.5} parent=111 // pred_region
        %p829 = scmp.lt.s32.totalorder %s68, 1
        %s830 = scalar_select %p829, %s68, 1
        %s831 = smul.addr %s830, 8
        %s832 = scalar_lea.vmem %s3, %s831
      $region120: #{combined_forward.5} parent=111 // pred_fallthru
        _
      // Predicated region
      $region121: #{combined_forward.5} parent=111 // pred_check
        %p833 = pneg %p140
      $region122: #{combined_forward.5} parent=111 // pred_check_branch
        %835 = sbr.rel (%p833) target = $region124
      $region123: #{combined_forward.5} parent=111 // pred_region
        %p836 = scmp.lt.s32.totalorder %s68, 1
        %s837 = scalar_select %p836, %s68, 1
        %s838 = smul.addr %s837, 8
        %s839 = scalar_lea.vmem %s5, %s838
      $region124: #{combined_forward.5} parent=111 // pred_fallthru
        _
      // Predicated region
      $region125: #{combined_forward.5} parent=111 // pred_check
        %p840 = pneg %p166
      $region126: #{combined_forward.5} parent=111 // pred_check_branch
        %842 = sbr.rel (%p840) target = $region128
      $region127: #{combined_forward.5} parent=111 // pred_region
        %p843 = scmp.lt.s32.totalorder %s68, 1
        %s844 = scalar_select %p843, %s68, 1
        %s845 = scalar_lea.vmem %s7, %s844
      $region128: #{combined_forward.5} parent=111 // pred_fallthru
        _
    $region112: #{combined_forward.5} parent=5 // pred_fallthru
      _
    %p846 = scmp.le.s32.totalorder 1, %s68
    %p847 = scmp.lt.s32.totalorder %s68, 3
    %p848 = pnand %p846, %p847
    %p849 = pneg %p848
    // Predicated region
    $region129: #{combined_forward.5} parent=5 // pred_check
      _
    $region130: #{combined_forward.5} parent=5 // pred_check_branch
      %851 = sbr.rel (%p848) target = $region132
    $region131: #{combined_forward.5} parent=5 // pred_region
      %s852 = ssub.s32 %s68, 1
      %p853 = scmp.lt.s32.totalorder %s73, 1
      %s854 = scalar_select %p853, %s73, 1
      %s855 = smul.addr %s854, 8
      %s856 = scalar_lea.vmem %s1, %s855
      %p857 = pneg %p94
      %p858 = pneg %p91
      %p859 = scmp.lt.s32.totalorder %s73, 1
      %s860 = scalar_select %p859, %s73, 1
      %s861 = smul.addr %s860, 8
      %s862 = scalar_lea.vmem %s3, %s861
      %p863 = pneg %p120
      %p864 = pneg %p117
      %p865 = scmp.lt.s32.totalorder %s73, 1
      %s866 = scalar_select %p865, %s73, 1
      %s867 = smul.addr %s866, 8
      %s868 = scalar_lea.vmem %s5, %s867
      %p869 = pneg %p146
      %p870 = pneg %p143
      %p871 = scmp.lt.s32.totalorder %s73, 1
      %s872 = scalar_select %p871, %s73, 1
      %s873 = scalar_lea.vmem %s7, %s872
      %p874 = pneg %p172
      %p875 = pneg %p169
      %p876 = pneg %p193
      %p877 = pneg %p190
      %p878 = pneg %p214
      %p879 = pneg %p211
      %p880 = pneg %p235
      %p881 = pneg %p232
      %p882 = pneg %p256
      %p883 = pneg %p253
      %p884 = pneg %p277
      %p885 = pneg %p274
      %p886 = pneg %p298
      %p887 = pneg %p295
      %p888 = pneg %p319
      %p889 = pneg %p316
      %p890 = pneg %p340
      %p891 = pneg %p337
      %p892 = pneg %p361
      %p893 = pneg %p358
      %p894 = pneg %p382
      %p895 = pneg %p379
      %p896 = pneg %p403
      %p897 = pneg %p400
      %p898 = pneg %p424
      %p899 = pneg %p421
      %p900 = pneg %p445
      %p901 = pneg %p442
      %p902 = pneg %p466
      %p903 = pneg %p463
      %p904 = pneg %p487
      %p905 = pneg %p484
      %p906 = pneg %p508
      %p907 = pneg %p505
      %p908 = pneg %p529
      %p909 = pneg %p526
      %p910 = pneg %p550
      %p911 = pneg %p547
      %p912 = pneg %p571
      %p913 = pneg %p568
      %p914 = pneg %p592
      %p915 = pneg %p589
      %p916 = pneg %p613
      %p917 = pneg %p610
      %p918 = pneg %p634
      %p919 = pneg %p631
      %p920 = pneg %p655
      %p921 = pneg %p652
      %p922 = pneg %p676
      %p923 = pneg %p673
      %p924 = pneg %p702
      %p925 = pneg %p699
      %p926 = scmp.lt.s32.totalorder %s73, 1
      %s927 = scalar_select %p926, %s73, 1
      %s928 = scalar_lea.vmem %s57, %s927
      %p929 = pneg %p728
      %p930 = pneg %p725
      %p931 = scmp.lt.s32.totalorder %s73, 1
      %s932 = scalar_select %p931, %s73, 1
      %s933 = scalar_lea.vmem %s59, %s932
      %p934 = scmp.lt.s32.totalorder %s73, 1
      %s935 = scalar_select %p934, %s73, 1
      %s936 = smul.addr %s935, 8
      %s937 = scalar_lea.vmem %s1, %s936
      %p938 = scmp.lt.s32.totalorder %s73, 1
      %s939 = scalar_select %p938, %s73, 1
      %s940 = smul.addr %s939, 8
      %s941 = scalar_lea.vmem %s3, %s940
      %p942 = scmp.lt.s32.totalorder %s73, 1
      %s943 = scalar_select %p942, %s73, 1
      %s944 = smul.addr %s943, 8
      %s945 = scalar_lea.vmem %s5, %s944
      %p946 = scmp.lt.s32.totalorder %s73, 1
      %s947 = scalar_select %p946, %s73, 1
      %s948 = scalar_lea.vmem %s7, %s947
      %p949 = scmp.lt.s32.totalorder %s73, 1
      %s950 = scalar_select %p949, %s73, 1
      %s951 = scalar_lea.vmem %s57, %s950
      %p952 = scmp.lt.s32.totalorder %s73, 1
      %s953 = scalar_select %p952, %s73, 1
      %s954 = scalar_lea.vmem %s59, %s953
      %v955 = vld [vmem:[%s937] sm:$0xff]
      %v956 = vld [vmem:[%s9] sm:$0xff]
      %v957 = vld [vmem:[%s9 + $0x8] sm:$0xff]
      %v958 = vld [vmem:[%s9 + $0x10] sm:$0xff]
      %v959 = vld [vmem:[%s9 + $0x18] sm:$0xff]
      %v960 = vld [vmem:[%s9 + $0x20] sm:$0xff]
      %v961 = vld [vmem:[%s9 + $0x28] sm:$0xff]
      %v962 = vld [vmem:[%s9 + $0x30] sm:$0xff]
      %v963 = vld [vmem:[%s9 + $0x38] sm:$0xff]
      %v964 = vld [vmem:[%s9 + $0x40] sm:$0xff]
      %v965 = vld [vmem:[%s9 + $0x48] sm:$0xff]
      %v966 = vld [vmem:[%s9 + $0x50] sm:$0xff]
      %v967 = vld [vmem:[%s9 + $0x58] sm:$0xff]
      %v968 = vld [vmem:[%s9 + $0x60] sm:$0xff]
      %v969 = vld [vmem:[%s9 + $0x68] sm:$0xff]
      %v970 = vld [vmem:[%s9 + $0x70] sm:$0xff]
      %v971 = vld [vmem:[%s9 + $0x78] sm:$0xff]
      %v972 = vld [vmem:[%s11] sm:$0xff]
      %v973 = vld [vmem:[%s13] sm:$0x1]
      %v974 = vld [vmem:[%s15] sm:$0x1]
      %v975 = vlaneseq
      %v976 = vand.u32 %v975, 127
      %977 = vset.pattern.permute.xlu0 0
      %978 = vperm.xlu0 %977, %v955
      %v979 = vpop.permute.xlu0 %978
      %vm980 = vcmp.eq.s32.totalorder %v976, %v979
      %v981 = vsel %vm980, 1, 0
      %v982 = vcvt.s32.f32 %v981
      %983 = vmatpush.msra.mxu0 %v971
      %984 = vmatpush.msra.mxu0 %v970
      %985 = vmatpush.msra.mxu0 %v969
      %986 = vmatpush.msra.mxu0 %v968
      %987 = vmatpush.msra.mxu0 %v967
      %988 = vmatpush.msra.mxu0 %v966
      %989 = vmatpush.msra.mxu0 %v965
      %990 = vmatpush.msra.mxu0 %v964
      %991 = vmatpush.msra.mxu0 %v963
      %992 = vmatpush.msra.mxu0 %v962
      %993 = vmatpush.msra.mxu0 %v961
      %994 = vmatpush.msra.mxu0 %v960
      %995 = vmatpush.msra.mxu0 %v959
      %996 = vmatpush.msra.mxu0 %v958
      %997 = vmatpush.msra.mxu0 %v957
      %998 = vmatpush.msra.mxu0 %v956
      %999 = vmatmul.f32.gmra.mxu0 %v982
      %v1000 = vpop.f32.mrf.mxu0
      %v1001 = vadd.f32 %v972, %v1000
      %1002 = vdwg.mxu0
      %vm1003 = vcmask 261120
      %v1004 = vsel %vm1003, %v1001, 0.0
      %1005 = vadd.xlane.f32.xlu0 %v1004
      %v1006 = vpop.xlane.xlu0 %1005
      %v1007 = vrcp.pop 32.0
      %v1008 = vmul.f32 32.0, %v1007
      %v1009 = vsub.f32 1.0, %v1008
      %v1010 = vmul.f32 %v1007, %v1009
      %v1011 = vadd.f32 %v1007, %v1010
      %vm1012 = vweird.f32 %v1007
      %v1013 = vsel %vm1012, %v1007, %v1011
      %v1014 = vmul.f32 %v1006, %v1013
      %v1015 = vsub.f32 %v1001, %v1014
      %v1016 = vmul.f32 %v1015, %v1015
      %v1017 = vsel %vm1003, %v1016, 0.0
      %1018 = vadd.xlane.f32.xlu0 %v1017
      %v1019 = vpop.xlane.xlu0 %1018
      %v1020 = vmul.f32 %v1019, %v1013
      %v1021 = vadd.f32 %v1020, 1e-12
      %v1022 = vrsqrt.pop %v1021
      %v1023 = vmul.f32 %v1022, %v1021
      %v1024 = vmul.f32 %v1023, %v1022
      %v1025 = vmul.f32 0.5, %v1024
      %v1026 = vsub.f32 1.5, %v1025
      %v1027 = vmul.f32 %v1022, %v1026
      %vm1028 = vweird.f32 %v1021
      %vm1029 = vweird.f32 %v1022
      %vm1030 = vmor %vm1028, %vm1029
      %v1031 = vsel %vm1030, %v1022, %v1027
      %v1032 = vmul.f32 %v1015, %v1031
      %v1034 = vperm.slane %v973, 0
      %v1036 = vmul.f32 %v1032, %v1034
      %v1038 = vperm.slane %v974, 0
      %v1040 = vadd.f32 %v1036, %v1038
      %v1041 = vld [vmem:[%s948] sm:$0x1]
      %v1042 = vld [vmem:[%s31] sm:$0x1]
      %v1043 = vld [vmem:[%s17] sm:$0xff]
      %v1044 = vld [vmem:[%s17 + $0x8] sm:$0xff]
      %v1045 = vld [vmem:[%s17 + $0x10] sm:$0xff]
      %v1046 = vld [vmem:[%s17 + $0x18] sm:$0xff]
      %v1047 = vld [vmem:[%s25] sm:$0x1]
      %v1049 = vperm.slane %v1047, 0
      %v1052 = vsel %vm1003, %v1040, 0
      %1054 = vmatpush.msra.mxu0 0.0
      %1055 = vmatpush.msra.mxu0 0.0
      %1056 = vmatpush.msra.mxu0 0.0
      %1057 = vmatpush.msra.mxu0 0.0
      %1058 = vmatpush.msra.mxu0 0.0
      %1059 = vmatpush.msra.mxu0 0.0
      %1060 = vmatpush.msra.mxu0 0.0
      %1061 = vmatpush.msra.mxu0 0.0
      %1062 = vmatpush.msra.mxu0 0.0
      %1063 = vmatpush.msra.mxu0 0.0
      %1064 = vmatpush.msra.mxu0 0.0
      %1065 = vmatpush.msra.mxu0 0.0
      %1066 = vmatpush.msra.mxu0 %v1046
      %1067 = vmatpush.msra.mxu0 %v1045
      %1068 = vmatpush.msra.mxu0 %v1044
      %1069 = vmatpush.msra.mxu0 %v1043
      %1070 = vmatmul.f32.gmra.mxu0 %v1052
      %v1071 = vpop.f32.mrf.mxu0
      %v1072 = vadd.f32 %v1049, %v1071
      %1073 = vdwg.mxu0
      %v1074 = vld [vmem:[%s19] sm:$0xff]
      %v1075 = vld [vmem:[%s19 + $0x8] sm:$0xff]
      %v1076 = vld [vmem:[%s19 + $0x10] sm:$0xff]
      %v1077 = vld [vmem:[%s19 + $0x18] sm:$0xff]
      %v1078 = vld [vmem:[%s27] sm:$0x1]
      %v1080 = vperm.slane %v1078, 0
      %1082 = vmatpush.msra.mxu0 0.0
      %1083 = vmatpush.msra.mxu0 0.0
      %1084 = vmatpush.msra.mxu0 0.0
      %1085 = vmatpush.msra.mxu0 0.0
      %1086 = vmatpush.msra.mxu0 0.0
      %1087 = vmatpush.msra.mxu0 0.0
      %1088 = vmatpush.msra.mxu0 0.0
      %1089 = vmatpush.msra.mxu0 0.0
      %1090 = vmatpush.msra.mxu0 0.0
      %1091 = vmatpush.msra.mxu0 0.0
      %1092 = vmatpush.msra.mxu0 0.0
      %1093 = vmatpush.msra.mxu0 0.0
      %1094 = vmatpush.msra.mxu0 %v1077
      %1095 = vmatpush.msra.mxu0 %v1076
      %1096 = vmatpush.msra.mxu0 %v1075
      %1097 = vmatpush.msra.mxu0 %v1074
      %1098 = vmatmul.f32.gmra.mxu0 %v1052
      %v1099 = vpop.f32.mrf.mxu0
      %v1100 = vadd.f32 %v1080, %v1099
      %1101 = vdwg.mxu0
      %v1102 = vld [vmem:[%s21] sm:$0xff]
      %v1103 = vld [vmem:[%s21 + $0x8] sm:$0xff]
      %v1104 = vld [vmem:[%s21 + $0x10] sm:$0xff]
      %v1105 = vld [vmem:[%s21 + $0x18] sm:$0xff]
      %v1106 = vld [vmem:[%s29] sm:$0x1]
      %v1108 = vperm.slane %v1106, 0
      %1110 = vmatpush.msra.mxu0 0.0
      %1111 = vmatpush.msra.mxu0 0.0
      %1112 = vmatpush.msra.mxu0 0.0
      %1113 = vmatpush.msra.mxu0 0.0
      %1114 = vmatpush.msra.mxu0 0.0
      %1115 = vmatpush.msra.mxu0 0.0
      %1116 = vmatpush.msra.mxu0 0.0
      %1117 = vmatpush.msra.mxu0 0.0
      %1118 = vmatpush.msra.mxu0 0.0
      %1119 = vmatpush.msra.mxu0 0.0
      %1120 = vmatpush.msra.mxu0 0.0
      %1121 = vmatpush.msra.mxu0 0.0
      %1122 = vmatpush.msra.mxu0 %v1105
      %1123 = vmatpush.msra.mxu0 %v1104
      %1124 = vmatpush.msra.mxu0 %v1103
      %1125 = vmatpush.msra.mxu0 %v1102
      %1126 = vmatmul.f32.gmra.mxu0 %v1052
      %v1127 = vpop.f32.mrf.mxu0
      %v1128 = vadd.f32 %v1108, %v1127
      %1129 = vdwg.mxu0
      %vm1130 = vcmask 130048
      %v1132 = vsel %vm1130, %v1072, 0
      %v1135 = vsel %vm1130, %v1100, 0
      %1137 = vmatpush.xpose.msra.mxu0 0.0
      %1138 = vmatpush.xpose.msra.mxu0 0.0
      %1139 = vmatpush.xpose.msra.mxu0 0.0
      %1140 = vmatpush.xpose.msra.mxu0 0.0
      %1141 = vmatpush.xpose.msra.mxu0 0.0
      %1142 = vmatpush.xpose.msra.mxu0 0.0
      %1143 = vmatpush.xpose.msra.mxu0 0.0
      %1144 = vmatpush.xpose.msra.mxu0 0.0
      %1145 = vmatpush.xpose.msra.mxu0 0.0
      %1146 = vmatpush.xpose.msra.mxu0 0.0
      %1147 = vmatpush.xpose.msra.mxu0 0.0
      %1148 = vmatpush.xpose.msra.mxu0 0.0
      %1149 = vmatpush.xpose.msra.mxu0 0.0
      %1150 = vmatpush.xpose.msra.mxu0 0.0
      %1151 = vmatpush.xpose.msra.mxu0 0.0
      %1152 = vmatpush.xpose.msra.mxu0 %v1135
      %1153 = vmatmul.f32.gmra.mxu0 %v1132
      %v1154 = vpop.f32.mrf.mxu0
      %v1155 = vadd.f32 0.0, %v1154
      %1156 = vdwg.mxu0
      %v1157 = vmul.f32 %v1155, 0.25
      %v1159 = vperm.slane %v1041, 0
      %v1161 = vadd.f32 %v1157, %v1159
      %vm1162 = vcmask 64512
      %v1163 = vsel %vm1162, %v1161, -inf
      %1164 = vmax.xlane.f32.xlu0 %v1163
      %v1165 = vpop.xlane.xlu0 %1164
      %v1166 = vsub.f32 %v1161, %v1165
      %v1167 = vmul.f32 %v1166, 1.442695
      %v1168 = vpow.pop %v1167
      %v1169 = vsel %vm1162, %v1168, 0.0
      %1170 = vadd.xlane.f32.xlu0 %v1169
      %v1171 = vpop.xlane.xlu0 %1170
      %v1172 = vrcp.pop %v1171
      %v1173 = vmul.f32 %v1168, %v1172
      %v1175 = vsel %vm1162, %v1173, 0
      %1177 = vmatpush.msra.mxu0 0.0
      %1178 = vmatpush.msra.mxu0 0.0
      %1179 = vmatpush.msra.mxu0 0.0
      %1180 = vmatpush.msra.mxu0 0.0
      %1181 = vmatpush.msra.mxu0 0.0
      %1182 = vmatpush.msra.mxu0 0.0
      %1183 = vmatpush.msra.mxu0 0.0
      %1184 = vmatpush.msra.mxu0 0.0
      %1185 = vmatpush.msra.mxu0 0.0
      %1186 = vmatpush.msra.mxu0 0.0
      %1187 = vmatpush.msra.mxu0 0.0
      %1188 = vmatpush.msra.mxu0 0.0
      %1189 = vmatpush.msra.mxu0 0.0
      %1190 = vmatpush.msra.mxu0 0.0
      %1191 = vmatpush.msra.mxu0 0.0
      %1192 = vmatpush.msra.mxu0 %v1128
      %1193 = vmatmul.f32.gmra.mxu0 %v1175
      %v1194 = vpop.f32.mrf.mxu0
      %v1195 = vadd.f32 0.0, %v1194
      %1196 = vdwg.mxu0
      %v1197 = vld [vmem:[%s23] sm:$0xff]
      %v1198 = vld [vmem:[%s23 + $0x8] sm:$0xff]
      %v1200 = vsel %vm1130, %v1195, 0
      %1202 = vmatpush.msra.mxu0 0.0
      %1203 = vmatpush.msra.mxu0 0.0
      %1204 = vmatpush.msra.mxu0 0.0
      %1205 = vmatpush.msra.mxu0 0.0
      %1206 = vmatpush.msra.mxu0 0.0
      %1207 = vmatpush.msra.mxu0 0.0
      %1208 = vmatpush.msra.mxu0 0.0
      %1209 = vmatpush.msra.mxu0 0.0
      %1210 = vmatpush.msra.mxu0 0.0
      %1211 = vmatpush.msra.mxu0 0.0
      %1212 = vmatpush.msra.mxu0 0.0
      %1213 = vmatpush.msra.mxu0 0.0
      %1214 = vmatpush.msra.mxu0 0.0
      %1215 = vmatpush.msra.mxu0 0.0
      %1216 = vmatpush.msra.mxu0 %v1198
      %1217 = vmatpush.msra.mxu0 %v1197
      %1218 = vmatmul.f32.gmra.mxu0 %v1200
      %v1219 = vpop.f32.mrf.mxu0
      %v1220 = vadd.f32 0.0, %v1219
      %1221 = vdwg.mxu0
      %v1223 = vperm.slane %v1042, 0
      %v1225 = vadd.f32 %v1223, %v1220
      %s1226 = scalar_lea.vmem %s17, 32
      %v1227 = vld [vmem:[%s1226] sm:$0xff]
      %v1228 = vld [vmem:[%s1226 + $0x8] sm:$0xff]
      %v1229 = vld [vmem:[%s1226 + $0x10] sm:$0xff]
      %v1230 = vld [vmem:[%s1226 + $0x18] sm:$0xff]
      %s1231 = scalar_lea.vmem %s25, 1
      %v1232 = vld [vmem:[%s1231] sm:$0x1]
      %v1234 = vperm.slane %v1232, 0
      %1236 = vmatpush.msra.mxu0 0.0
      %1237 = vmatpush.msra.mxu0 0.0
      %1238 = vmatpush.msra.mxu0 0.0
      %1239 = vmatpush.msra.mxu0 0.0
      %1240 = vmatpush.msra.mxu0 0.0
      %1241 = vmatpush.msra.mxu0 0.0
      %1242 = vmatpush.msra.mxu0 0.0
      %1243 = vmatpush.msra.mxu0 0.0
      %1244 = vmatpush.msra.mxu0 0.0
      %1245 = vmatpush.msra.mxu0 0.0
      %1246 = vmatpush.msra.mxu0 0.0
      %1247 = vmatpush.msra.mxu0 0.0
      %1248 = vmatpush.msra.mxu0 %v1230
      %1249 = vmatpush.msra.mxu0 %v1229
      %1250 = vmatpush.msra.mxu0 %v1228
      %1251 = vmatpush.msra.mxu0 %v1227
      %1252 = vmatmul.f32.gmra.mxu0 %v1052
      %v1253 = vpop.f32.mrf.mxu0
      %v1254 = vadd.f32 %v1234, %v1253
      %1255 = vdwg.mxu0
      %s1256 = scalar_lea.vmem %s19, 32
      %v1257 = vld [vmem:[%s1256] sm:$0xff]
      %v1258 = vld [vmem:[%s1256 + $0x8] sm:$0xff]
      %v1259 = vld [vmem:[%s1256 + $0x10] sm:$0xff]
      %v1260 = vld [vmem:[%s1256 + $0x18] sm:$0xff]
      %s1261 = scalar_lea.vmem %s27, 1
      %v1262 = vld [vmem:[%s1261] sm:$0x1]
      %v1264 = vperm.slane %v1262, 0
      %1266 = vmatpush.msra.mxu0 0.0
      %1267 = vmatpush.msra.mxu0 0.0
      %1268 = vmatpush.msra.mxu0 0.0
      %1269 = vmatpush.msra.mxu0 0.0
      %1270 = vmatpush.msra.mxu0 0.0
      %1271 = vmatpush.msra.mxu0 0.0
      %1272 = vmatpush.msra.mxu0 0.0
      %1273 = vmatpush.msra.mxu0 0.0
      %1274 = vmatpush.msra.mxu0 0.0
      %1275 = vmatpush.msra.mxu0 0.0
      %1276 = vmatpush.msra.mxu0 0.0
      %1277 = vmatpush.msra.mxu0 0.0
      %1278 = vmatpush.msra.mxu0 %v1260
      %1279 = vmatpush.msra.mxu0 %v1259
      %1280 = vmatpush.msra.mxu0 %v1258
      %1281 = vmatpush.msra.mxu0 %v1257
      %1282 = vmatmul.f32.gmra.mxu0 %v1052
      %v1283 = vpop.f32.mrf.mxu0
      %v1284 = vadd.f32 %v1264, %v1283
      %1285 = vdwg.mxu0
      %s1286 = scalar_lea.vmem %s21, 32
      %v1287 = vld [vmem:[%s1286] sm:$0xff]
      %v1288 = vld [vmem:[%s1286 + $0x8] sm:$0xff]
      %v1289 = vld [vmem:[%s1286 + $0x10] sm:$0xff]
      %v1290 = vld [vmem:[%s1286 + $0x18] sm:$0xff]
      %s1291 = scalar_lea.vmem %s29, 1
      %v1292 = vld [vmem:[%s1291] sm:$0x1]
      %v1294 = vperm.slane %v1292, 0
      %1296 = vmatpush.msra.mxu0 0.0
      %1297 = vmatpush.msra.mxu0 0.0
      %1298 = vmatpush.msra.mxu0 0.0
      %1299 = vmatpush.msra.mxu0 0.0
      %1300 = vmatpush.msra.mxu0 0.0
      %1301 = vmatpush.msra.mxu0 0.0
      %1302 = vmatpush.msra.mxu0 0.0
      %1303 = vmatpush.msra.mxu0 0.0
      %1304 = vmatpush.msra.mxu0 0.0
      %1305 = vmatpush.msra.mxu0 0.0
      %1306 = vmatpush.msra.mxu0 0.0
      %1307 = vmatpush.msra.mxu0 0.0
      %1308 = vmatpush.msra.mxu0 %v1290
      %1309 = vmatpush.msra.mxu0 %v1289
      %1310 = vmatpush.msra.mxu0 %v1288
      %1311 = vmatpush.msra.mxu0 %v1287
      %1312 = vmatmul.f32.gmra.mxu0 %v1052
      %v1313 = vpop.f32.mrf.mxu0
      %v1314 = vadd.f32 %v1294, %v1313
      %1315 = vdwg.mxu0
      %v1317 = vsel %vm1130, %v1254, 0
      %v1320 = vsel %vm1130, %v1284, 0
      %1322 = vmatpush.xpose.msra.mxu0 0.0
      %1323 = vmatpush.xpose.msra.mxu0 0.0
      %1324 = vmatpush.xpose.msra.mxu0 0.0
      %1325 = vmatpush.xpose.msra.mxu0 0.0
      %1326 = vmatpush.xpose.msra.mxu0 0.0
      %1327 = vmatpush.xpose.msra.mxu0 0.0
      %1328 = vmatpush.xpose.msra.mxu0 0.0
      %1329 = vmatpush.xpose.msra.mxu0 0.0
      %1330 = vmatpush.xpose.msra.mxu0 0.0
      %1331 = vmatpush.xpose.msra.mxu0 0.0
      %1332 = vmatpush.xpose.msra.mxu0 0.0
      %1333 = vmatpush.xpose.msra.mxu0 0.0
      %1334 = vmatpush.xpose.msra.mxu0 0.0
      %1335 = vmatpush.xpose.msra.mxu0 0.0
      %1336 = vmatpush.xpose.msra.mxu0 0.0
      %1337 = vmatpush.xpose.msra.mxu0 %v1320
      %1338 = vmatmul.f32.gmra.mxu0 %v1317
      %v1339 = vpop.f32.mrf.mxu0
      %v1340 = vadd.f32 0.0, %v1339
      %1341 = vdwg.mxu0
      %v1342 = vmul.f32 %v1340, 0.25
      %v1343 = vadd.f32 %v1342, %v1159
      %v1344 = vsel %vm1162, %v1343, -inf
      %1345 = vmax.xlane.f32.xlu0 %v1344
      %v1346 = vpop.xlane.xlu0 %1345
      %v1347 = vsub.f32 %v1343, %v1346
      %v1348 = vmul.f32 %v1347, 1.442695
      %v1349 = vpow.pop %v1348
      %v1350 = vsel %vm1162, %v1349, 0.0
      %1351 = vadd.xlane.f32.xlu0 %v1350
      %v1352 = vpop.xlane.xlu0 %1351
      %v1353 = vrcp.pop %v1352
      %v1354 = vmul.f32 %v1349, %v1353
      %v1356 = vsel %vm1162, %v1354, 0
      %1358 = vmatpush.msra.mxu0 0.0
      %1359 = vmatpush.msra.mxu0 0.0
      %1360 = vmatpush.msra.mxu0 0.0
      %1361 = vmatpush.msra.mxu0 0.0
      %1362 = vmatpush.msra.mxu0 0.0
      %1363 = vmatpush.msra.mxu0 0.0
      %1364 = vmatpush.msra.mxu0 0.0
      %1365 = vmatpush.msra.mxu0 0.0
      %1366 = vmatpush.msra.mxu0 0.0
      %1367 = vmatpush.msra.mxu0 0.0
      %1368 = vmatpush.msra.mxu0 0.0
      %1369 = vmatpush.msra.mxu0 0.0
      %1370 = vmatpush.msra.mxu0 0.0
      %1371 = vmatpush.msra.mxu0 0.0
      %1372 = vmatpush.msra.mxu0 0.0
      %1373 = vmatpush.msra.mxu0 %v1314
      %1374 = vmatmul.f32.gmra.mxu0 %v1356
      %v1375 = vpop.f32.mrf.mxu0
      %v1376 = vadd.f32 0.0, %v1375
      %1377 = vdwg.mxu0
      %s1378 = scalar_lea.vmem %s23, 16
      %v1379 = vld [vmem:[%s1378] sm:$0xff]
      %v1380 = vld [vmem:[%s1378 + $0x8] sm:$0xff]
      %v1382 = vsel %vm1130, %v1376, 0
      %1384 = vmatpush.msra.mxu0 0.0
      %1385 = vmatpush.msra.mxu0 0.0
      %1386 = vmatpush.msra.mxu0 0.0
      %1387 = vmatpush.msra.mxu0 0.0
      %1388 = vmatpush.msra.mxu0 0.0
      %1389 = vmatpush.msra.mxu0 0.0
      %1390 = vmatpush.msra.mxu0 0.0
      %1391 = vmatpush.msra.mxu0 0.0
      %1392 = vmatpush.msra.mxu0 0.0
      %1393 = vmatpush.msra.mxu0 0.0
      %1394 = vmatpush.msra.mxu0 0.0
      %1395 = vmatpush.msra.mxu0 0.0
      %1396 = vmatpush.msra.mxu0 0.0
      %1397 = vmatpush.msra.mxu0 0.0
      %1398 = vmatpush.msra.mxu0 %v1380
      %1399 = vmatpush.msra.mxu0 %v1379
      %1400 = vmatmul.f32.gmra.mxu0 %v1382
      %v1401 = vpop.f32.mrf.mxu0
      %v1402 = vadd.f32 0.0, %v1401
      %1403 = vdwg.mxu0
      %v1404 = vadd.f32 %v1225, %v1402
      %v1405 = vadd.f32 %v1040, %v1404
      %v1406 = vld [vmem:[%s33] sm:$0x1]
      %v1407 = vld [vmem:[%s35] sm:$0x1]
      %v1408 = vsel %vm1003, %v1405, 0.0
      %1409 = vadd.xlane.f32.xlu0 %v1408
      %v1410 = vpop.xlane.xlu0 %1409
      %v1411 = vmul.f32 %v1410, %v1013
      %v1412 = vsub.f32 %v1405, %v1411
      %v1413 = vmul.f32 %v1412, %v1412
      %v1414 = vsel %vm1003, %v1413, 0.0
      %1415 = vadd.xlane.f32.xlu0 %v1414
      %v1416 = vpop.xlane.xlu0 %1415
      %v1417 = vmul.f32 %v1416, %v1013
      %v1418 = vadd.f32 %v1417, 1e-12
      %v1419 = vrsqrt.pop %v1418
      %v1420 = vmul.f32 %v1419, %v1418
      %v1421 = vmul.f32 %v1420, %v1419
      %v1422 = vmul.f32 0.5, %v1421
      %v1423 = vsub.f32 1.5, %v1422
      %v1424 = vmul.f32 %v1419, %v1423
      %vm1425 = vweird.f32 %v1418
      %vm1426 = vweird.f32 %v1419
      %vm1427 = vmor %vm1425, %vm1426
      %v1428 = vsel %vm1427, %v1419, %v1424
      %v1429 = vmul.f32 %v1412, %v1428
      %v1431 = vperm.slane %v1406, 0
      %v1433 = vmul.f32 %v1429, %v1431
      %v1435 = vperm.slane %v1407, 0
      %v1437 = vadd.f32 %v1433, %v1435
      %v1438 = vld [vmem:[%s37] sm:$0xff]
      %v1439 = vld [vmem:[%s37 + $0x8] sm:$0xff]
      %v1440 = vld [vmem:[%s37 + $0x10] sm:$0xff]
      %v1441 = vld [vmem:[%s37 + $0x18] sm:$0xff]
      %v1442 = vld [vmem:[%s39] sm:$0x1]
      %v1444 = vperm.slane %v1442, 0
      %v1447 = vsel %vm1003, %v1437, 0
      %1449 = vmatpush.msra.mxu0 0.0
      %1450 = vmatpush.msra.mxu0 0.0
      %1451 = vmatpush.msra.mxu0 0.0
      %1452 = vmatpush.msra.mxu0 0.0
      %1453 = vmatpush.msra.mxu0 0.0
      %1454 = vmatpush.msra.mxu0 0.0
      %1455 = vmatpush.msra.mxu0 0.0
      %1456 = vmatpush.msra.mxu0 0.0
      %1457 = vmatpush.msra.mxu0 0.0
      %1458 = vmatpush.msra.mxu0 0.0
      %1459 = vmatpush.msra.mxu0 0.0
      %1460 = vmatpush.msra.mxu0 0.0
      %1461 = vmatpush.msra.mxu0 %v1441
      %1462 = vmatpush.msra.mxu0 %v1440
      %1463 = vmatpush.msra.mxu0 %v1439
      %1464 = vmatpush.msra.mxu0 %v1438
      %1465 = vmatmul.f32.gmra.mxu0 %v1447
      %v1466 = vpop.f32.mrf.mxu0
      %v1467 = vadd.f32 %v1444, %v1466
      %1468 = vdwg.mxu0
      %v1469 = vmul.f32 %v1467, 0.5
      %v1470 = vmul.f32 %v1467, 0.044715
      %v1471 = vmul.f32 %v1470, %v1467
      %v1472 = vmul.f32 %v1471, %v1467
      %v1473 = vadd.f32 %v1467, %v1472
      %v1474 = vmul.f32 %v1473, 0.7978846
      %v1475 = vtanh.pop %v1474
      %v1476 = vadd.f32 %v1475, 1.0
      %v1477 = vmul.f32 %v1469, %v1476
      %v1478 = vld [vmem:[%s41] sm:$0xff]
      %v1479 = vld [vmem:[%s41 + $0x8] sm:$0xff]
      %v1480 = vld [vmem:[%s41 + $0x10] sm:$0xff]
      %v1481 = vld [vmem:[%s41 + $0x18] sm:$0xff]
      %v1482 = vld [vmem:[%s41 + $0x20] sm:$0xff]
      %v1483 = vld [vmem:[%s41 + $0x28] sm:$0xff]
      %v1484 = vld [vmem:[%s41 + $0x30] sm:$0xff]
      %v1485 = vld [vmem:[%s41 + $0x38] sm:$0xff]
      %v1486 = vld [vmem:[%s43] sm:$0x1]
      %v1488 = vperm.slane %v1486, 0
      %vm1490 = vcmask 523264
      %v1492 = vsel %vm1490, %v1477, 0
      %1494 = vmatpush.msra.mxu0 0.0
      %1495 = vmatpush.msra.mxu0 0.0
      %1496 = vmatpush.msra.mxu0 0.0
      %1497 = vmatpush.msra.mxu0 0.0
      %1498 = vmatpush.msra.mxu0 0.0
      %1499 = vmatpush.msra.mxu0 0.0
      %1500 = vmatpush.msra.mxu0 0.0
      %1501 = vmatpush.msra.mxu0 0.0
      %1502 = vmatpush.msra.mxu0 %v1485
      %1503 = vmatpush.msra.mxu0 %v1484
      %1504 = vmatpush.msra.mxu0 %v1483
      %1505 = vmatpush.msra.mxu0 %v1482
      %1506 = vmatpush.msra.mxu0 %v1481
      %1507 = vmatpush.msra.mxu0 %v1480
      %1508 = vmatpush.msra.mxu0 %v1479
      %1509 = vmatpush.msra.mxu0 %v1478
      %1510 = vmatmul.f32.gmra.mxu0 %v1492
      %v1511 = vpop.f32.mrf.mxu0
      %v1512 = vadd.f32 %v1488, %v1511
      %1513 = vdwg.mxu0
      %v1514 = vadd.f32 %v1437, %v1512
      %v1515 = vld [vmem:[%s45] sm:$0x1]
      %v1516 = vld [vmem:[%s47] sm:$0x1]
      %v1517 = vsel %vm1003, %v1514, 0.0
      %1518 = vadd.xlane.f32.xlu0 %v1517
      %v1519 = vpop.xlane.xlu0 %1518
      %v1520 = vmul.f32 %v1519, %v1013
      %v1521 = vsub.f32 %v1514, %v1520
      %v1522 = vmul.f32 %v1521, %v1521
      %v1523 = vsel %vm1003, %v1522, 0.0
      %1524 = vadd.xlane.f32.xlu0 %v1523
      %v1525 = vpop.xlane.xlu0 %1524
      %v1526 = vmul.f32 %v1525, %v1013
      %v1527 = vadd.f32 %v1526, 1e-12
      %v1528 = vrsqrt.pop %v1527
      %v1529 = vmul.f32 %v1528, %v1527
      %v1530 = vmul.f32 %v1529, %v1528
      %v1531 = vmul.f32 0.5, %v1530
      %v1532 = vsub.f32 1.5, %v1531
      %v1533 = vmul.f32 %v1528, %v1532
      %vm1534 = vweird.f32 %v1527
      %vm1535 = vweird.f32 %v1528
      %vm1536 = vmor %vm1534, %vm1535
      %v1537 = vsel %vm1536, %v1528, %v1533
      %v1538 = vmul.f32 %v1521, %v1537
      %v1540 = vperm.slane %v1515, 0
      %v1542 = vmul.f32 %v1538, %v1540
      %v1544 = vperm.slane %v1516, 0
      %v1546 = vadd.f32 %v1542, %v1544
      %v1547 = vld [vmem:[%s49] sm:$0xff]
      %v1548 = vld [vmem:[%s49 + $0x8] sm:$0xff]
      %v1549 = vld [vmem:[%s49 + $0x10] sm:$0xff]
      %v1550 = vld [vmem:[%s49 + $0x18] sm:$0xff]
      %v1551 = vld [vmem:[%s51] sm:$0x1]
      %v1553 = vperm.slane %v1551, 0
      %v1556 = vsel %vm1003, %v1546, 0
      %1558 = vmatpush.msra.mxu0 0.0
      %1559 = vmatpush.msra.mxu0 0.0
      %1560 = vmatpush.msra.mxu0 0.0
      %1561 = vmatpush.msra.mxu0 0.0
      %1562 = vmatpush.msra.mxu0 0.0
      %1563 = vmatpush.msra.mxu0 0.0
      %1564 = vmatpush.msra.mxu0 0.0
      %1565 = vmatpush.msra.mxu0 0.0
      %1566 = vmatpush.msra.mxu0 0.0
      %1567 = vmatpush.msra.mxu0 0.0
      %1568 = vmatpush.msra.mxu0 0.0
      %1569 = vmatpush.msra.mxu0 0.0
      %1570 = vmatpush.msra.mxu0 %v1550
      %1571 = vmatpush.msra.mxu0 %v1549
      %1572 = vmatpush.msra.mxu0 %v1548
      %1573 = vmatpush.msra.mxu0 %v1547
      %1574 = vmatmul.f32.gmra.mxu0 %v1556
      %v1575 = vpop.f32.mrf.mxu0
      %v1576 = vadd.f32 %v1553, %v1575
      %1577 = vdwg.mxu0
      %v1578 = vmul.f32 %v1576, 0.5
      %v1579 = vmul.f32 %v1576, 0.044715
      %v1580 = vmul.f32 %v1579, %v1576
      %v1581 = vmul.f32 %v1580, %v1576
      %v1582 = vadd.f32 %v1576, %v1581
      %v1583 = vmul.f32 %v1582, 0.7978846
      %v1584 = vtanh.pop %v1583
      %v1585 = vadd.f32 %v1584, 1.0
      %v1586 = vmul.f32 %v1578, %v1585
      %v1587 = vld [vmem:[%s53] sm:$0x1]
      %v1589 = vperm.slane %v1587, 0
      %v1591 = vmul.f32 %v1586, %v1589
      %v1592 = vsel %vm1003, %v1591, 0.0
      %1593 = vadd.xlane.f32.xlu0 %v1592
      %v1594 = vpop.xlane.xlu0 %1593
      %v1595 = vld [vmem:[#allocation2] sm:$0x1]
      %v1597 = vperm.slane %v1595, 0
      %v1599 = vadd.f32 %v1594, %v1597
      %v1600 = vlaneseq
      %v1601 = vshrl.u32 %v1600, 7
      %vm1602 = vcmp.eq.s32.totalorder %v1601, %v976
      %v1603 = vsel %vm1602, 1, 0
      %v1604 = vcvt.s32.f32 %v1603
      %1606 = vset.pattern.permute.xlu0 0
      %1607 = vperm.xlu0 %1606, %v1599
      %v1608 = vpop.permute.xlu0 %1607
      %v1610 = vmul.f32 %v1608, %v1604
      %v1611 = vrot.slane %v1610, 4
      %v1612 = vadd.f32 %v1610, %v1611
      %v1613 = vrot.slane %v1612, 2
      %v1614 = vadd.f32 %v1612, %v1613
      %v1615 = vrot.slane %v1614, 1
      %v1616 = vadd.f32 %v1614, %v1615
      %1617 = vst [vmem:[%s951] sm:$0x1] %v1616
      %v1618 = vld [vmem:[%s941] sm:$0xff]
      %v1619 = vcvt.s32.f32 %v1618
      %v1620 = vmax.f32 %v1599, 0.0
      %v1621 = vmul.f32 %v1599, %v1619
      %v1622 = vsub.f32 %v1620, %v1621
      %v1623 = vand.u32 2147483647, %v1599
      %v1624 = vsub.f32 0.0, %v1623
      %v1625 = vmul.f32 %v1624, 1.442695
      %v1626 = vpow.pop %v1625
      %v1627 = vadd.f32 %v1626, 1.0
      %v1628 = vlog2.pop %v1627
      %v1629 = vmul.f32 %v1628, 0.6931472
      %v1630 = vmul.f32 -0.5, %v1626
      %v1631 = vadd.f32 %v1630, 1.0
      %v1632 = vmul.f32 %v1631, %v1626
      %v1633 = vand.u32 2147483647, %v1626
      %vm1634 = vcmp.lt.f32.partialorder %v1633, 0.0004427343
      %v1635 = vsel %vm1634, %v1632, %v1629
      %v1636 = vadd.f32 %v1622, %v1635
      %v1637 = vld [vmem:[%s945] sm:$0xff]
      %v1638 = vmul.f32 %v1636, %v1637
      %vm1639 = vcmask 7168
      %v1640 = vsel %vm1639, %v1638, 0.0
      %v1641 = vrot.slane %v1640, 4
      %v1642 = vadd.f32 %v1640, %v1641
      %v1643 = vrot.slane %v1642, 2
      %v1644 = vadd.f32 %v1642, %v1643
      %v1645 = vrot.slane %v1644, 1
      %v1646 = vadd.f32 %v1644, %v1645
      %v1647 = vsel %vm1639, %v1637, 0.0
      %v1648 = vrot.slane %v1647, 4
      %v1649 = vadd.f32 %v1647, %v1648
      %v1650 = vrot.slane %v1649, 2
      %v1651 = vadd.f32 %v1649, %v1650
      %v1652 = vrot.slane %v1651, 1
      %v1653 = vadd.f32 %v1651, %v1652
      %vm1654 = vcmp.eq.s32.totalorder %v976, 0
      %vm1655 = vcmp.eq.s32.totalorder %v976, 1
      %1657 = vset.pattern.permute.xlu0 0
      %1658 = vperm.xlu0 %1657, %v1653
      %v1659 = vpop.permute.xlu0 %1658
      %v1661 = vsel %vm1655, %v1659, 0.0
      %1663 = vset.pattern.permute.xlu0 0
      %1664 = vperm.xlu0 %1663, %v1646
      %v1665 = vpop.permute.xlu0 %1664
      %v1667 = vsel %vm1654, %v1665, %v1661
      %1668 = vst [vmem:[%s954] sm:$0x1] %v1667
      %p1669 = scmp.lt.s32.totalorder %s73, 1
      %s1670 = scalar_select %p1669, %s73, 1
      %s1671 = scalar_lea.vmem %s57, %s1670
      %p1672 = scmp.lt.s32.totalorder %s73, 1
      %s1673 = scalar_select %p1672, %s73, 1
      %s1674 = scalar_lea.vmem %s59, %s1673
      // Predicated region
      $region133: #{combined_forward.5} parent=131 // pred_check
        %p1675 = pneg %p699
      $region134: #{combined_forward.5} parent=131 // pred_check_branch
        %1677 = sbr.rel (%p1675) target = $region136
      $region135: #{combined_forward.5} parent=131 // pred_region
        _
      $region136: #{combined_forward.5} parent=131 // pred_fallthru
        _
      // Predicated region
      $region137: #{combined_forward.5} parent=131 // pred_check
        %p1678 = pneg %p725
      $region138: #{combined_forward.5} parent=131 // pred_check_branch
        %1680 = sbr.rel (%p1678) target = $region140
      $region139: #{combined_forward.5} parent=131 // pred_region
        _
      $region140: #{combined_forward.5} parent=131 // pred_fallthru
        _
    $region132: #{combined_forward.5} parent=5 // pred_fallthru
      _
    %p1681 = scmp.le.s32.totalorder 2, %s68
    // Predicated region
    $region141: #{combined_forward.5} parent=5 // pred_check
      %p1682 = pneg %p1681
    $region142: #{combined_forward.5} parent=5 // pred_check_branch
      %1684 = sbr.rel (%p1682) target = $region144
    $region143: #{combined_forward.5} parent=5 // pred_region
      %s1685 = ssub.s32 %s68, 2
      // Predicated region
      $region145: #{combined_forward.5} parent=143 // pred_check
        %p1686 = pneg %p705
      $region146: #{combined_forward.5} parent=143 // pred_check_branch
        %1688 = sbr.rel (%p1686) target = $region148
      $region147: #{combined_forward.5} parent=143 // pred_region
        %p1689 = scmp.lt.s32.totalorder %s74, 1
        %s1690 = scalar_select %p1689, %s74, 1
        %s1691 = scalar_lea.vmem %s57, %s1690
      $region148: #{combined_forward.5} parent=143 // pred_fallthru
        _
      // Predicated region
      $region149: #{combined_forward.5} parent=143 // pred_check
        %p1692 = pneg %p731
      $region150: #{combined_forward.5} parent=143 // pred_check_branch
        %1694 = sbr.rel (%p1692) target = $region152
      $region151: #{combined_forward.5} parent=143 // pred_region
        %p1695 = scmp.lt.s32.totalorder %s74, 1
        %s1696 = scalar_select %p1695, %s74, 1
        %s1697 = scalar_lea.vmem %s59, %s1696
      $region152: #{combined_forward.5} parent=143 // pred_fallthru
        _
    $region144: #{combined_forward.5} parent=5 // pred_fallthru
      _
  $region6: #{combined_forward.5} parent=0 // loop_footer
    %s72 = sadd.s32 1, %s68
  $region7: #{combined_forward.5} parent=0 // loop_footer_branch
    %67 = sbr.rel target = $region3
  $region8: #{combined_forward.5} parent=0 // loop_exit
    _

</llo_original>
